<compile_context>
chip_gen: v5e
topology: v5e:2x2
jax: 0.10.0
libtpu: 0.0.40
codegen_flags: <defaults>
</compile_context>

<pallas_src>
import functools

import jax
import jax.numpy as jnp
from jax.experimental import pallas as pl
from jax.experimental.pallas import tpu as pltpu


# ----------------------------------------------------------------------------
# Small in-kernel helpers (operate on traced VMEM values)
# ----------------------------------------------------------------------------
def _dot(a, b):
    """MXU matmul: bf16 operands, f32 accumulation."""
    return jnp.dot(a.astype(jnp.bfloat16), b.astype(jnp.bfloat16),
                   preferred_element_type=jnp.float32)


def _glu(y, c):
    """GLU on a (rows, 2c) pre-activation: tanh(first half) * sigmoid(second)."""
    return jnp.tanh(y[:, :c]) * jax.nn.sigmoid(y[:, c:])


def _taps_cat(x3, n_taps, dilation, out_t):
    """Gather n_taps time-shifted slices of (T, N, C), concat along channels."""
    _, Nn, C = x3.shape
    taps = [x3[k * dilation:k * dilation + out_t].reshape(out_t * Nn, C)
            for k in range(n_taps)]
    return taps[0] if n_taps == 1 else jnp.concatenate(taps, axis=-1)


def _gcn_block(h_flat, Nn, a_kron, p):
    """One GCNPool block. h_flat: (T*N, C) f32, time-major rows."""
    C = h_flat.shape[-1]
    Tn = h_flat.shape[0] // Nn
    Kt = p["time_w"].shape[0] // C           # time_w rows = Kt * C_in, C_in == C

    # residual 1x1 conv
    residual = _dot(h_flat, p["res_w"][...]) + p["res_b"][...]          # (T*N, C)

    # time_conv (1, Kt), dilation 2: Kt taps channel-concatenated -> one
    # matmul producing both GLU halves at once.
    x3 = h_flat.reshape(Tn, Nn, C)
    T1 = Tn - 2 * (Kt - 1)
    xc = _taps_cat(x3, Kt, 2, T1)                                       # (T1*N, Kt*C)
    g = _glu(_dot(xc, p["time_w"][...]) + p["time_b"][...], C)          # (T1*N, C)

    # graph diffusion (nconv), single support, order 2, via kron(I_T, A^T)
    g1 = _dot(a_kron, g)
    g2 = _dot(a_kron, g1)
    gc = jnp.concatenate([g, g1, g2], axis=-1)                          # (T1*N, 3C)

    # gcn mlp: (1, Kt) conv over the channel-concat of diffusion orders,
    # again a single fused-GLU matmul.
    L = T1 - (Kt - 1)
    gc3 = gc.reshape(T1, Nn, 3 * C)
    mc = _taps_cat(gc3, Kt, 1, L)                                       # (L*N, Kt*3C)
    h = _glu(_dot(mc, p["mlp_w"][...]) + p["mlp_b"][...], C)            # (L*N, C)
    h3 = h.reshape(L, Nn, C)

    # temporal attention TATT_1 (BatchNorm1d: eval-mode identity)
    f1 = jnp.sum(h3 * p["att_w1"][...], axis=-1)                        # (L, N)
    f2 = jnp.sum(h3 * p["att_w2"][...], axis=1)                         # (L, C)
    fw = jnp.dot(f1, p["att_w"][...], preferred_element_type=jnp.float32)
    logits = jnp.dot(fw, f2.T, preferred_element_type=jnp.float32)      # (L, L)
    sgm = jax.nn.sigmoid(logits + p["att_b"][...])
    lg = jnp.dot(p["att_v"][...], sgm, preferred_element_type=jnp.float32)
    lg = lg - jnp.max(lg, axis=-1, keepdims=True)
    e = jnp.exp(lg)
    coefs = e * pl.reciprocal(jnp.sum(e, axis=-1, keepdims=True), approx=True)

    # apply T_coef: out[q, n, c] = sum_l coefs[q, l] * h3[l, n, c]
    att3 = coefs[:, 0:1, None] * h3[0][None]
    for l in range(1, L):
        att3 = att3 + coefs[:, l:l + 1, None] * h3[l][None]
    att = att3.reshape(L * Nn, C)

    res = residual.reshape(Tn, Nn, C)[Tn - L:].reshape(L * Nn, C)
    # BatchNorm2d(c_out): eval mode, default running stats -> identity.
    return att + res, L


def _fused_kernel(x_ref, ak1_ref, ak2_ref, *refs, treedef, n_w):
    out_ref = refs[n_w]
    w = jax.tree_util.tree_unflatten(treedef, list(refs[:n_w]))

    xb = x_ref[0]                                   # (T, N, Cin) time-major CL
    T, Nn, Cin = xb.shape
    x2d = xb.reshape(T * Nn, Cin).astype(jnp.float32)

    # start 1x1 conv (BatchNorm2d(in_dim, affine=False) eval -> identity)
    if Cin == 1:
        h = x2d * w["start_w"][...] + w["start_b"][...]
    else:
        h = _dot(x2d, w["start_w"][...]) + w["start_b"][...]            # (T*N, 32)

    # block 1 + skip 1
    h, L1 = _gcn_block(h, Nn, ak1_ref[...], w["b1"])                    # (L1*N, 32)
    s1 = _dot(h, w["skip1_w"][...]) + w["skip1_b"][...]                 # (L1*N, 256)

    # block 2 + skip 2
    h, L2 = _gcn_block(h, Nn, ak2_ref[...], w["b2"])                    # (L2*N, 32)
    s2 = _dot(h, w["skip2_w"][...]) + w["skip2_b"][...]                 # (L2*N, 256)

    Cs = s1.shape[-1]
    skip = s2 + s1.reshape(L1, Nn, Cs)[L1 - L2:].reshape(L2 * Nn, Cs)
    sk3 = jnp.maximum(skip, 0.0).reshape(L2, Nn, Cs)

    # end_conv_1: (1,3) conv + relu, taps channel-concatenated -> one matmul
    Kte = w["end1_w"].shape[0] // Cs
    Te = L2 - (Kte - 1)
    ec = _taps_cat(sk3, Kte, 1, Te)                                     # (Te*N, Kte*Cs)
    e1 = jnp.maximum(_dot(ec, w["end1_w"][...]) + w["end1_b"][...], 0.0)

    # end_conv_2: 1x1
    y = _dot(e1, w["end2_w"][...]) + w["end2_b"][...]                   # (Te*N, out)
    out_ref[...] = y.reshape(1, Te, Nn, y.shape[-1])


# ----------------------------------------------------------------------------
# Adaptive adjacency kernel: A = rownorm(relu(nodevec1 @ nodevec2))
# ----------------------------------------------------------------------------
def _adj_kernel(nv1_ref, nv2_ref, o_ref):
    p = jnp.dot(nv1_ref[...], nv2_ref[...], preferred_element_type=jnp.float32)
    p = jnp.maximum(p, 0.0)
    # Same div-by-zero behaviour as the PyTorch reference (no epsilon).
    d = pl.reciprocal(jnp.sum(p, axis=-1, keepdims=True), approx=True)
    o_ref[...] = p * d


def pallas_adj(nv1, nv2):
    N, R = nv1.shape
    return pl.pallas_call(
        _adj_kernel,
        out_shape=jax.ShapeDtypeStruct((N, N), jnp.float32),
        grid=(1,),
        in_specs=[pl.BlockSpec((N, R), lambda i: (0, 0)),
                  pl.BlockSpec((R, N), lambda i: (0, 0))],
        out_specs=pl.BlockSpec((N, N), lambda i: (0, 0)),
    )(nv1.astype(jnp.float32), nv2.astype(jnp.float32))


# ----------------------------------------------------------------------------
# Weight packing (XLA-level, one-time): torch conv layouts -> kernel layouts
# ----------------------------------------------------------------------------
def _conv_w(w):          # (Co, Ci, 1, 1) -> (Ci, Co)
    return jnp.transpose(w[:, :, 0, 0], (1, 0))


def _tconv_w(w):         # (Co, Ci, 1, Kt) -> (Kt*Ci, Co), k-major / ci-minor rows
    Co, Ci, _, Kt = w.shape
    return jnp.transpose(w[:, :, 0, :], (2, 1, 0)).reshape(Kt * Ci, Co)


def _bias(b):
    return b.reshape(1, -1).astype(jnp.float32)


def _pack_block(p, c_out):
    bf = jnp.bfloat16
    tatt = p["tatt"]
    return {
        "res_w": _conv_w(p["res_w"]).astype(bf), "res_b": _bias(p["res_b"]),
        "time_w": _tconv_w(p["time_w"]).astype(bf), "time_b": _bias(p["time_b"]),
        "mlp_w": _tconv_w(p["mlp_w"]).astype(bf), "mlp_b": _bias(p["mlp_b"]),
        "att_w1": tatt["conv1_w"][0, :, 0, 0].reshape(1, 1, c_out).astype(jnp.float32),
        "att_w2": tatt["conv2_w"][0, :, 0, 0].reshape(1, -1, 1).astype(jnp.float32),
        "att_w": tatt["w"].astype(jnp.float32),
        "att_b": tatt["b"].astype(jnp.float32),
        "att_v": tatt["v"].astype(jnp.float32),
    }


def _pack_params(params):
    bf = jnp.bfloat16
    c_out = params["start_w"].shape[0]
    return {
        "start_w": _conv_w(params["start_w"]).astype(jnp.float32),
        "start_b": _bias(params["start_b"]),
        "b1": _pack_block(params["block1"], c_out),
        "b2": _pack_block(params["block2"], c_out),
        "skip1_w": _conv_w(params["skip1_w"]).astype(bf),
        "skip1_b": _bias(params["skip1_b"]),
        "skip2_w": _conv_w(params["skip2_w"]).astype(bf),
        "skip2_b": _bias(params["skip2_b"]),
        "end1_w": _tconv_w(params["end1_w"]).astype(bf),
        "end1_b": _bias(params["end1_b"]),
        "end2_w": _conv_w(params["end2_w"]).astype(bf),
        "end2_b": _bias(params["end2_b"]),
    }


def _full_spec(shape):
    nd = len(shape)
    return pl.BlockSpec(tuple(shape), lambda b, _nd=nd: (0,) * _nd)


# ----------------------------------------------------------------------------
# H_GCN_wh forward
# ----------------------------------------------------------------------------
def h_gcn_wh_forward(x, params):
    B, Cin, Nn, T = x.shape

    # supports=None in __init__ -> new_supports == [A]
    A = pallas_adj(params["nodevec1"], params["nodevec2"])              # (N, N)

    Kt1 = params["block1"]["time_w"].shape[-1]
    Kt2 = params["block2"]["time_w"].shape[-1]
    Kte = params["end1_w"].shape[-1]
    T1 = T - 2 * (Kt1 - 1)
    L1 = T1 - (Kt1 - 1)
    T2 = L1 - 2 * (Kt2 - 1)
    L2 = T2 - (Kt2 - 1)
    Te = L2 - (Kte - 1)
    out_dim = params["end2_w"].shape[0]

    # graph-diffusion operators on the time-major flattened layout
    At = A.T
    ak1 = jnp.kron(jnp.eye(T1, dtype=jnp.float32), At).astype(jnp.bfloat16)
    ak2 = jnp.kron(jnp.eye(T2, dtype=jnp.float32), At).astype(jnp.bfloat16)

    w = _pack_params(params)
    leaves, treedef = jax.tree_util.tree_flatten(w)

    x_cl = jnp.transpose(x, (0, 3, 2, 1))        # (B, T, N, Cin) time-major CL

    kernel = functools.partial(_fused_kernel, treedef=treedef, n_w=len(leaves))

    in_specs = [pl.BlockSpec((1, T, Nn, Cin), lambda b: (b, 0, 0, 0)),
                _full_spec(ak1.shape),
                _full_spec(ak2.shape)]
    in_specs += [_full_spec(l.shape) for l in leaves]

    out_cl = pl.pallas_call(
        kernel,
        out_shape=jax.ShapeDtypeStruct((B, Te, Nn, out_dim), jnp.float32),
        grid=(B,),
        in_specs=in_specs,
        out_specs=pl.BlockSpec((1, Te, Nn, out_dim), lambda b: (b, 0, 0, 0)),
        compiler_params=pltpu.CompilerParams(
            dimension_semantics=("parallel",)),
    )(x_cl, ak1, ak2, *leaves)

    out = jnp.transpose(out_cl, (0, 3, 2, 1))    # NCHW (B, out_dim, N, Te)
    return out, out, A


# ----------------------------------------------------------------------------
# Deterministic parameter init (synthetic; shapes follow the torch __init__)
# ----------------------------------------------------------------------------
def _nrm(key, shape, scale=0.1):
    return scale * jax.random.normal(key, shape, jnp.float32)


def init_gcnpool_params(key, c_in, c_out, num_nodes, tem_size, Kt,
                        support_len=1, order=2):
    ks = jax.random.split(key, 10)
    return {
        "time_w": _nrm(ks[0], (2 * c_out, c_in, 1, Kt)),
        "time_b": _nrm(ks[1], (2 * c_out,)),
        "mlp_w": _nrm(ks[2], (2 * c_out, (order * support_len + 1) * c_out, 1, Kt)),
        "mlp_b": _nrm(ks[3], (2 * c_out,)),
        "res_w": _nrm(ks[4], (c_out, c_in, 1, 1)),
        "res_b": _nrm(ks[5], (c_out,)),
        "tatt": {
            "conv1_w": _nrm(ks[6], (1, c_out, 1, 1)),
            "conv2_w": _nrm(ks[7], (1, num_nodes, 1, 1)),
            "w": _nrm(ks[8], (num_nodes, c_out)),
            "b": jnp.zeros((tem_size, tem_size), jnp.float32),
            "v": _nrm(ks[9], (tem_size, tem_size)),
        },
    }


def init_params(key, num_nodes, in_dim=1, length=12, residual_channels=32,
                dilation_channels=32, skip_channels=256, end_channels=512,
                out_dim=12):
    ks = jax.random.split(key, 16)
    return {
        "nodevec1": jax.random.normal(ks[0], (num_nodes, 10), jnp.float32),
        "nodevec2": jax.random.normal(ks[1], (10, num_nodes), jnp.float32),
        "start_w": _nrm(ks[2], (residual_channels, in_dim, 1, 1)),
        "start_b": _nrm(ks[3], (residual_channels,)),
        "block1": init_gcnpool_params(ks[4], dilation_channels, dilation_channels,
                                      num_nodes, length - 6, Kt=3),
        "block2": init_gcnpool_params(ks[5], dilation_channels, dilation_channels,
                                      num_nodes, length - 9, Kt=2),
        "skip1_w": _nrm(ks[6], (skip_channels, dilation_channels, 1, 1)),
        "skip1_b": _nrm(ks[7], (skip_channels,)),
        "skip2_w": _nrm(ks[8], (skip_channels, dilation_channels, 1, 1)),
        "skip2_b": _nrm(ks[9], (skip_channels,)),
        "end1_w": _nrm(ks[10], (end_channels, skip_channels, 1, 3)),
        "end1_b": _nrm(ks[11], (end_channels,)),
        "end2_w": _nrm(ks[12], (out_dim, end_channels, 1, 1)),
        "end2_b": _nrm(ks[13], (out_dim,)),
    }


if __name__ == "__main__":
    key = jax.random.PRNGKey(0)
    k_in, k_par = jax.random.split(key)

    B, in_dim, N, length = 2, 1, 8, 12   # N == 8 keeps in-kernel reshapes trivial
    x = jax.random.normal(k_in, (B, in_dim, N, length), jnp.float32)
    params = init_params(k_par, num_nodes=N, in_dim=in_dim, length=length)

    out, out2, A = jax.jit(h_gcn_wh_forward)(x, params)
    jax.block_until_ready(out)

    assert out.shape == (B, 12, N, 1), out.shape
    assert out2.shape == (B, 12, N, 1)
    assert A.shape == (N, N)
    assert bool(jnp.all(jnp.isfinite(out)))
    assert bool(jnp.all(jnp.isfinite(A)))
    print("KERNEL_OK")
</pallas_src>

<mosaic_0001>
module attributes {stable_mosaic.version = 11 : i64} {
  func.func @_adj_kernel(%arg0: i32, %arg1: memref<8x10xf32, #tpu.memory_space<vmem>>, %arg2: memref<10x8xf32, #tpu.memory_space<vmem>>, %arg3: memref<8x8xf32, #tpu.memory_space<vmem>>) attributes {dimension_semantics = [#tpu.dimension_semantics<arbitrary>], iteration_bounds = array<i64: 1>, scalar_prefetch = 0 : i64, scratch_operands = 0 : i64, tpu.core_type = #tpu.core_type<tc>, window_params = [{pipeline_mode = #tpu.pipeline_mode<synchronous>, transform_indices = @transform_0, window_bounds = array<i64: 8, 10>}, {pipeline_mode = #tpu.pipeline_mode<synchronous>, transform_indices = @transform_1, window_bounds = array<i64: 10, 8>}, {pipeline_mode = #tpu.pipeline_mode<synchronous>, transform_indices = @transform_2, window_bounds = array<i64: 8, 8>}]} {
    %c0 = arith.constant 0 : index
    %c0_0 = arith.constant 0 : index
    %0 = vector.load %arg1[%c0, %c0_0] : memref<8x10xf32, #tpu.memory_space<vmem>>, vector<8x10xf32>
    %c0_1 = arith.constant 0 : index
    %c0_2 = arith.constant 0 : index
    %1 = vector.load %arg2[%c0_1, %c0_2] : memref<10x8xf32, #tpu.memory_space<vmem>>, vector<10x8xf32>
    %cst = arith.constant dense<0.000000e+00> : vector<8x8xf32>
    %2 = tpu.matmul %0, %1, %cst {dimension_numbers = #tpu.dot_dimension_numbers<[1], [0], [0], [1], [0, 0, 1, 1], [], []>} : vector<8x10xf32>, vector<10x8xf32>, vector<8x8xf32> -> vector<8x8xf32>
    %cst_3 = arith.constant 0.000000e+00 : f32
    %3 = vector.broadcast %cst_3 : f32 to vector<8x8xf32>
    %4 = arith.maximumf %2, %3 : vector<8x8xf32>
    %cst_4 = arith.constant dense<0.000000e+00> : vector<8xf32>
    %5 = vector.multi_reduction <add>, %4, %cst_4 [1] : vector<8x8xf32> to vector<8xf32>
    %6 = vector.shape_cast %5 : vector<8xf32> to vector<8x1xf32>
    %7 = tpu.reciprocal %6 {approx = true} : vector<8x1xf32> -> vector<8x1xf32>
    %8 = vector.broadcast %7 : vector<8x1xf32> to vector<8x8xf32>
    %9 = arith.mulf %4, %8 : vector<8x8xf32>
    %c0_5 = arith.constant 0 : index
    %c0_6 = arith.constant 0 : index
    %10 = vector.load %arg3[%c0_5, %c0_6] : memref<8x8xf32, #tpu.memory_space<vmem>>, vector<8x8xf32>
    tpu.vector_store %arg3[%c0_5, %c0_6], %9 {strides = array<i32>} : memref<8x8xf32, #tpu.memory_space<vmem>>, vector<8x8xf32>,
    return
  }
  func.func @transform_0(%arg0: i32) -> (i32, i32) {
    %c0_i32 = arith.constant 0 : i32
    %c0_i32_0 = arith.constant 0 : i32
    %c0_i32_1 = arith.constant 0 : i32
    return %c0_i32, %c0_i32_0 : i32, i32
  }
  func.func @transform_1(%arg0: i32) -> (i32, i32) {
    %c0_i32 = arith.constant 0 : i32
    %c0_i32_0 = arith.constant 0 : i32
    %c0_i32_1 = arith.constant 0 : i32
    return %c0_i32, %c0_i32_0 : i32, i32
  }
  func.func @transform_2(%arg0: i32) -> (i32, i32) {
    %c0_i32 = arith.constant 0 : i32
    %c0_i32_0 = arith.constant 0 : i32
    %c0_i32_1 = arith.constant 0 : i32
    return %c0_i32, %c0_i32_0 : i32, i32
  }
}

module attributes {stable_mosaic.version = 11 : i64} {
  func.func @_fused_kernel(%arg0: i32, %arg1: memref<1x12x8x1xf32, #tpu.memory_space<vmem>>, %arg2: memref<64x64xbf16, #tpu.memory_space<vmem>>, %arg3: memref<32x32xbf16, #tpu.memory_space<vmem>>, %arg4: memref<6x6xf32, #tpu.memory_space<vmem>>, %arg5: memref<6x6xf32, #tpu.memory_space<vmem>>, %arg6: memref<8x32xf32, #tpu.memory_space<vmem>>, %arg7: memref<1x1x32xf32, #tpu.memory_space<vmem>>, %arg8: memref<1x8x1xf32, #tpu.memory_space<vmem>>, %arg9: memref<1x64xf32, #tpu.memory_space<vmem>>, %arg10: memref<288x64xbf16, #tpu.memory_space<vmem>>, %arg11: memref<1x32xf32, #tpu.memory_space<vmem>>, %arg12: memref<32x32xbf16, #tpu.memory_space<vmem>>, %arg13: memref<1x64xf32, #tpu.memory_space<vmem>>, %arg14: memref<96x64xbf16, #tpu.memory_space<vmem>>, %arg15: memref<3x3xf32, #tpu.memory_space<vmem>>, %arg16: memref<3x3xf32, #tpu.memory_space<vmem>>, %arg17: memref<8x32xf32, #tpu.memory_space<vmem>>, %arg18: memref<1x1x32xf32, #tpu.memory_space<vmem>>, %arg19: memref<1x8x1xf32, #tpu.memory_space<vmem>>, %arg20: memref<1x64xf32, #tpu.memory_space<vmem>>, %arg21: memref<192x64xbf16, #tpu.memory_space<vmem>>, %arg22: memref<1x32xf32, #tpu.memory_space<vmem>>, %arg23: memref<32x32xbf16, #tpu.memory_space<vmem>>, %arg24: memref<1x64xf32, #tpu.memory_space<vmem>>, %arg25: memref<64x64xbf16, #tpu.memory_space<vmem>>, %arg26: memref<1x512xf32, #tpu.memory_space<vmem>>, %arg27: memref<768x512xbf16, #tpu.memory_space<vmem>>, %arg28: memref<1x12xf32, #tpu.memory_space<vmem>>, %arg29: memref<512x12xbf16, #tpu.memory_space<vmem>>, %arg30: memref<1x256xf32, #tpu.memory_space<vmem>>, %arg31: memref<32x256xbf16, #tpu.memory_space<vmem>>, %arg32: memref<1x256xf32, #tpu.memory_space<vmem>>, %arg33: memref<32x256xbf16, #tpu.memory_space<vmem>>, %arg34: memref<1x32xf32, #tpu.memory_space<vmem>>, %arg35: memref<1x32xf32, #tpu.memory_space<vmem>>, %arg36: memref<1x1x8x12xf32, #tpu.memory_space<vmem>>) attributes {dimension_semantics = [#tpu.dimension_semantics<parallel>], iteration_bounds = array<i64: 2>, scalar_prefetch = 0 : i64, scratch_operands = 0 : i64, tpu.core_type = #tpu.core_type<tc>, window_params = [{transform_indices = @transform_0, window_bounds = array<i64: 1, 12, 8, 1>}, {pipeline_mode = #tpu.pipeline_mode<synchronous>, transform_indices = @transform_1, window_bounds = array<i64: 64, 64>}, {pipeline_mode = #tpu.pipeline_mode<synchronous>, transform_indices = @transform_2, window_bounds = array<i64: 32, 32>}, {pipeline_mode = #tpu.pipeline_mode<synchronous>, transform_indices = @transform_3, window_bounds = array<i64: 6, 6>}, {pipeline_mode = #tpu.pipeline_mode<synchronous>, transform_indices = @transform_4, window_bounds = array<i64: 6, 6>}, {pipeline_mode = #tpu.pipeline_mode<synchronous>, transform_indices = @transform_5, window_bounds = array<i64: 8, 32>}, {pipeline_mode = #tpu.pipeline_mode<synchronous>, transform_indices = @transform_6, window_bounds = array<i64: 1, 1, 32>}, {pipeline_mode = #tpu.pipeline_mode<synchronous>, transform_indices = @transform_7, window_bounds = array<i64: 1, 8, 1>}, {pipeline_mode = #tpu.pipeline_mode<synchronous>, transform_indices = @transform_8, window_bounds = array<i64: 1, 64>}, {pipeline_mode = #tpu.pipeline_mode<synchronous>, transform_indices = @transform_9, window_bounds = array<i64: 288, 64>}, {pipeline_mode = #tpu.pipeline_mode<synchronous>, transform_indices = @transform_10, window_bounds = array<i64: 1, 32>}, {pipeline_mode = #tpu.pipeline_mode<synchronous>, transform_indices = @transform_11, window_bounds = array<i64: 32, 32>}, {pipeline_mode = #tpu.pipeline_mode<synchronous>, transform_indices = @transform_12, window_bounds = array<i64: 1, 64>}, {pipeline_mode = #tpu.pipeline_mode<synchronous>, transform_indices = @transform_13, window_bounds = array<i64: 96, 64>}, {pipeline_mode = #tpu.pipeline_mode<synchronous>, transform_indices = @transform_14, window_bounds = array<i64: 3, 3>}, {pipeline_mode = #tpu.pipeline_mode<synchronous>, transform_indices = @transform_15, window_bounds = array<i64: 3, 3>}, {pipeline_mode = #tpu.pipeline_mode<synchronous>, transform_indices = @transform_16, window_bounds = array<i64: 8, 32>}, {pipeline_mode = #tpu.pipeline_mode<synchronous>, transform_indices = @transform_17, window_bounds = array<i64: 1, 1, 32>}, {pipeline_mode = #tpu.pipeline_mode<synchronous>, transform_indices = @transform_18, window_bounds = array<i64: 1, 8, 1>}, {pipeline_mode = #tpu.pipeline_mode<synchronous>, transform_indices = @transform_19, window_bounds = array<i64: 1, 64>}, {pipeline_mode = #tpu.pipeline_mode<synchronous>, transform_indices = @transform_20, window_bounds = array<i64: 192, 64>}, {pipeline_mode = #tpu.pipeline_mode<synchronous>, transform_indices = @transform_21, window_bounds = array<i64: 1, 32>}, {pipeline_mode = #tpu.pipeline_mode<synchronous>, transform_indices = @transform_22, window_bounds = array<i64: 32, 32>}, {pipeline_mode = #tpu.pipeline_mode<synchronous>, transform_indices = @transform_23, window_bounds = array<i64: 1, 64>}, {pipeline_mode = #tpu.pipeline_mode<synchronous>, transform_indices = @transform_24, window_bounds = array<i64: 64, 64>}, {pipeline_mode = #tpu.pipeline_mode<synchronous>, transform_indices = @transform_25, window_bounds = array<i64: 1, 512>}, {pipeline_mode = #tpu.pipeline_mode<synchronous>, transform_indices = @transform_26, window_bounds = array<i64: 768, 512>}, {pipeline_mode = #tpu.pipeline_mode<synchronous>, transform_indices = @transform_27, window_bounds = array<i64: 1, 12>}, {pipeline_mode = #tpu.pipeline_mode<synchronous>, transform_indices = @transform_28, window_bounds = array<i64: 512, 12>}, {pipeline_mode = #tpu.pipeline_mode<synchronous>, transform_indices = @transform_29, window_bounds = array<i64: 1, 256>}, {pipeline_mode = #tpu.pipeline_mode<synchronous>, transform_indices = @transform_30, window_bounds = array<i64: 32, 256>}, {pipeline_mode = #tpu.pipeline_mode<synchronous>, transform_indices = @transform_31, window_bounds = array<i64: 1, 256>}, {pipeline_mode = #tpu.pipeline_mode<synchronous>, transform_indices = @transform_32, window_bounds = array<i64: 32, 256>}, {pipeline_mode = #tpu.pipeline_mode<synchronous>, transform_indices = @transform_33, window_bounds = array<i64: 1, 32>}, {pipeline_mode = #tpu.pipeline_mode<synchronous>, transform_indices = @transform_34, window_bounds = array<i64: 1, 32>}, {transform_indices = @transform_35, window_bounds = array<i64: 1, 1, 8, 12>}]} {
    %c0 = arith.constant 0 : index
    %c0_0 = arith.constant 0 : index
    %c0_1 = arith.constant 0 : index
    %c0_2 = arith.constant 0 : index
    %0 = vector.load %arg1[%c0, %c0_0, %c0_1, %c0_2] : memref<1x12x8x1xf32, #tpu.memory_space<vmem>>, vector<1x12x8x1xf32>
    %1 = vector.shape_cast %0 : vector<1x12x8x1xf32> to vector<12x8x1xf32>
    %2 = vector.shape_cast %1 : vector<12x8x1xf32> to vector<96x1xf32>
    %c0_3 = arith.constant 0 : index
    %c0_4 = arith.constant 0 : index
    %3 = vector.load %arg35[%c0_3, %c0_4] : memref<1x32xf32, #tpu.memory_space<vmem>>, vector<1x32xf32>
    %4 = vector.broadcast %2 : vector<96x1xf32> to vector<96x32xf32>
    %5 = vector.broadcast %3 : vector<1x32xf32> to vector<96x32xf32>
    %6 = arith.mulf %4, %5 : vector<96x32xf32>
    %c0_5 = arith.constant 0 : index
    %c0_6 = arith.constant 0 : index
    %7 = vector.load %arg34[%c0_5, %c0_6] : memref<1x32xf32, #tpu.memory_space<vmem>>, vector<1x32xf32>
    %8 = vector.broadcast %7 : vector<1x32xf32> to vector<96x32xf32>
    %9 = arith.addf %6, %8 : vector<96x32xf32>
    %c0_7 = arith.constant 0 : index
    %c0_8 = arith.constant 0 : index
    %10 = vector.load %arg2[%c0_7, %c0_8] : memref<64x64xbf16, #tpu.memory_space<vmem>>, vector<64x64xbf16>
    %c0_9 = arith.constant 0 : index
    %c0_10 = arith.constant 0 : index
    %11 = vector.load %arg12[%c0_9, %c0_10] : memref<32x32xbf16, #tpu.memory_space<vmem>>, vector<32x32xbf16>
    %12 = arith.truncf %9 : vector<96x32xf32> to vector<96x32xbf16>
    %cst = arith.constant dense<0.000000e+00> : vector<96x32xf32>
    %13 = tpu.matmul %12, %11, %cst {dimension_numbers = #tpu.dot_dimension_numbers<[1], [0], [0], [1], [0, 0, 1, 1], [], []>} : vector<96x32xbf16>, vector<32x32xbf16>, vector<96x32xf32> -> vector<96x32xf32>
    %c0_11 = arith.constant 0 : index
    %c0_12 = arith.constant 0 : index
    %14 = vector.load %arg11[%c0_11, %c0_12] : memref<1x32xf32, #tpu.memory_space<vmem>>, vector<1x32xf32>
    %15 = vector.broadcast %14 : vector<1x32xf32> to vector<96x32xf32>
    %16 = arith.addf %13, %15 : vector<96x32xf32>
    %17 = vector.shape_cast %9 : vector<96x32xf32> to vector<12x8x32xf32>
    %18 = vector.extract_strided_slice %17 {offsets = [0, 0, 0], sizes = [8, 8, 32], strides = [1, 1, 1]} : vector<12x8x32xf32> to vector<8x8x32xf32>
    %19 = vector.shape_cast %18 : vector<8x8x32xf32> to vector<64x32xf32>
    %20 = vector.extract_strided_slice %17 {offsets = [2, 0, 0], sizes = [8, 8, 32], strides = [1, 1, 1]} : vector<12x8x32xf32> to vector<8x8x32xf32>
    %21 = vector.shape_cast %20 : vector<8x8x32xf32> to vector<64x32xf32>
    %22 = vector.extract_strided_slice %17 {offsets = [4, 0, 0], sizes = [8, 8, 32], strides = [1, 1, 1]} : vector<12x8x32xf32> to vector<8x8x32xf32>
    %23 = vector.shape_cast %22 : vector<8x8x32xf32> to vector<64x32xf32>
    %24 = tpu.concatenate %19, %21, %23 in 1 : vector<64x32xf32>, vector<64x32xf32>, vector<64x32xf32> -> vector<64x96xf32>
    %c0_13 = arith.constant 0 : index
    %c0_14 = arith.constant 0 : index
    %25 = vector.load %arg14[%c0_13, %c0_14] : memref<96x64xbf16, #tpu.memory_space<vmem>>, vector<96x64xbf16>
    %26 = arith.truncf %24 : vector<64x96xf32> to vector<64x96xbf16>
    %cst_15 = arith.constant dense<0.000000e+00> : vector<64x64xf32>
    %27 = tpu.matmul %26, %25, %cst_15 {dimension_numbers = #tpu.dot_dimension_numbers<[1], [0], [0], [1], [0, 0, 1, 1], [], []>} : vector<64x96xbf16>, vector<96x64xbf16>, vector<64x64xf32> -> vector<64x64xf32>
    %c0_16 = arith.constant 0 : index
    %c0_17 = arith.constant 0 : index
    %28 = vector.load %arg13[%c0_16, %c0_17] : memref<1x64xf32, #tpu.memory_space<vmem>>, vector<1x64xf32>
    %29 = vector.broadcast %28 : vector<1x64xf32> to vector<64x64xf32>
    %30 = arith.addf %27, %29 : vector<64x64xf32>
    %31 = vector.extract_strided_slice %30 {offsets = [0, 0], sizes = [64, 32], strides = [1, 1]} : vector<64x64xf32> to vector<64x32xf32>
    %32 = math.tanh %31 : vector<64x32xf32>
    %33 = vector.extract_strided_slice %30 {offsets = [0, 32], sizes = [64, 32], strides = [1, 1]} : vector<64x64xf32> to vector<64x32xf32>
    %34 = arith.negf %33 : vector<64x32xf32>
    %35 = math.exp %34 : vector<64x32xf32>
    %cst_18 = arith.constant 1.000000e+00 : f32
    %36 = vector.broadcast %cst_18 : f32 to vector<64x32xf32>
    %37 = arith.addf %36, %35 : vector<64x32xf32>
    %38 = arith.divf %36, %37 : vector<64x32xf32>
    %39 = arith.mulf %32, %38 : vector<64x32xf32>
    %40 = arith.truncf %39 : vector<64x32xf32> to vector<64x32xbf16>
    %cst_19 = arith.constant dense<0.000000e+00> : vector<64x32xf32>
    %41 = tpu.matmul %10, %40, %cst_19 {dimension_numbers = #tpu.dot_dimension_numbers<[1], [0], [0], [1], [0, 0, 1, 1], [], []>} : vector<64x64xbf16>, vector<64x32xbf16>, vector<64x32xf32> -> vector<64x32xf32>
    %42 = arith.truncf %41 : vector<64x32xf32> to vector<64x32xbf16>
    %cst_20 = arith.constant dense<0.000000e+00> : vector<64x32xf32>
    %43 = tpu.matmul %10, %42, %cst_20 {dimension_numbers = #tpu.dot_dimension_numbers<[1], [0], [0], [1], [0, 0, 1, 1], [], []>} : vector<64x64xbf16>, vector<64x32xbf16>, vector<64x32xf32> -> vector<64x32xf32>
    %44 = tpu.concatenate %39, %41, %43 in 1 : vector<64x32xf32>, vector<64x32xf32>, vector<64x32xf32> -> vector<64x96xf32>
    %45 = vector.shape_cast %44 : vector<64x96xf32> to vector<8x8x96xf32>
    %46 = vector.extract_strided_slice %45 {offsets = [0, 0, 0], sizes = [6, 8, 96], strides = [1, 1, 1]} : vector<8x8x96xf32> to vector<6x8x96xf32>
    %47 = vector.shape_cast %46 : vector<6x8x96xf32> to vector<48x96xf32>
    %48 = vector.extract_strided_slice %45 {offsets = [1, 0, 0], sizes = [6, 8, 96], strides = [1, 1, 1]} : vector<8x8x96xf32> to vector<6x8x96xf32>
    %49 = vector.shape_cast %48 : vector<6x8x96xf32> to vector<48x96xf32>
    %50 = vector.extract_strided_slice %45 {offsets = [2, 0, 0], sizes = [6, 8, 96], strides = [1, 1, 1]} : vector<8x8x96xf32> to vector<6x8x96xf32>
    %51 = vector.shape_cast %50 : vector<6x8x96xf32> to vector<48x96xf32>
    %52 = tpu.concatenate %47, %49, %51 in 1 : vector<48x96xf32>, vector<48x96xf32>, vector<48x96xf32> -> vector<48x288xf32>
    %c0_21 = arith.constant 0 : index
    %c0_22 = arith.constant 0 : index
    %53 = vector.load %arg10[%c0_21, %c0_22] : memref<288x64xbf16, #tpu.memory_space<vmem>>, vector<288x64xbf16>
    %54 = arith.truncf %52 : vector<48x288xf32> to vector<48x288xbf16>
    %cst_23 = arith.constant dense<0.000000e+00> : vector<48x64xf32>
    %55 = tpu.matmul %54, %53, %cst_23 {dimension_numbers = #tpu.dot_dimension_numbers<[1], [0], [0], [1], [0, 0, 1, 1], [], []>} : vector<48x288xbf16>, vector<288x64xbf16>, vector<48x64xf32> -> vector<48x64xf32>
    %c0_24 = arith.constant 0 : index
    %c0_25 = arith.constant 0 : index
    %56 = vector.load %arg9[%c0_24, %c0_25] : memref<1x64xf32, #tpu.memory_space<vmem>>, vector<1x64xf32>
    %57 = vector.broadcast %56 : vector<1x64xf32> to vector<48x64xf32>
    %58 = arith.addf %55, %57 : vector<48x64xf32>
    %59 = vector.extract_strided_slice %58 {offsets = [0, 0], sizes = [48, 32], strides = [1, 1]} : vector<48x64xf32> to vector<48x32xf32>
    %60 = math.tanh %59 : vector<48x32xf32>
    %61 = vector.extract_strided_slice %58 {offsets = [0, 32], sizes = [48, 32], strides = [1, 1]} : vector<48x64xf32> to vector<48x32xf32>
    %62 = arith.negf %61 : vector<48x32xf32>
    %63 = math.exp %62 : vector<48x32xf32>
    %cst_26 = arith.constant 1.000000e+00 : f32
    %64 = vector.broadcast %cst_26 : f32 to vector<48x32xf32>
    %65 = arith.addf %64, %63 : vector<48x32xf32>
    %66 = arith.divf %64, %65 : vector<48x32xf32>
    %67 = arith.mulf %60, %66 : vector<48x32xf32>
    %68 = vector.shape_cast %67 : vector<48x32xf32> to vector<6x8x32xf32>
    %c0_27 = arith.constant 0 : index
    %c0_28 = arith.constant 0 : index
    %c0_29 = arith.constant 0 : index
    %69 = vector.load %arg7[%c0_27, %c0_28, %c0_29] : memref<1x1x32xf32, #tpu.memory_space<vmem>>, vector<1x1x32xf32>
    %70 = vector.broadcast %69 : vector<1x1x32xf32> to vector<6x8x32xf32>
    %71 = arith.mulf %68, %70 : vector<6x8x32xf32>
    %cst_30 = arith.constant dense<0.000000e+00> : vector<6x8xf32>
    %72 = vector.multi_reduction <add>, %71, %cst_30 [2] : vector<6x8x32xf32> to vector<6x8xf32>
    %c0_31 = arith.constant 0 : index
    %c0_32 = arith.constant 0 : index
    %c0_33 = arith.constant 0 : index
    %73 = vector.load %arg8[%c0_31, %c0_32, %c0_33] : memref<1x8x1xf32, #tpu.memory_space<vmem>>, vector<1x8x1xf32>
    %74 = vector.broadcast %73 : vector<1x8x1xf32> to vector<6x8x32xf32>
    %75 = arith.mulf %68, %74 : vector<6x8x32xf32>
    %cst_34 = arith.constant dense<0.000000e+00> : vector<6x32xf32>
    %76 = vector.multi_reduction <add>, %75, %cst_34 [1] : vector<6x8x32xf32> to vector<6x32xf32>
    %c0_35 = arith.constant 0 : index
    %c0_36 = arith.constant 0 : index
    %77 = vector.load %arg6[%c0_35, %c0_36] : memref<8x32xf32, #tpu.memory_space<vmem>>, vector<8x32xf32>
    %cst_37 = arith.constant dense<0.000000e+00> : vector<6x32xf32>
    %78 = tpu.matmul %72, %77, %cst_37 {dimension_numbers = #tpu.dot_dimension_numbers<[1], [0], [0], [1], [0, 0, 1, 1], [], []>} : vector<6x8xf32>, vector<8x32xf32>, vector<6x32xf32> -> vector<6x32xf32>
    %79 = tpu.transpose %76, [1, 0] : vector<6x32xf32> -> vector<32x6xf32>
    %cst_38 = arith.constant dense<0.000000e+00> : vector<6x6xf32>
    %80 = tpu.matmul %78, %79, %cst_38 {dimension_numbers = #tpu.dot_dimension_numbers<[1], [0], [0], [1], [0, 0, 1, 1], [], []>} : vector<6x32xf32>, vector<32x6xf32>, vector<6x6xf32> -> vector<6x6xf32>
    %c0_39 = arith.constant 0 : index
    %c0_40 = arith.constant 0 : index
    %81 = vector.load %arg4[%c0_39, %c0_40] : memref<6x6xf32, #tpu.memory_space<vmem>>, vector<6x6xf32>
    %82 = arith.addf %80, %81 : vector<6x6xf32>
    %83 = arith.negf %82 : vector<6x6xf32>
    %84 = math.exp %83 : vector<6x6xf32>
    %cst_41 = arith.constant 1.000000e+00 : f32
    %85 = vector.broadcast %cst_41 : f32 to vector<6x6xf32>
    %86 = arith.addf %85, %84 : vector<6x6xf32>
    %87 = arith.divf %85, %86 : vector<6x6xf32>
    %c0_42 = arith.constant 0 : index
    %c0_43 = arith.constant 0 : index
    %88 = vector.load %arg5[%c0_42, %c0_43] : memref<6x6xf32, #tpu.memory_space<vmem>>, vector<6x6xf32>
    %cst_44 = arith.constant dense<0.000000e+00> : vector<6x6xf32>
    %89 = tpu.matmul %88, %87, %cst_44 {dimension_numbers = #tpu.dot_dimension_numbers<[1], [0], [0], [1], [0, 0, 1, 1], [], []>} : vector<6x6xf32>, vector<6x6xf32>, vector<6x6xf32> -> vector<6x6xf32>
    %cst_45 = arith.constant dense<0xFF800000> : vector<6xf32>
    %90 = vector.multi_reduction <maximumf>, %89, %cst_45 [1] : vector<6x6xf32> to vector<6xf32>
    %91 = vector.shape_cast %90 : vector<6xf32> to vector<6x1xf32>
    %92 = vector.broadcast %91 : vector<6x1xf32> to vector<6x6xf32>
    %93 = arith.subf %89, %92 : vector<6x6xf32>
    %94 = math.exp %93 : vector<6x6xf32>
    %cst_46 = arith.constant dense<0.000000e+00> : vector<6xf32>
    %95 = vector.multi_reduction <add>, %94, %cst_46 [1] : vector<6x6xf32> to vector<6xf32>
    %96 = vector.shape_cast %95 : vector<6xf32> to vector<6x1xf32>
    %97 = tpu.reciprocal %96 {approx = true} : vector<6x1xf32> -> vector<6x1xf32>
    %98 = vector.broadcast %97 : vector<6x1xf32> to vector<6x6xf32>
    %99 = arith.mulf %94, %98 : vector<6x6xf32>
    %100 = vector.extract_strided_slice %99 {offsets = [0, 0], sizes = [6, 1], strides = [1, 1]} : vector<6x6xf32> to vector<6x1xf32>
    %101 = vector.shape_cast %100 : vector<6x1xf32> to vector<6x1x1xf32>
    %102 = vector.extract_strided_slice %68 {offsets = [0, 0, 0], sizes = [1, 8, 32], strides = [1, 1, 1]} : vector<6x8x32xf32> to vector<1x8x32xf32>
    %103 = vector.shape_cast %102 : vector<1x8x32xf32> to vector<8x32xf32>
    %104 = vector.shape_cast %103 : vector<8x32xf32> to vector<1x8x32xf32>
    %105 = vector.broadcast %101 : vector<6x1x1xf32> to vector<6x8x32xf32>
    %106 = vector.broadcast %104 : vector<1x8x32xf32> to vector<6x8x32xf32>
    %107 = arith.mulf %105, %106 : vector<6x8x32xf32>
    %108 = vector.extract_strided_slice %99 {offsets = [0, 1], sizes = [6, 1], strides = [1, 1]} : vector<6x6xf32> to vector<6x1xf32>
    %109 = vector.shape_cast %108 : vector<6x1xf32> to vector<6x1x1xf32>
    %110 = vector.extract_strided_slice %68 {offsets = [1, 0, 0], sizes = [1, 8, 32], strides = [1, 1, 1]} : vector<6x8x32xf32> to vector<1x8x32xf32>
    %111 = vector.shape_cast %110 : vector<1x8x32xf32> to vector<8x32xf32>
    %112 = vector.shape_cast %111 : vector<8x32xf32> to vector<1x8x32xf32>
    %113 = vector.broadcast %109 : vector<6x1x1xf32> to vector<6x8x32xf32>
    %114 = vector.broadcast %112 : vector<1x8x32xf32> to vector<6x8x32xf32>
    %115 = arith.mulf %113, %114 : vector<6x8x32xf32>
    %116 = arith.addf %107, %115 : vector<6x8x32xf32>
    %117 = vector.extract_strided_slice %99 {offsets = [0, 2], sizes = [6, 1], strides = [1, 1]} : vector<6x6xf32> to vector<6x1xf32>
    %118 = vector.shape_cast %117 : vector<6x1xf32> to vector<6x1x1xf32>
    %119 = vector.extract_strided_slice %68 {offsets = [2, 0, 0], sizes = [1, 8, 32], strides = [1, 1, 1]} : vector<6x8x32xf32> to vector<1x8x32xf32>
    %120 = vector.shape_cast %119 : vector<1x8x32xf32> to vector<8x32xf32>
    %121 = vector.shape_cast %120 : vector<8x32xf32> to vector<1x8x32xf32>
    %122 = vector.broadcast %118 : vector<6x1x1xf32> to vector<6x8x32xf32>
    %123 = vector.broadcast %121 : vector<1x8x32xf32> to vector<6x8x32xf32>
    %124 = arith.mulf %122, %123 : vector<6x8x32xf32>
    %125 = arith.addf %116, %124 : vector<6x8x32xf32>
    %126 = vector.extract_strided_slice %99 {offsets = [0, 3], sizes = [6, 1], strides = [1, 1]} : vector<6x6xf32> to vector<6x1xf32>
    %127 = vector.shape_cast %126 : vector<6x1xf32> to vector<6x1x1xf32>
    %128 = vector.extract_strided_slice %68 {offsets = [3, 0, 0], sizes = [1, 8, 32], strides = [1, 1, 1]} : vector<6x8x32xf32> to vector<1x8x32xf32>
    %129 = vector.shape_cast %128 : vector<1x8x32xf32> to vector<8x32xf32>
    %130 = vector.shape_cast %129 : vector<8x32xf32> to vector<1x8x32xf32>
    %131 = vector.broadcast %127 : vector<6x1x1xf32> to vector<6x8x32xf32>
    %132 = vector.broadcast %130 : vector<1x8x32xf32> to vector<6x8x32xf32>
    %133 = arith.mulf %131, %132 : vector<6x8x32xf32>
    %134 = arith.addf %125, %133 : vector<6x8x32xf32>
    %135 = vector.extract_strided_slice %99 {offsets = [0, 4], sizes = [6, 1], strides = [1, 1]} : vector<6x6xf32> to vector<6x1xf32>
    %136 = vector.shape_cast %135 : vector<6x1xf32> to vector<6x1x1xf32>
    %137 = vector.extract_strided_slice %68 {offsets = [4, 0, 0], sizes = [1, 8, 32], strides = [1, 1, 1]} : vector<6x8x32xf32> to vector<1x8x32xf32>
    %138 = vector.shape_cast %137 : vector<1x8x32xf32> to vector<8x32xf32>
    %139 = vector.shape_cast %138 : vector<8x32xf32> to vector<1x8x32xf32>
    %140 = vector.broadcast %136 : vector<6x1x1xf32> to vector<6x8x32xf32>
    %141 = vector.broadcast %139 : vector<1x8x32xf32> to vector<6x8x32xf32>
    %142 = arith.mulf %140, %141 : vector<6x8x32xf32>
    %143 = arith.addf %134, %142 : vector<6x8x32xf32>
    %144 = vector.extract_strided_slice %99 {offsets = [0, 5], sizes = [6, 1], strides = [1, 1]} : vector<6x6xf32> to vector<6x1xf32>
    %145 = vector.shape_cast %144 : vector<6x1xf32> to vector<6x1x1xf32>
    %146 = vector.extract_strided_slice %68 {offsets = [5, 0, 0], sizes = [1, 8, 32], strides = [1, 1, 1]} : vector<6x8x32xf32> to vector<1x8x32xf32>
    %147 = vector.shape_cast %146 : vector<1x8x32xf32> to vector<8x32xf32>
    %148 = vector.shape_cast %147 : vector<8x32xf32> to vector<1x8x32xf32>
    %149 = vector.broadcast %145 : vector<6x1x1xf32> to vector<6x8x32xf32>
    %150 = vector.broadcast %148 : vector<1x8x32xf32> to vector<6x8x32xf32>
    %151 = arith.mulf %149, %150 : vector<6x8x32xf32>
    %152 = arith.addf %143, %151 : vector<6x8x32xf32>
    %153 = vector.shape_cast %152 : vector<6x8x32xf32> to vector<48x32xf32>
    %154 = vector.shape_cast %16 : vector<96x32xf32> to vector<12x8x32xf32>
    %155 = vector.extract_strided_slice %154 {offsets = [6, 0, 0], sizes = [6, 8, 32], strides = [1, 1, 1]} : vector<12x8x32xf32> to vector<6x8x32xf32>
    %156 = vector.shape_cast %155 : vector<6x8x32xf32> to vector<48x32xf32>
    %157 = arith.addf %153, %156 : vector<48x32xf32>
    %c0_47 = arith.constant 0 : index
    %c0_48 = arith.constant 0 : index
    %158 = vector.load %arg31[%c0_47, %c0_48] : memref<32x256xbf16, #tpu.memory_space<vmem>>, vector<32x256xbf16>
    %159 = arith.truncf %157 : vector<48x32xf32> to vector<48x32xbf16>
    %cst_49 = arith.constant dense<0.000000e+00> : vector<48x256xf32>
    %160 = tpu.matmul %159, %158, %cst_49 {dimension_numbers = #tpu.dot_dimension_numbers<[1], [0], [0], [1], [0, 0, 1, 1], [], []>} : vector<48x32xbf16>, vector<32x256xbf16>, vector<48x256xf32> -> vector<48x256xf32>
    %c0_50 = arith.constant 0 : index
    %c0_51 = arith.constant 0 : index
    %161 = vector.load %arg30[%c0_50, %c0_51] : memref<1x256xf32, #tpu.memory_space<vmem>>, vector<1x256xf32>
    %162 = vector.broadcast %161 : vector<1x256xf32> to vector<48x256xf32>
    %163 = arith.addf %160, %162 : vector<48x256xf32>
    %c0_52 = arith.constant 0 : index
    %c0_53 = arith.constant 0 : index
    %164 = vector.load %arg3[%c0_52, %c0_53] : memref<32x32xbf16, #tpu.memory_space<vmem>>, vector<32x32xbf16>
    %c0_54 = arith.constant 0 : index
    %c0_55 = arith.constant 0 : index
    %165 = vector.load %arg23[%c0_54, %c0_55] : memref<32x32xbf16, #tpu.memory_space<vmem>>, vector<32x32xbf16>
    %166 = arith.truncf %157 : vector<48x32xf32> to vector<48x32xbf16>
    %cst_56 = arith.constant dense<0.000000e+00> : vector<48x32xf32>
    %167 = tpu.matmul %166, %165, %cst_56 {dimension_numbers = #tpu.dot_dimension_numbers<[1], [0], [0], [1], [0, 0, 1, 1], [], []>} : vector<48x32xbf16>, vector<32x32xbf16>, vector<48x32xf32> -> vector<48x32xf32>
    %c0_57 = arith.constant 0 : index
    %c0_58 = arith.constant 0 : index
    %168 = vector.load %arg22[%c0_57, %c0_58] : memref<1x32xf32, #tpu.memory_space<vmem>>, vector<1x32xf32>
    %169 = vector.broadcast %168 : vector<1x32xf32> to vector<48x32xf32>
    %170 = arith.addf %167, %169 : vector<48x32xf32>
    %171 = vector.shape_cast %157 : vector<48x32xf32> to vector<6x8x32xf32>
    %172 = vector.extract_strided_slice %171 {offsets = [0, 0, 0], sizes = [4, 8, 32], strides = [1, 1, 1]} : vector<6x8x32xf32> to vector<4x8x32xf32>
    %173 = vector.shape_cast %172 : vector<4x8x32xf32> to vector<32x32xf32>
    %174 = vector.extract_strided_slice %171 {offsets = [2, 0, 0], sizes = [4, 8, 32], strides = [1, 1, 1]} : vector<6x8x32xf32> to vector<4x8x32xf32>
    %175 = vector.shape_cast %174 : vector<4x8x32xf32> to vector<32x32xf32>
    %176 = tpu.concatenate %173, %175 in 1 : vector<32x32xf32>, vector<32x32xf32> -> vector<32x64xf32>
    %c0_59 = arith.constant 0 : index
    %c0_60 = arith.constant 0 : index
    %177 = vector.load %arg25[%c0_59, %c0_60] : memref<64x64xbf16, #tpu.memory_space<vmem>>, vector<64x64xbf16>
    %178 = arith.truncf %176 : vector<32x64xf32> to vector<32x64xbf16>
    %cst_61 = arith.constant dense<0.000000e+00> : vector<32x64xf32>
    %179 = tpu.matmul %178, %177, %cst_61 {dimension_numbers = #tpu.dot_dimension_numbers<[1], [0], [0], [1], [0, 0, 1, 1], [], []>} : vector<32x64xbf16>, vector<64x64xbf16>, vector<32x64xf32> -> vector<32x64xf32>
    %c0_62 = arith.constant 0 : index
    %c0_63 = arith.constant 0 : index
    %180 = vector.load %arg24[%c0_62, %c0_63] : memref<1x64xf32, #tpu.memory_space<vmem>>, vector<1x64xf32>
    %181 = vector.broadcast %180 : vector<1x64xf32> to vector<32x64xf32>
    %182 = arith.addf %179, %181 : vector<32x64xf32>
    %183 = vector.extract_strided_slice %182 {offsets = [0, 0], sizes = [32, 32], strides = [1, 1]} : vector<32x64xf32> to vector<32x32xf32>
    %184 = math.tanh %183 : vector<32x32xf32>
    %185 = vector.extract_strided_slice %182 {offsets = [0, 32], sizes = [32, 32], strides = [1, 1]} : vector<32x64xf32> to vector<32x32xf32>
    %186 = arith.negf %185 : vector<32x32xf32>
    %187 = math.exp %186 : vector<32x32xf32>
    %cst_64 = arith.constant 1.000000e+00 : f32
    %188 = vector.broadcast %cst_64 : f32 to vector<32x32xf32>
    %189 = arith.addf %188, %187 : vector<32x32xf32>
    %190 = arith.divf %188, %189 : vector<32x32xf32>
    %191 = arith.mulf %184, %190 : vector<32x32xf32>
    %192 = arith.truncf %191 : vector<32x32xf32> to vector<32x32xbf16>
    %cst_65 = arith.constant dense<0.000000e+00> : vector<32x32xf32>
    %193 = tpu.matmul %164, %192, %cst_65 {dimension_numbers = #tpu.dot_dimension_numbers<[1], [0], [0], [1], [0, 0, 1, 1], [], []>} : vector<32x32xbf16>, vector<32x32xbf16>, vector<32x32xf32> -> vector<32x32xf32>
    %194 = arith.truncf %193 : vector<32x32xf32> to vector<32x32xbf16>
    %cst_66 = arith.constant dense<0.000000e+00> : vector<32x32xf32>
    %195 = tpu.matmul %164, %194, %cst_66 {dimension_numbers = #tpu.dot_dimension_numbers<[1], [0], [0], [1], [0, 0, 1, 1], [], []>} : vector<32x32xbf16>, vector<32x32xbf16>, vector<32x32xf32> -> vector<32x32xf32>
    %196 = tpu.concatenate %191, %193, %195 in 1 : vector<32x32xf32>, vector<32x32xf32>, vector<32x32xf32> -> vector<32x96xf32>
    %197 = vector.shape_cast %196 : vector<32x96xf32> to vector<4x8x96xf32>
    %198 = vector.extract_strided_slice %197 {offsets = [0, 0, 0], sizes = [3, 8, 96], strides = [1, 1, 1]} : vector<4x8x96xf32> to vector<3x8x96xf32>
    %199 = vector.shape_cast %198 : vector<3x8x96xf32> to vector<24x96xf32>
    %200 = vector.extract_strided_slice %197 {offsets = [1, 0, 0], sizes = [3, 8, 96], strides = [1, 1, 1]} : vector<4x8x96xf32> to vector<3x8x96xf32>
    %201 = vector.shape_cast %200 : vector<3x8x96xf32> to vector<24x96xf32>
    %202 = tpu.concatenate %199, %201 in 1 : vector<24x96xf32>, vector<24x96xf32> -> vector<24x192xf32>
    %c0_67 = arith.constant 0 : index
    %c0_68 = arith.constant 0 : index
    %203 = vector.load %arg21[%c0_67, %c0_68] : memref<192x64xbf16, #tpu.memory_space<vmem>>, vector<192x64xbf16>
    %204 = arith.truncf %202 : vector<24x192xf32> to vector<24x192xbf16>
    %cst_69 = arith.constant dense<0.000000e+00> : vector<24x64xf32>
    %205 = tpu.matmul %204, %203, %cst_69 {dimension_numbers = #tpu.dot_dimension_numbers<[1], [0], [0], [1], [0, 0, 1, 1], [], []>} : vector<24x192xbf16>, vector<192x64xbf16>, vector<24x64xf32> -> vector<24x64xf32>
    %c0_70 = arith.constant 0 : index
    %c0_71 = arith.constant 0 : index
    %206 = vector.load %arg20[%c0_70, %c0_71] : memref<1x64xf32, #tpu.memory_space<vmem>>, vector<1x64xf32>
    %207 = vector.broadcast %206 : vector<1x64xf32> to vector<24x64xf32>
    %208 = arith.addf %205, %207 : vector<24x64xf32>
    %209 = vector.extract_strided_slice %208 {offsets = [0, 0], sizes = [24, 32], strides = [1, 1]} : vector<24x64xf32> to vector<24x32xf32>
    %210 = math.tanh %209 : vector<24x32xf32>
    %211 = vector.extract_strided_slice %208 {offsets = [0, 32], sizes = [24, 32], strides = [1, 1]} : vector<24x64xf32> to vector<24x32xf32>
    %212 = arith.negf %211 : vector<24x32xf32>
    %213 = math.exp %212 : vector<24x32xf32>
    %cst_72 = arith.constant 1.000000e+00 : f32
    %214 = vector.broadcast %cst_72 : f32 to vector<24x32xf32>
    %215 = arith.addf %214, %213 : vector<24x32xf32>
    %216 = arith.divf %214, %215 : vector<24x32xf32>
    %217 = arith.mulf %210, %216 : vector<24x32xf32>
    %218 = vector.shape_cast %217 : vector<24x32xf32> to vector<3x8x32xf32>
    %c0_73 = arith.constant 0 : index
    %c0_74 = arith.constant 0 : index
    %c0_75 = arith.constant 0 : index
    %219 = vector.load %arg18[%c0_73, %c0_74, %c0_75] : memref<1x1x32xf32, #tpu.memory_space<vmem>>, vector<1x1x32xf32>
    %220 = vector.broadcast %219 : vector<1x1x32xf32> to vector<3x8x32xf32>
    %221 = arith.mulf %218, %220 : vector<3x8x32xf32>
    %cst_76 = arith.constant dense<0.000000e+00> : vector<3x8xf32>
    %222 = vector.multi_reduction <add>, %221, %cst_76 [2] : vector<3x8x32xf32> to vector<3x8xf32>
    %c0_77 = arith.constant 0 : index
    %c0_78 = arith.constant 0 : index
    %c0_79 = arith.constant 0 : index
    %223 = vector.load %arg19[%c0_77, %c0_78, %c0_79] : memref<1x8x1xf32, #tpu.memory_space<vmem>>, vector<1x8x1xf32>
    %224 = vector.broadcast %223 : vector<1x8x1xf32> to vector<3x8x32xf32>
    %225 = arith.mulf %218, %224 : vector<3x8x32xf32>
    %cst_80 = arith.constant dense<0.000000e+00> : vector<3x32xf32>
    %226 = vector.multi_reduction <add>, %225, %cst_80 [1] : vector<3x8x32xf32> to vector<3x32xf32>
    %c0_81 = arith.constant 0 : index
    %c0_82 = arith.constant 0 : index
    %227 = vector.load %arg17[%c0_81, %c0_82] : memref<8x32xf32, #tpu.memory_space<vmem>>, vector<8x32xf32>
    %cst_83 = arith.constant dense<0.000000e+00> : vector<3x32xf32>
    %228 = tpu.matmul %222, %227, %cst_83 {dimension_numbers = #tpu.dot_dimension_numbers<[1], [0], [0], [1], [0, 0, 1, 1], [], []>} : vector<3x8xf32>, vector<8x32xf32>, vector<3x32xf32> -> vector<3x32xf32>
    %229 = tpu.transpose %226, [1, 0] : vector<3x32xf32> -> vector<32x3xf32>
    %cst_84 = arith.constant dense<0.000000e+00> : vector<3x3xf32>
    %230 = tpu.matmul %228, %229, %cst_84 {dimension_numbers = #tpu.dot_dimension_numbers<[1], [0], [0], [1], [0, 0, 1, 1], [], []>} : vector<3x32xf32>, vector<32x3xf32>, vector<3x3xf32> -> vector<3x3xf32>
    %c0_85 = arith.constant 0 : index
    %c0_86 = arith.constant 0 : index
    %231 = vector.load %arg15[%c0_85, %c0_86] : memref<3x3xf32, #tpu.memory_space<vmem>>, vector<3x3xf32>
    %232 = arith.addf %230, %231 : vector<3x3xf32>
    %233 = arith.negf %232 : vector<3x3xf32>
    %234 = math.exp %233 : vector<3x3xf32>
    %cst_87 = arith.constant 1.000000e+00 : f32
    %235 = vector.broadcast %cst_87 : f32 to vector<3x3xf32>
    %236 = arith.addf %235, %234 : vector<3x3xf32>
    %237 = arith.divf %235, %236 : vector<3x3xf32>
    %c0_88 = arith.constant 0 : index
    %c0_89 = arith.constant 0 : index
    %238 = vector.load %arg16[%c0_88, %c0_89] : memref<3x3xf32, #tpu.memory_space<vmem>>, vector<3x3xf32>
    %cst_90 = arith.constant dense<0.000000e+00> : vector<3x3xf32>
    %239 = tpu.matmul %238, %237, %cst_90 {dimension_numbers = #tpu.dot_dimension_numbers<[1], [0], [0], [1], [0, 0, 1, 1], [], []>} : vector<3x3xf32>, vector<3x3xf32>, vector<3x3xf32> -> vector<3x3xf32>
    %cst_91 = arith.constant dense<0xFF800000> : vector<3xf32>
    %240 = vector.multi_reduction <maximumf>, %239, %cst_91 [1] : vector<3x3xf32> to vector<3xf32>
    %241 = vector.shape_cast %240 : vector<3xf32> to vector<3x1xf32>
    %242 = vector.broadcast %241 : vector<3x1xf32> to vector<3x3xf32>
    %243 = arith.subf %239, %242 : vector<3x3xf32>
    %244 = math.exp %243 : vector<3x3xf32>
    %cst_92 = arith.constant dense<0.000000e+00> : vector<3xf32>
    %245 = vector.multi_reduction <add>, %244, %cst_92 [1] : vector<3x3xf32> to vector<3xf32>
    %246 = vector.shape_cast %245 : vector<3xf32> to vector<3x1xf32>
    %247 = tpu.reciprocal %246 {approx = true} : vector<3x1xf32> -> vector<3x1xf32>
    %248 = vector.broadcast %247 : vector<3x1xf32> to vector<3x3xf32>
    %249 = arith.mulf %244, %248 : vector<3x3xf32>
    %250 = vector.extract_strided_slice %249 {offsets = [0, 0], sizes = [3, 1], strides = [1, 1]} : vector<3x3xf32> to vector<3x1xf32>
    %251 = vector.shape_cast %250 : vector<3x1xf32> to vector<3x1x1xf32>
    %252 = vector.extract_strided_slice %218 {offsets = [0, 0, 0], sizes = [1, 8, 32], strides = [1, 1, 1]} : vector<3x8x32xf32> to vector<1x8x32xf32>
    %253 = vector.shape_cast %252 : vector<1x8x32xf32> to vector<8x32xf32>
    %254 = vector.shape_cast %253 : vector<8x32xf32> to vector<1x8x32xf32>
    %255 = vector.broadcast %251 : vector<3x1x1xf32> to vector<3x8x32xf32>
    %256 = vector.broadcast %254 : vector<1x8x32xf32> to vector<3x8x32xf32>
    %257 = arith.mulf %255, %256 : vector<3x8x32xf32>
    %258 = vector.extract_strided_slice %249 {offsets = [0, 1], sizes = [3, 1], strides = [1, 1]} : vector<3x3xf32> to vector<3x1xf32>
    %259 = vector.shape_cast %258 : vector<3x1xf32> to vector<3x1x1xf32>
    %260 = vector.extract_strided_slice %218 {offsets = [1, 0, 0], sizes = [1, 8, 32], strides = [1, 1, 1]} : vector<3x8x32xf32> to vector<1x8x32xf32>
    %261 = vector.shape_cast %260 : vector<1x8x32xf32> to vector<8x32xf32>
    %262 = vector.shape_cast %261 : vector<8x32xf32> to vector<1x8x32xf32>
    %263 = vector.broadcast %259 : vector<3x1x1xf32> to vector<3x8x32xf32>
    %264 = vector.broadcast %262 : vector<1x8x32xf32> to vector<3x8x32xf32>
    %265 = arith.mulf %263, %264 : vector<3x8x32xf32>
    %266 = arith.addf %257, %265 : vector<3x8x32xf32>
    %267 = vector.extract_strided_slice %249 {offsets = [0, 2], sizes = [3, 1], strides = [1, 1]} : vector<3x3xf32> to vector<3x1xf32>
    %268 = vector.shape_cast %267 : vector<3x1xf32> to vector<3x1x1xf32>
    %269 = vector.extract_strided_slice %218 {offsets = [2, 0, 0], sizes = [1, 8, 32], strides = [1, 1, 1]} : vector<3x8x32xf32> to vector<1x8x32xf32>
    %270 = vector.shape_cast %269 : vector<1x8x32xf32> to vector<8x32xf32>
    %271 = vector.shape_cast %270 : vector<8x32xf32> to vector<1x8x32xf32>
    %272 = vector.broadcast %268 : vector<3x1x1xf32> to vector<3x8x32xf32>
    %273 = vector.broadcast %271 : vector<1x8x32xf32> to vector<3x8x32xf32>
    %274 = arith.mulf %272, %273 : vector<3x8x32xf32>
    %275 = arith.addf %266, %274 : vector<3x8x32xf32>
    %276 = vector.shape_cast %275 : vector<3x8x32xf32> to vector<24x32xf32>
    %277 = vector.shape_cast %170 : vector<48x32xf32> to vector<6x8x32xf32>
    %278 = vector.extract_strided_slice %277 {offsets = [3, 0, 0], sizes = [3, 8, 32], strides = [1, 1, 1]} : vector<6x8x32xf32> to vector<3x8x32xf32>
    %279 = vector.shape_cast %278 : vector<3x8x32xf32> to vector<24x32xf32>
    %280 = arith.addf %276, %279 : vector<24x32xf32>
    %c0_93 = arith.constant 0 : index
    %c0_94 = arith.constant 0 : index
    %281 = vector.load %arg33[%c0_93, %c0_94] : memref<32x256xbf16, #tpu.memory_space<vmem>>, vector<32x256xbf16>
    %282 = arith.truncf %280 : vector<24x32xf32> to vector<24x32xbf16>
    %cst_95 = arith.constant dense<0.000000e+00> : vector<24x256xf32>
    %283 = tpu.matmul %282, %281, %cst_95 {dimension_numbers = #tpu.dot_dimension_numbers<[1], [0], [0], [1], [0, 0, 1, 1], [], []>} : vector<24x32xbf16>, vector<32x256xbf16>, vector<24x256xf32> -> vector<24x256xf32>
    %c0_96 = arith.constant 0 : index
    %c0_97 = arith.constant 0 : index
    %284 = vector.load %arg32[%c0_96, %c0_97] : memref<1x256xf32, #tpu.memory_space<vmem>>, vector<1x256xf32>
    %285 = vector.broadcast %284 : vector<1x256xf32> to vector<24x256xf32>
    %286 = arith.addf %283, %285 : vector<24x256xf32>
    %287 = vector.shape_cast %163 : vector<48x256xf32> to vector<6x8x256xf32>
    %288 = vector.extract_strided_slice %287 {offsets = [3, 0, 0], sizes = [3, 8, 256], strides = [1, 1, 1]} : vector<6x8x256xf32> to vector<3x8x256xf32>
    %289 = vector.shape_cast %288 : vector<3x8x256xf32> to vector<24x256xf32>
    %290 = arith.addf %286, %289 : vector<24x256xf32>
    %cst_98 = arith.constant 0.000000e+00 : f32
    %291 = vector.broadcast %cst_98 : f32 to vector<24x256xf32>
    %292 = arith.maximumf %290, %291 : vector<24x256xf32>
    %293 = vector.shape_cast %292 : vector<24x256xf32> to vector<3x8x256xf32>
    %294 = vector.extract_strided_slice %293 {offsets = [0, 0, 0], sizes = [1, 8, 256], strides = [1, 1, 1]} : vector<3x8x256xf32> to vector<1x8x256xf32>
    %295 = vector.shape_cast %294 : vector<1x8x256xf32> to vector<8x256xf32>
    %296 = vector.extract_strided_slice %293 {offsets = [1, 0, 0], sizes = [1, 8, 256], strides = [1, 1, 1]} : vector<3x8x256xf32> to vector<1x8x256xf32>
    %297 = vector.shape_cast %296 : vector<1x8x256xf32> to vector<8x256xf32>
    %298 = vector.extract_strided_slice %293 {offsets = [2, 0, 0], sizes = [1, 8, 256], strides = [1, 1, 1]} : vector<3x8x256xf32> to vector<1x8x256xf32>
    %299 = vector.shape_cast %298 : vector<1x8x256xf32> to vector<8x256xf32>
    %300 = tpu.concatenate %295, %297, %299 in 1 : vector<8x256xf32>, vector<8x256xf32>, vector<8x256xf32> -> vector<8x768xf32>
    %c0_99 = arith.constant 0 : index
    %c0_100 = arith.constant 0 : index
    %301 = vector.load %arg27[%c0_99, %c0_100] : memref<768x512xbf16, #tpu.memory_space<vmem>>, vector<768x512xbf16>
    %302 = arith.truncf %300 : vector<8x768xf32> to vector<8x768xbf16>
    %cst_101 = arith.constant dense<0.000000e+00> : vector<8x512xf32>
    %303 = tpu.matmul %302, %301, %cst_101 {dimension_numbers = #tpu.dot_dimension_numbers<[1], [0], [0], [1], [0, 0, 1, 1], [], []>} : vector<8x768xbf16>, vector<768x512xbf16>, vector<8x512xf32> -> vector<8x512xf32>
    %c0_102 = arith.constant 0 : index
    %c0_103 = arith.constant 0 : index
    %304 = vector.load %arg26[%c0_102, %c0_103] : memref<1x512xf32, #tpu.memory_space<vmem>>, vector<1x512xf32>
    %305 = vector.broadcast %304 : vector<1x512xf32> to vector<8x512xf32>
    %306 = arith.addf %303, %305 : vector<8x512xf32>
    %cst_104 = arith.constant 0.000000e+00 : f32
    %307 = vector.broadcast %cst_104 : f32 to vector<8x512xf32>
    %308 = arith.maximumf %306, %307 : vector<8x512xf32>
    %c0_105 = arith.constant 0 : index
    %c0_106 = arith.constant 0 : index
    %309 = vector.load %arg29[%c0_105, %c0_106] : memref<512x12xbf16, #tpu.memory_space<vmem>>, vector<512x12xbf16>
    %310 = arith.truncf %308 : vector<8x512xf32> to vector<8x512xbf16>
    %cst_107 = arith.constant dense<0.000000e+00> : vector<8x12xf32>
    %311 = tpu.matmul %310, %309, %cst_107 {dimension_numbers = #tpu.dot_dimension_numbers<[1], [0], [0], [1], [0, 0, 1, 1], [], []>} : vector<8x512xbf16>, vector<512x12xbf16>, vector<8x12xf32> -> vector<8x12xf32>
    %c0_108 = arith.constant 0 : index
    %c0_109 = arith.constant 0 : index
    %312 = vector.load %arg28[%c0_108, %c0_109] : memref<1x12xf32, #tpu.memory_space<vmem>>, vector<1x12xf32>
    %313 = vector.broadcast %312 : vector<1x12xf32> to vector<8x12xf32>
    %314 = arith.addf %311, %313 : vector<8x12xf32>
    %315 = vector.shape_cast %314 : vector<8x12xf32> to vector<1x1x8x12xf32>
    %c0_110 = arith.constant 0 : index
    %c0_111 = arith.constant 0 : index
    %c0_112 = arith.constant 0 : index
    %c0_113 = arith.constant 0 : index
    %316 = vector.load %arg36[%c0_110, %c0_111, %c0_112, %c0_113] : memref<1x1x8x12xf32, #tpu.memory_space<vmem>>, vector<1x1x8x12xf32>
    tpu.vector_store %arg36[%c0_110, %c0_111, %c0_112, %c0_113], %315 {strides = array<i32>} : memref<1x1x8x12xf32, #tpu.memory_space<vmem>>, vector<1x1x8x12xf32>,
    return
  }
  func.func @transform_0(%arg0: i32) -> (i32, i32, i32, i32) {
    %c0_i32 = arith.constant 0 : i32
    %c0_i32_0 = arith.constant 0 : i32
    %c0_i32_1 = arith.constant 0 : i32
    %c0_i32_2 = arith.constant 0 : i32
    return %arg0, %c0_i32, %c0_i32_0, %c0_i32_1 : i32, i32, i32, i32
  }
  func.func @transform_1(%arg0: i32) -> (i32, i32) {
    %c0_i32 = arith.constant 0 : i32
    %c0_i32_0 = arith.constant 0 : i32
    %c0_i32_1 = arith.constant 0 : i32
    return %c0_i32, %c0_i32_0 : i32, i32
  }
  func.func @transform_2(%arg0: i32) -> (i32, i32) {
    %c0_i32 = arith.constant 0 : i32
    %c0_i32_0 = arith.constant 0 : i32
    %c0_i32_1 = arith.constant 0 : i32
    return %c0_i32, %c0_i32_0 : i32, i32
  }
  func.func @transform_3(%arg0: i32) -> (i32, i32) {
    %c0_i32 = arith.constant 0 : i32
    %c0_i32_0 = arith.constant 0 : i32
    %c0_i32_1 = arith.constant 0 : i32
    return %c0_i32, %c0_i32_0 : i32, i32
  }
  func.func @transform_4(%arg0: i32) -> (i32, i32) {
    %c0_i32 = arith.constant 0 : i32
    %c0_i32_0 = arith.constant 0 : i32
    %c0_i32_1 = arith.constant 0 : i32
    return %c0_i32, %c0_i32_0 : i32, i32
  }
  func.func @transform_5(%arg0: i32) -> (i32, i32) {
    %c0_i32 = arith.constant 0 : i32
    %c0_i32_0 = arith.constant 0 : i32
    %c0_i32_1 = arith.constant 0 : i32
    return %c0_i32, %c0_i32_0 : i32, i32
  }
  func.func @transform_6(%arg0: i32) -> (i32, i32, i32) {
    %c0_i32 = arith.constant 0 : i32
    %c0_i32_0 = arith.constant 0 : i32
    %c0_i32_1 = arith.constant 0 : i32
    %c0_i32_2 = arith.constant 0 : i32
    return %c0_i32, %c0_i32_0, %c0_i32_1 : i32, i32, i32
  }
  func.func @transform_7(%arg0: i32) -> (i32, i32, i32) {
    %c0_i32 = arith.constant 0 : i32
    %c0_i32_0 = arith.constant 0 : i32
    %c0_i32_1 = arith.constant 0 : i32
    %c0_i32_2 = arith.constant 0 : i32
    return %c0_i32, %c0_i32_0, %c0_i32_1 : i32, i32, i32
  }
  func.func @transform_8(%arg0: i32) -> (i32, i32) {
    %c0_i32 = arith.constant 0 : i32
    %c0_i32_0 = arith.constant 0 : i32
    %c0_i32_1 = arith.constant 0 : i32
    return %c0_i32, %c0_i32_0 : i32, i32
  }
  func.func @transform_9(%arg0: i32) -> (i32, i32) {
    %c0_i32 = arith.constant 0 : i32
    %c0_i32_0 = arith.constant 0 : i32
    %c0_i32_1 = arith.constant 0 : i32
    return %c0_i32, %c0_i32_0 : i32, i32
  }
  func.func @transform_10(%arg0: i32) -> (i32, i32) {
    %c0_i32 = arith.constant 0 : i32
    %c0_i32_0 = arith.constant 0 : i32
    %c0_i32_1 = arith.constant 0 : i32
    return %c0_i32, %c0_i32_0 : i32, i32
  }
  func.func @transform_11(%arg0: i32) -> (i32, i32) {
    %c0_i32 = arith.constant 0 : i32
    %c0_i32_0 = arith.constant 0 : i32
    %c0_i32_1 = arith.constant 0 : i32
    return %c0_i32, %c0_i32_0 : i32, i32
  }
  func.func @transform_12(%arg0: i32) -> (i32, i32) {
    %c0_i32 = arith.constant 0 : i32
    %c0_i32_0 = arith.constant 0 : i32
    %c0_i32_1 = arith.constant 0 : i32
    return %c0_i32, %c0_i32_0 : i32, i32
  }
  func.func @transform_13(%arg0: i32) -> (i32, i32) {
    %c0_i32 = arith.constant 0 : i32
    %c0_i32_0 = arith.constant 0 : i32
    %c0_i32_1 = arith.constant 0 : i32
    return %c0_i32, %c0_i32_0 : i32, i32
  }
  func.func @transform_14(%arg0: i32) -> (i32, i32) {
    %c0_i32 = arith.constant 0 : i32
    %c0_i32_0 = arith.constant 0 : i32
    %c0_i32_1 = arith.constant 0 : i32
    return %c0_i32, %c0_i32_0 : i32, i32
  }
  func.func @transform_15(%arg0: i32) -> (i32, i32) {
    %c0_i32 = arith.constant 0 : i32
    %c0_i32_0 = arith.constant 0 : i32
    %c0_i32_1 = arith.constant 0 : i32
    return %c0_i32, %c0_i32_0 : i32, i32
  }
  func.func @transform_16(%arg0: i32) -> (i32, i32) {
    %c0_i32 = arith.constant 0 : i32
    %c0_i32_0 = arith.constant 0 : i32
    %c0_i32_1 = arith.constant 0 : i32
    return %c0_i32, %c0_i32_0 : i32, i32
  }
  func.func @transform_17(%arg0: i32) -> (i32, i32, i32) {
    %c0_i32 = arith.constant 0 : i32
    %c0_i32_0 = arith.constant 0 : i32
    %c0_i32_1 = arith.constant 0 : i32
    %c0_i32_2 = arith.constant 0 : i32
    return %c0_i32, %c0_i32_0, %c0_i32_1 : i32, i32, i32
  }
  func.func @transform_18(%arg0: i32) -> (i32, i32, i32) {
    %c0_i32 = arith.constant 0 : i32
    %c0_i32_0 = arith.constant 0 : i32
    %c0_i32_1 = arith.constant 0 : i32
    %c0_i32_2 = arith.constant 0 : i32
    return %c0_i32, %c0_i32_0, %c0_i32_1 : i32, i32, i32
  }
  func.func @transform_19(%arg0: i32) -> (i32, i32) {
    %c0_i32 = arith.constant 0 : i32
    %c0_i32_0 = arith.constant 0 : i32
    %c0_i32_1 = arith.constant 0 : i32
    return %c0_i32, %c0_i32_0 : i32, i32
  }
  func.func @transform_20(%arg0: i32) -> (i32, i32) {
    %c0_i32 = arith.constant 0 : i32
    %c0_i32_0 = arith.constant 0 : i32
    %c0_i32_1 = arith.constant 0 : i32
    return %c0_i32, %c0_i32_0 : i32, i32
  }
  func.func @transform_21(%arg0: i32) -> (i32, i32) {
    %c0_i32 = arith.constant 0 : i32
    %c0_i32_0 = arith.constant 0 : i32
    %c0_i32_1 = arith.constant 0 : i32
    return %c0_i32, %c0_i32_0 : i32, i32
  }
  func.func @transform_22(%arg0: i32) -> (i32, i32) {
    %c0_i32 = arith.constant 0 : i32
    %c0_i32_0 = arith.constant 0 : i32
    %c0_i32_1 = arith.constant 0 : i32
    return %c0_i32, %c0_i32_0 : i32, i32
  }
  func.func @transform_23(%arg0: i32) -> (i32, i32) {
    %c0_i32 = arith.constant 0 : i32
    %c0_i32_0 = arith.constant 0 : i32
    %c0_i32_1 = arith.constant 0 : i32
    return %c0_i32, %c0_i32_0 : i32, i32
  }
  func.func @transform_24(%arg0: i32) -> (i32, i32) {
    %c0_i32 = arith.constant 0 : i32
    %c0_i32_0 = arith.constant 0 : i32
    %c0_i32_1 = arith.constant 0 : i32
    return %c0_i32, %c0_i32_0 : i32, i32
  }
  func.func @transform_25(%arg0: i32) -> (i32, i32) {
    %c0_i32 = arith.constant 0 : i32
    %c0_i32_0 = arith.constant 0 : i32
    %c0_i32_1 = arith.constant 0 : i32
    return %c0_i32, %c0_i32_0 : i32, i32
  }
  func.func @transform_26(%arg0: i32) -> (i32, i32) {
    %c0_i32 = arith.constant 0 : i32
    %c0_i32_0 = arith.constant 0 : i32
    %c0_i32_1 = arith.constant 0 : i32
    return %c0_i32, %c0_i32_0 : i32, i32
  }
  func.func @transform_27(%arg0: i32) -> (i32, i32) {
    %c0_i32 = arith.constant 0 : i32
    %c0_i32_0 = arith.constant 0 : i32
    %c0_i32_1 = arith.constant 0 : i32
    return %c0_i32, %c0_i32_0 : i32, i32
  }
  func.func @transform_28(%arg0: i32) -> (i32, i32) {
    %c0_i32 = arith.constant 0 : i32
    %c0_i32_0 = arith.constant 0 : i32
    %c0_i32_1 = arith.constant 0 : i32
    return %c0_i32, %c0_i32_0 : i32, i32
  }
  func.func @transform_29(%arg0: i32) -> (i32, i32) {
    %c0_i32 = arith.constant 0 : i32
    %c0_i32_0 = arith.constant 0 : i32
    %c0_i32_1 = arith.constant 0 : i32
    return %c0_i32, %c0_i32_0 : i32, i32
  }
  func.func @transform_30(%arg0: i32) -> (i32, i32) {
    %c0_i32 = arith.constant 0 : i32
    %c0_i32_0 = arith.constant 0 : i32
    %c0_i32_1 = arith.constant 0 : i32
    return %c0_i32, %c0_i32_0 : i32, i32
  }
  func.func @transform_31(%arg0: i32) -> (i32, i32) {
    %c0_i32 = arith.constant 0 : i32
    %c0_i32_0 = arith.constant 0 : i32
    %c0_i32_1 = arith.constant 0 : i32
    return %c0_i32, %c0_i32_0 : i32, i32
  }
  func.func @transform_32(%arg0: i32) -> (i32, i32) {
    %c0_i32 = arith.constant 0 : i32
    %c0_i32_0 = arith.constant 0 : i32
    %c0_i32_1 = arith.constant 0 : i32
    return %c0_i32, %c0_i32_0 : i32, i32
  }
  func.func @transform_33(%arg0: i32) -> (i32, i32) {
    %c0_i32 = arith.constant 0 : i32
    %c0_i32_0 = arith.constant 0 : i32
    %c0_i32_1 = arith.constant 0 : i32
    return %c0_i32, %c0_i32_0 : i32, i32
  }
  func.func @transform_34(%arg0: i32) -> (i32, i32) {
    %c0_i32 = arith.constant 0 : i32
    %c0_i32_0 = arith.constant 0 : i32
    %c0_i32_1 = arith.constant 0 : i32
    return %c0_i32, %c0_i32_0 : i32, i32
  }
  func.func @transform_35(%arg0: i32) -> (i32, i32, i32, i32) {
    %c0_i32 = arith.constant 0 : i32
    %c0_i32_0 = arith.constant 0 : i32
    %c0_i32_1 = arith.constant 0 : i32
    %c0_i32_2 = arith.constant 0 : i32
    return %arg0, %c0_i32, %c0_i32_0, %c0_i32_1 : i32, i32, i32, i32
  }
}

</mosaic_0001>

<llo_original>
// kernel: h_gcn_wh_forward.2
$region0: #{h_gcn_wh_forward.2}
  #allocation0 [shape = 'u32[]', space=smem, size = 0x4, offset = 0x4, fixed_abs, tag = 'smem constant byte address 0x4 - core index']
  #allocation1 [shape = 'u32[72,128]{1,0:T(1,128)}', space=vmem, size = 0x9000, scoped, tag = 'internal scratch']
  %s0 = inlined_call_operand.hbm [shape: f32[8,10], index: 0, kind: input, shape index: {}]
  %s1 = inlined_call_operand.vmem [shape: f32[10,8], index: 1, kind: input, shape index: {}]
  %s2 = inlined_call_operand.vmem [shape: f32[8,8], index: 2, kind: output, shape index: {}]
  %s3 = sld [smem:[#allocation0]]
  $region22: #{h_gcn_wh_forward.2} parent=0
    _
  %s5 = ssub.s32 1, %s3
  %s6 = scalar_select 0, %s5, %s3
  $region1: #{h_gcn_wh_forward.2} parent=0
    #allocation2 [shape = 'u8[4096]{0}', space=vmem, size = 0x1000, scoped, tag = 'input window, operand 0, single buffered']
    #allocation3 [shape = 's32[1]{0}', space=sflag, size = 0x4, scoped, tag = 'scoped memory for h_gcn_wh_forward.2']
    %7 = vsyncpa [#allocation3], 0
    // Predicated region
    $region2: #{h_gcn_wh_forward.2} parent=1 // pred_check
      _
    $region3: #{h_gcn_wh_forward.2} parent=1 // pred_check_branch
      %9 = sbr.rel (0) target = $region5
    $region4: #{h_gcn_wh_forward.2} parent=1 // pred_region
      %11 = vsyncadd [#allocation3], 0
      %s13 = sshll.u32 %s0, 4
      %s14 = int_to_ptr.hbm [resolvable:$true] %s13
      %s15 = sshll.u32 [#allocation2], 4
      %s16 = int_to_ptr.vmem [resolvable:$true] %s15
      %18 = dma.hbm_to_vmem [thread:$0]  %s14, 128, %s16, [#allocation3]
    $region5: #{h_gcn_wh_forward.2} parent=1 // pred_fallthru
      _
    // Predicated region
    $region6: #{h_gcn_wh_forward.2} parent=1 // pred_check
      _
    $region7: #{h_gcn_wh_forward.2} parent=1 // pred_check_branch
      %20 = sbr.rel (0) target = $region9
    $region8: #{h_gcn_wh_forward.2} parent=1 // pred_region
      _
    $region9: #{h_gcn_wh_forward.2} parent=1 // pred_fallthru
      _
    // Predicated region
    $region10: #{h_gcn_wh_forward.2} parent=1 // pred_check
      _
    $region11: #{h_gcn_wh_forward.2} parent=1 // pred_check_branch
      %22 = sbr.rel (0) target = $region13
    $region12: #{h_gcn_wh_forward.2} parent=1 // pred_region
      %24 = dma.done [#allocation3], 128
    $region13: #{h_gcn_wh_forward.2} parent=1 // pred_fallthru
      _
    %v25 = vld [vmem:[#allocation2] sm:$0xff]
    %v26 = vld [vmem:[%s1] sm:$0xff]
    %v27 = vld [vmem:[%s1 + $0x8] sm:$0x3]
    %vm28 = vcmask 80896
    %v30 = vsel %vm28, %v25, 0
    %vm32 = vcmask 1041408
    %v34 = vsel %vm32, %v27, 0
    %36 = vmatpush.msra.mxu0 0.0
    %37 = vmatpush.msra.mxu0 0.0
    %38 = vmatpush.msra.mxu0 0.0
    %39 = vmatpush.msra.mxu0 0.0
    %40 = vmatpush.msra.mxu0 0.0
    %41 = vmatpush.msra.mxu0 0.0
    %42 = vmatpush.msra.mxu0 0.0
    %43 = vmatpush.msra.mxu0 0.0
    %44 = vmatpush.msra.mxu0 0.0
    %45 = vmatpush.msra.mxu0 0.0
    %46 = vmatpush.msra.mxu0 0.0
    %47 = vmatpush.msra.mxu0 0.0
    %48 = vmatpush.msra.mxu0 0.0
    %49 = vmatpush.msra.mxu0 0.0
    %50 = vmatpush.msra.mxu0 %v34
    %51 = vmatpush.msra.mxu0 %v26
    %52 = vmatmul.f32.gmra.mxu0 %v30
    %v53 = vpop.f32.mrf.mxu0
    %v54 = vadd.f32 0.0, %v53
    %55 = vdwg.mxu0
    %v56 = vmax.f32 %v54, 0.0
    %vm57 = vcmask 64512
    %v58 = vsel %vm57, %v56, 0.0
    %59 = vadd.xlane.f32.xlu0 %v58
    %v60 = vpop.xlane.xlu0 %59
    %v61 = vrcp.pop %v60
    %v62 = vmul.f32 %v56, %v61
    %63 = vst.msk [vmem:[%s2] sm:$0xff] %vm57, %v62
    // Predicated region
    $region14: #{h_gcn_wh_forward.2} parent=1 // pred_check
      _
    $region15: #{h_gcn_wh_forward.2} parent=1 // pred_check_branch
      %65 = sbr.rel (0) target = $region17
    $region16: #{h_gcn_wh_forward.2} parent=1 // pred_region
      _
    $region17: #{h_gcn_wh_forward.2} parent=1 // pred_fallthru
      _
    // Predicated region
    $region18: #{h_gcn_wh_forward.2} parent=1 // pred_check
      _
    $region19: #{h_gcn_wh_forward.2} parent=1 // pred_check_branch
      %67 = sbr.rel (0) target = $region21
    $region20: #{h_gcn_wh_forward.2} parent=1 // pred_region
      _
    $region21: #{h_gcn_wh_forward.2} parent=1 // pred_fallthru
      _
    %68 = vsyncpa [#allocation3], 1

// kernel: h_gcn_wh_forward.3
$region0: #{h_gcn_wh_forward.3}
  #allocation0 [shape = 'u32[]', space=smem, size = 0x4, offset = 0x4, fixed_abs, tag = 'smem constant byte address 0x4 - core index']
  #allocation1 [shape = 'u32[72,128]{1,0:T(1,128)}', space=vmem, size = 0x9000, scoped, tag = 'internal scratch']
  %s0 = inlined_call_operand.smem [shape: u32[36], index: -1, kind: input, shape index: {}]
  %s1 = sld [smem:[%s0]]
  %s2 = scalar_lea.smem %s0, 1
  %s3 = sld [smem:[%s2]]
  %s4 = scalar_lea.smem %s0, 2
  %s5 = sld [smem:[%s4]]
  %s6 = scalar_lea.smem %s0, 3
  %s7 = sld [smem:[%s6]]
  %s8 = scalar_lea.smem %s0, 4
  %s9 = sld [smem:[%s8]]
  %s10 = scalar_lea.smem %s0, 5
  %s11 = sld [smem:[%s10]]
  %s12 = scalar_lea.smem %s0, 6
  %s13 = sld [smem:[%s12]]
  %s14 = scalar_lea.smem %s0, 7
  %s15 = sld [smem:[%s14]]
  %s16 = scalar_lea.smem %s0, 8
  %s17 = sld [smem:[%s16]]
  %s18 = scalar_lea.smem %s0, 9
  %s19 = sld [smem:[%s18]]
  %s20 = scalar_lea.smem %s0, 10
  %s21 = sld [smem:[%s20]]
  %s22 = scalar_lea.smem %s0, 11
  %s23 = sld [smem:[%s22]]
  %s24 = scalar_lea.smem %s0, 12
  %s25 = sld [smem:[%s24]]
  %s26 = scalar_lea.smem %s0, 13
  %s27 = sld [smem:[%s26]]
  %s28 = scalar_lea.smem %s0, 14
  %s29 = sld [smem:[%s28]]
  %s30 = scalar_lea.smem %s0, 15
  %s31 = sld [smem:[%s30]]
  %s32 = scalar_lea.smem %s0, 16
  %s33 = sld [smem:[%s32]]
  %s34 = scalar_lea.smem %s0, 17
  %s35 = sld [smem:[%s34]]
  %s36 = scalar_lea.smem %s0, 18
  %s37 = sld [smem:[%s36]]
  %s38 = scalar_lea.smem %s0, 19
  %s39 = sld [smem:[%s38]]
  %s40 = scalar_lea.smem %s0, 20
  %s41 = sld [smem:[%s40]]
  %s42 = scalar_lea.smem %s0, 21
  %s43 = sld [smem:[%s42]]
  %s44 = scalar_lea.smem %s0, 22
  %s45 = sld [smem:[%s44]]
  %s46 = scalar_lea.smem %s0, 23
  %s47 = sld [smem:[%s46]]
  %s48 = scalar_lea.smem %s0, 24
  %s49 = sld [smem:[%s48]]
  %s50 = scalar_lea.smem %s0, 25
  %s51 = sld [smem:[%s50]]
  %s52 = scalar_lea.smem %s0, 26
  %s53 = sld [smem:[%s52]]
  %s54 = scalar_lea.smem %s0, 27
  %s55 = sld [smem:[%s54]]
  %s56 = scalar_lea.smem %s0, 28
  %s57 = sld [smem:[%s56]]
  %s58 = scalar_lea.smem %s0, 29
  %s59 = sld [smem:[%s58]]
  %s60 = scalar_lea.smem %s0, 30
  %s61 = sld [smem:[%s60]]
  %s62 = scalar_lea.smem %s0, 31
  %s63 = sld [smem:[%s62]]
  %s64 = scalar_lea.smem %s0, 32
  %s65 = sld [smem:[%s64]]
  %s66 = scalar_lea.smem %s0, 33
  %s67 = sld [smem:[%s66]]
  %s68 = scalar_lea.smem %s0, 34
  %s69 = sld [smem:[%s68]]
  %s70 = scalar_lea.smem %s0, 35
  %s71 = sld [smem:[%s70]]
  %s72 = sld [smem:[#allocation0]]
  $region173: #{h_gcn_wh_forward.3} parent=0
    _
  %s74 = ssub.s32 1, %s72
  %s75 = scalar_select 0, %s74, %s72
  loop: start=0, step=1, limit=4
  $region2: #{h_gcn_wh_forward.3} parent=0 // loop_pre_header
    _
  $region3: #{h_gcn_wh_forward.3} parent=0 // loop_header
    %s77 = sphi 0, %s81
    %p78 = scmp.ge.s32.totalorder %s77, 4
    %s87 = sphi 0, %s89
    %s90 = sphi 0, %s87
    %s91 = sphi 0, %s90
    %s107 = sphi 0, %s91
    %s111 = sphi 0, %s111
    %s113 = sphi 0, %s111
    %s114 = sphi 0, %s113
    %s128 = sphi 0, %s114
    %s132 = sphi 0, %s132
    %s134 = sphi 0, %s132
    %s135 = sphi 0, %s134
    %s149 = sphi 0, %s135
    %s153 = sphi 0, %s153
    %s155 = sphi 0, %s153
    %s156 = sphi 0, %s155
    %s170 = sphi 0, %s156
    %s174 = sphi 0, %s174
    %s176 = sphi 0, %s174
    %s177 = sphi 0, %s176
    %s191 = sphi 0, %s177
    %s195 = sphi 0, %s195
    %s197 = sphi 0, %s195
    %s198 = sphi 0, %s197
    %s212 = sphi 0, %s198
    %s216 = sphi 0, %s216
    %s218 = sphi 0, %s216
    %s219 = sphi 0, %s218
    %s233 = sphi 0, %s219
    %s237 = sphi 0, %s237
    %s239 = sphi 0, %s237
    %s240 = sphi 0, %s239
    %s254 = sphi 0, %s240
    %s258 = sphi 0, %s258
    %s260 = sphi 0, %s258
    %s261 = sphi 0, %s260
    %s275 = sphi 0, %s261
    %s279 = sphi 0, %s279
    %s281 = sphi 0, %s279
    %s282 = sphi 0, %s281
    %s296 = sphi 0, %s282
    %s300 = sphi 0, %s300
    %s302 = sphi 0, %s300
    %s303 = sphi 0, %s302
    %s317 = sphi 0, %s303
    %s321 = sphi 0, %s321
    %s323 = sphi 0, %s321
    %s324 = sphi 0, %s323
    %s338 = sphi 0, %s324
    %s342 = sphi 0, %s342
    %s344 = sphi 0, %s342
    %s345 = sphi 0, %s344
    %s359 = sphi 0, %s345
    %s363 = sphi 0, %s363
    %s365 = sphi 0, %s363
    %s366 = sphi 0, %s365
    %s380 = sphi 0, %s366
    %s384 = sphi 0, %s384
    %s386 = sphi 0, %s384
    %s387 = sphi 0, %s386
    %s401 = sphi 0, %s387
    %s405 = sphi 0, %s405
    %s407 = sphi 0, %s405
    %s408 = sphi 0, %s407
    %s422 = sphi 0, %s408
    %s426 = sphi 0, %s426
    %s428 = sphi 0, %s426
    %s429 = sphi 0, %s428
    %s443 = sphi 0, %s429
    %s447 = sphi 0, %s447
    %s449 = sphi 0, %s447
    %s450 = sphi 0, %s449
    %s464 = sphi 0, %s450
    %s468 = sphi 0, %s468
    %s470 = sphi 0, %s468
    %s471 = sphi 0, %s470
    %s485 = sphi 0, %s471
    %s489 = sphi 0, %s489
    %s491 = sphi 0, %s489
    %s492 = sphi 0, %s491
    %s506 = sphi 0, %s492
    %s510 = sphi 0, %s510
    %s512 = sphi 0, %s510
    %s513 = sphi 0, %s512
    %s527 = sphi 0, %s513
    %s531 = sphi 0, %s531
    %s533 = sphi 0, %s531
    %s534 = sphi 0, %s533
    %s548 = sphi 0, %s534
    %s552 = sphi 0, %s552
    %s554 = sphi 0, %s552
    %s555 = sphi 0, %s554
    %s569 = sphi 0, %s555
    %s573 = sphi 0, %s573
    %s575 = sphi 0, %s573
    %s576 = sphi 0, %s575
    %s590 = sphi 0, %s576
    %s594 = sphi 0, %s594
    %s596 = sphi 0, %s594
    %s597 = sphi 0, %s596
    %s611 = sphi 0, %s597
    %s615 = sphi 0, %s615
    %s617 = sphi 0, %s615
    %s618 = sphi 0, %s617
    %s632 = sphi 0, %s618
    %s636 = sphi 0, %s636
    %s638 = sphi 0, %s636
    %s639 = sphi 0, %s638
    %s653 = sphi 0, %s639
    %s657 = sphi 0, %s657
    %s659 = sphi 0, %s657
    %s660 = sphi 0, %s659
    %s674 = sphi 0, %s660
    %s678 = sphi 0, %s678
    %s680 = sphi 0, %s678
    %s681 = sphi 0, %s680
    %s695 = sphi 0, %s681
    %s699 = sphi 0, %s699
    %s701 = sphi 0, %s699
    %s702 = sphi 0, %s701
    %s716 = sphi 0, %s702
    %s720 = sphi 0, %s720
    %s722 = sphi 0, %s720
    %s723 = sphi 0, %s722
    %s737 = sphi 0, %s723
    %s741 = sphi 0, %s741
    %s743 = sphi 0, %s741
    %s744 = sphi 0, %s743
    %s758 = sphi 0, %s744
    %s762 = sphi 0, %s762
    %s764 = sphi 0, %s762
    %s765 = sphi 0, %s764
    %s779 = sphi 0, %s765
    %s783 = sphi 0, %s783
    %s785 = sphi 0, %s783
    %s786 = sphi 0, %s785
    %s800 = sphi 0, %s786
    %s804 = sphi 0, %s804
    %s806 = sphi 0, %s804
    %s807 = sphi 0, %s806
    %s821 = sphi 0, %s807
    %s827 = sphi 0, %s829
    %s830 = sphi 0, %s827
    %s831 = sphi 0, %s830
    %s847 = sphi 0, %s831
  $region4: #{h_gcn_wh_forward.3} parent=0 // loop_header_branch
    %80 = sbr.rel (%p78) target = $region8
  $region5: #{h_gcn_wh_forward.3} parent=0 // loop_body
    %s82 = ssub.s32 %s77, 1
    %s83 = ssub.s32 %s77, 2
    %s84 = sadd.s32 %s77, 1
    %s85 = ssub.s32 %s77, %s84
    %p86 = scmp.eq.s32.totalorder %s85, 0
    %s88 = sadd.s32 %s87, 1
    %s89 = scalar_select %p86, %s87, %s88
    %p92 = pneg %p86
    %p93 = scmp.eq.s32.totalorder %s77, 1
    %p94 = por %p92, %p93
    %p95 = scmp.ne.s32.totalorder %s87, %s90
    %p96 = scmp.eq.s32.totalorder %s77, 0
    %p97 = por %p95, %p96
    %p98 = scmp.ne.s32.totalorder %s87, %s90
    %p99 = scmp.eq.s32.totalorder %s82, 1
    %p100 = por %p98, %p99
    %p101 = scmp.ne.s32.totalorder %s90, %s91
    %p102 = scmp.eq.s32.totalorder %s82, 0
    %p103 = por %p101, %p102
    %p104 = scmp.ne.s32.totalorder %s90, %s91
    %p105 = scmp.eq.s32.totalorder %s83, 1
    %p106 = por %p104, %p105
    %p108 = scmp.ne.s32.totalorder %s91, %s107
    %p109 = scmp.eq.s32.totalorder %s83, 0
    %p110 = por %p108, %p109
    %s112 = sadd.s32 %s111, 1
    %p115 = scmp.eq.s32.totalorder %s77, 1
    %p116 = scmp.ne.s32.totalorder %s111, %s113
    %p117 = scmp.eq.s32.totalorder %s77, 0
    %p118 = por %p116, %p117
    %p119 = scmp.ne.s32.totalorder %s111, %s113
    %p120 = scmp.eq.s32.totalorder %s82, 1
    %p121 = por %p119, %p120
    %p122 = scmp.ne.s32.totalorder %s113, %s114
    %p123 = scmp.eq.s32.totalorder %s82, 0
    %p124 = por %p122, %p123
    %p125 = scmp.ne.s32.totalorder %s113, %s114
    %p126 = scmp.eq.s32.totalorder %s83, 1
    %p127 = por %p125, %p126
    %p129 = scmp.ne.s32.totalorder %s114, %s128
    %p130 = scmp.eq.s32.totalorder %s83, 0
    %p131 = por %p129, %p130
    %s133 = sadd.s32 %s132, 1
    %p136 = scmp.eq.s32.totalorder %s77, 1
    %p137 = scmp.ne.s32.totalorder %s132, %s134
    %p138 = scmp.eq.s32.totalorder %s77, 0
    %p139 = por %p137, %p138
    %p140 = scmp.ne.s32.totalorder %s132, %s134
    %p141 = scmp.eq.s32.totalorder %s82, 1
    %p142 = por %p140, %p141
    %p143 = scmp.ne.s32.totalorder %s134, %s135
    %p144 = scmp.eq.s32.totalorder %s82, 0
    %p145 = por %p143, %p144
    %p146 = scmp.ne.s32.totalorder %s134, %s135
    %p147 = scmp.eq.s32.totalorder %s83, 1
    %p148 = por %p146, %p147
    %p150 = scmp.ne.s32.totalorder %s135, %s149
    %p151 = scmp.eq.s32.totalorder %s83, 0
    %p152 = por %p150, %p151
    %s154 = sadd.s32 %s153, 1
    %p157 = scmp.eq.s32.totalorder %s77, 1
    %p158 = scmp.ne.s32.totalorder %s153, %s155
    %p159 = scmp.eq.s32.totalorder %s77, 0
    %p160 = por %p158, %p159
    %p161 = scmp.ne.s32.totalorder %s153, %s155
    %p162 = scmp.eq.s32.totalorder %s82, 1
    %p163 = por %p161, %p162
    %p164 = scmp.ne.s32.totalorder %s155, %s156
    %p165 = scmp.eq.s32.totalorder %s82, 0
    %p166 = por %p164, %p165
    %p167 = scmp.ne.s32.totalorder %s155, %s156
    %p168 = scmp.eq.s32.totalorder %s83, 1
    %p169 = por %p167, %p168
    %p171 = scmp.ne.s32.totalorder %s156, %s170
    %p172 = scmp.eq.s32.totalorder %s83, 0
    %p173 = por %p171, %p172
    %s175 = sadd.s32 %s174, 1
    %p178 = scmp.eq.s32.totalorder %s77, 1
    %p179 = scmp.ne.s32.totalorder %s174, %s176
    %p180 = scmp.eq.s32.totalorder %s77, 0
    %p181 = por %p179, %p180
    %p182 = scmp.ne.s32.totalorder %s174, %s176
    %p183 = scmp.eq.s32.totalorder %s82, 1
    %p184 = por %p182, %p183
    %p185 = scmp.ne.s32.totalorder %s176, %s177
    %p186 = scmp.eq.s32.totalorder %s82, 0
    %p187 = por %p185, %p186
    %p188 = scmp.ne.s32.totalorder %s176, %s177
    %p189 = scmp.eq.s32.totalorder %s83, 1
    %p190 = por %p188, %p189
    %p192 = scmp.ne.s32.totalorder %s177, %s191
    %p193 = scmp.eq.s32.totalorder %s83, 0
    %p194 = por %p192, %p193
    %s196 = sadd.s32 %s195, 1
    %p199 = scmp.eq.s32.totalorder %s77, 1
    %p200 = scmp.ne.s32.totalorder %s195, %s197
    %p201 = scmp.eq.s32.totalorder %s77, 0
    %p202 = por %p200, %p201
    %p203 = scmp.ne.s32.totalorder %s195, %s197
    %p204 = scmp.eq.s32.totalorder %s82, 1
    %p205 = por %p203, %p204
    %p206 = scmp.ne.s32.totalorder %s197, %s198
    %p207 = scmp.eq.s32.totalorder %s82, 0
    %p208 = por %p206, %p207
    %p209 = scmp.ne.s32.totalorder %s197, %s198
    %p210 = scmp.eq.s32.totalorder %s83, 1
    %p211 = por %p209, %p210
    %p213 = scmp.ne.s32.totalorder %s198, %s212
    %p214 = scmp.eq.s32.totalorder %s83, 0
    %p215 = por %p213, %p214
    %s217 = sadd.s32 %s216, 1
    %p220 = scmp.eq.s32.totalorder %s77, 1
    %p221 = scmp.ne.s32.totalorder %s216, %s218
    %p222 = scmp.eq.s32.totalorder %s77, 0
    %p223 = por %p221, %p222
    %p224 = scmp.ne.s32.totalorder %s216, %s218
    %p225 = scmp.eq.s32.totalorder %s82, 1
    %p226 = por %p224, %p225
    %p227 = scmp.ne.s32.totalorder %s218, %s219
    %p228 = scmp.eq.s32.totalorder %s82, 0
    %p229 = por %p227, %p228
    %p230 = scmp.ne.s32.totalorder %s218, %s219
    %p231 = scmp.eq.s32.totalorder %s83, 1
    %p232 = por %p230, %p231
    %p234 = scmp.ne.s32.totalorder %s219, %s233
    %p235 = scmp.eq.s32.totalorder %s83, 0
    %p236 = por %p234, %p235
    %s238 = sadd.s32 %s237, 1
    %p241 = scmp.eq.s32.totalorder %s77, 1
    %p242 = scmp.ne.s32.totalorder %s237, %s239
    %p243 = scmp.eq.s32.totalorder %s77, 0
    %p244 = por %p242, %p243
    %p245 = scmp.ne.s32.totalorder %s237, %s239
    %p246 = scmp.eq.s32.totalorder %s82, 1
    %p247 = por %p245, %p246
    %p248 = scmp.ne.s32.totalorder %s239, %s240
    %p249 = scmp.eq.s32.totalorder %s82, 0
    %p250 = por %p248, %p249
    %p251 = scmp.ne.s32.totalorder %s239, %s240
    %p252 = scmp.eq.s32.totalorder %s83, 1
    %p253 = por %p251, %p252
    %p255 = scmp.ne.s32.totalorder %s240, %s254
    %p256 = scmp.eq.s32.totalorder %s83, 0
    %p257 = por %p255, %p256
    %s259 = sadd.s32 %s258, 1
    %p262 = scmp.eq.s32.totalorder %s77, 1
    %p263 = scmp.ne.s32.totalorder %s258, %s260
    %p264 = scmp.eq.s32.totalorder %s77, 0
    %p265 = por %p263, %p264
    %p266 = scmp.ne.s32.totalorder %s258, %s260
    %p267 = scmp.eq.s32.totalorder %s82, 1
    %p268 = por %p266, %p267
    %p269 = scmp.ne.s32.totalorder %s260, %s261
    %p270 = scmp.eq.s32.totalorder %s82, 0
    %p271 = por %p269, %p270
    %p272 = scmp.ne.s32.totalorder %s260, %s261
    %p273 = scmp.eq.s32.totalorder %s83, 1
    %p274 = por %p272, %p273
    %p276 = scmp.ne.s32.totalorder %s261, %s275
    %p277 = scmp.eq.s32.totalorder %s83, 0
    %p278 = por %p276, %p277
    %s280 = sadd.s32 %s279, 1
    %p283 = scmp.eq.s32.totalorder %s77, 1
    %p284 = scmp.ne.s32.totalorder %s279, %s281
    %p285 = scmp.eq.s32.totalorder %s77, 0
    %p286 = por %p284, %p285
    %p287 = scmp.ne.s32.totalorder %s279, %s281
    %p288 = scmp.eq.s32.totalorder %s82, 1
    %p289 = por %p287, %p288
    %p290 = scmp.ne.s32.totalorder %s281, %s282
    %p291 = scmp.eq.s32.totalorder %s82, 0
    %p292 = por %p290, %p291
    %p293 = scmp.ne.s32.totalorder %s281, %s282
    %p294 = scmp.eq.s32.totalorder %s83, 1
    %p295 = por %p293, %p294
    %p297 = scmp.ne.s32.totalorder %s282, %s296
    %p298 = scmp.eq.s32.totalorder %s83, 0
    %p299 = por %p297, %p298
    %s301 = sadd.s32 %s300, 1
    %p304 = scmp.eq.s32.totalorder %s77, 1
    %p305 = scmp.ne.s32.totalorder %s300, %s302
    %p306 = scmp.eq.s32.totalorder %s77, 0
    %p307 = por %p305, %p306
    %p308 = scmp.ne.s32.totalorder %s300, %s302
    %p309 = scmp.eq.s32.totalorder %s82, 1
    %p310 = por %p308, %p309
    %p311 = scmp.ne.s32.totalorder %s302, %s303
    %p312 = scmp.eq.s32.totalorder %s82, 0
    %p313 = por %p311, %p312
    %p314 = scmp.ne.s32.totalorder %s302, %s303
    %p315 = scmp.eq.s32.totalorder %s83, 1
    %p316 = por %p314, %p315
    %p318 = scmp.ne.s32.totalorder %s303, %s317
    %p319 = scmp.eq.s32.totalorder %s83, 0
    %p320 = por %p318, %p319
    %s322 = sadd.s32 %s321, 1
    %p325 = scmp.eq.s32.totalorder %s77, 1
    %p326 = scmp.ne.s32.totalorder %s321, %s323
    %p327 = scmp.eq.s32.totalorder %s77, 0
    %p328 = por %p326, %p327
    %p329 = scmp.ne.s32.totalorder %s321, %s323
    %p330 = scmp.eq.s32.totalorder %s82, 1
    %p331 = por %p329, %p330
    %p332 = scmp.ne.s32.totalorder %s323, %s324
    %p333 = scmp.eq.s32.totalorder %s82, 0
    %p334 = por %p332, %p333
    %p335 = scmp.ne.s32.totalorder %s323, %s324
    %p336 = scmp.eq.s32.totalorder %s83, 1
    %p337 = por %p335, %p336
    %p339 = scmp.ne.s32.totalorder %s324, %s338
    %p340 = scmp.eq.s32.totalorder %s83, 0
    %p341 = por %p339, %p340
    %s343 = sadd.s32 %s342, 1
    %p346 = scmp.eq.s32.totalorder %s77, 1
    %p347 = scmp.ne.s32.totalorder %s342, %s344
    %p348 = scmp.eq.s32.totalorder %s77, 0
    %p349 = por %p347, %p348
    %p350 = scmp.ne.s32.totalorder %s342, %s344
    %p351 = scmp.eq.s32.totalorder %s82, 1
    %p352 = por %p350, %p351
    %p353 = scmp.ne.s32.totalorder %s344, %s345
    %p354 = scmp.eq.s32.totalorder %s82, 0
    %p355 = por %p353, %p354
    %p356 = scmp.ne.s32.totalorder %s344, %s345
    %p357 = scmp.eq.s32.totalorder %s83, 1
    %p358 = por %p356, %p357
    %p360 = scmp.ne.s32.totalorder %s345, %s359
    %p361 = scmp.eq.s32.totalorder %s83, 0
    %p362 = por %p360, %p361
    %s364 = sadd.s32 %s363, 1
    %p367 = scmp.eq.s32.totalorder %s77, 1
    %p368 = scmp.ne.s32.totalorder %s363, %s365
    %p369 = scmp.eq.s32.totalorder %s77, 0
    %p370 = por %p368, %p369
    %p371 = scmp.ne.s32.totalorder %s363, %s365
    %p372 = scmp.eq.s32.totalorder %s82, 1
    %p373 = por %p371, %p372
    %p374 = scmp.ne.s32.totalorder %s365, %s366
    %p375 = scmp.eq.s32.totalorder %s82, 0
    %p376 = por %p374, %p375
    %p377 = scmp.ne.s32.totalorder %s365, %s366
    %p378 = scmp.eq.s32.totalorder %s83, 1
    %p379 = por %p377, %p378
    %p381 = scmp.ne.s32.totalorder %s366, %s380
    %p382 = scmp.eq.s32.totalorder %s83, 0
    %p383 = por %p381, %p382
    %s385 = sadd.s32 %s384, 1
    %p388 = scmp.eq.s32.totalorder %s77, 1
    %p389 = scmp.ne.s32.totalorder %s384, %s386
    %p390 = scmp.eq.s32.totalorder %s77, 0
    %p391 = por %p389, %p390
    %p392 = scmp.ne.s32.totalorder %s384, %s386
    %p393 = scmp.eq.s32.totalorder %s82, 1
    %p394 = por %p392, %p393
    %p395 = scmp.ne.s32.totalorder %s386, %s387
    %p396 = scmp.eq.s32.totalorder %s82, 0
    %p397 = por %p395, %p396
    %p398 = scmp.ne.s32.totalorder %s386, %s387
    %p399 = scmp.eq.s32.totalorder %s83, 1
    %p400 = por %p398, %p399
    %p402 = scmp.ne.s32.totalorder %s387, %s401
    %p403 = scmp.eq.s32.totalorder %s83, 0
    %p404 = por %p402, %p403
    %s406 = sadd.s32 %s405, 1
    %p409 = scmp.eq.s32.totalorder %s77, 1
    %p410 = scmp.ne.s32.totalorder %s405, %s407
    %p411 = scmp.eq.s32.totalorder %s77, 0
    %p412 = por %p410, %p411
    %p413 = scmp.ne.s32.totalorder %s405, %s407
    %p414 = scmp.eq.s32.totalorder %s82, 1
    %p415 = por %p413, %p414
    %p416 = scmp.ne.s32.totalorder %s407, %s408
    %p417 = scmp.eq.s32.totalorder %s82, 0
    %p418 = por %p416, %p417
    %p419 = scmp.ne.s32.totalorder %s407, %s408
    %p420 = scmp.eq.s32.totalorder %s83, 1
    %p421 = por %p419, %p420
    %p423 = scmp.ne.s32.totalorder %s408, %s422
    %p424 = scmp.eq.s32.totalorder %s83, 0
    %p425 = por %p423, %p424
    %s427 = sadd.s32 %s426, 1
    %p430 = scmp.eq.s32.totalorder %s77, 1
    %p431 = scmp.ne.s32.totalorder %s426, %s428
    %p432 = scmp.eq.s32.totalorder %s77, 0
    %p433 = por %p431, %p432
    %p434 = scmp.ne.s32.totalorder %s426, %s428
    %p435 = scmp.eq.s32.totalorder %s82, 1
    %p436 = por %p434, %p435
    %p437 = scmp.ne.s32.totalorder %s428, %s429
    %p438 = scmp.eq.s32.totalorder %s82, 0
    %p439 = por %p437, %p438
    %p440 = scmp.ne.s32.totalorder %s428, %s429
    %p441 = scmp.eq.s32.totalorder %s83, 1
    %p442 = por %p440, %p441
    %p444 = scmp.ne.s32.totalorder %s429, %s443
    %p445 = scmp.eq.s32.totalorder %s83, 0
    %p446 = por %p444, %p445
    %s448 = sadd.s32 %s447, 1
    %p451 = scmp.eq.s32.totalorder %s77, 1
    %p452 = scmp.ne.s32.totalorder %s447, %s449
    %p453 = scmp.eq.s32.totalorder %s77, 0
    %p454 = por %p452, %p453
    %p455 = scmp.ne.s32.totalorder %s447, %s449
    %p456 = scmp.eq.s32.totalorder %s82, 1
    %p457 = por %p455, %p456
    %p458 = scmp.ne.s32.totalorder %s449, %s450
    %p459 = scmp.eq.s32.totalorder %s82, 0
    %p460 = por %p458, %p459
    %p461 = scmp.ne.s32.totalorder %s449, %s450
    %p462 = scmp.eq.s32.totalorder %s83, 1
    %p463 = por %p461, %p462
    %p465 = scmp.ne.s32.totalorder %s450, %s464
    %p466 = scmp.eq.s32.totalorder %s83, 0
    %p467 = por %p465, %p466
    %s469 = sadd.s32 %s468, 1
    %p472 = scmp.eq.s32.totalorder %s77, 1
    %p473 = scmp.ne.s32.totalorder %s468, %s470
    %p474 = scmp.eq.s32.totalorder %s77, 0
    %p475 = por %p473, %p474
    %p476 = scmp.ne.s32.totalorder %s468, %s470
    %p477 = scmp.eq.s32.totalorder %s82, 1
    %p478 = por %p476, %p477
    %p479 = scmp.ne.s32.totalorder %s470, %s471
    %p480 = scmp.eq.s32.totalorder %s82, 0
    %p481 = por %p479, %p480
    %p482 = scmp.ne.s32.totalorder %s470, %s471
    %p483 = scmp.eq.s32.totalorder %s83, 1
    %p484 = por %p482, %p483
    %p486 = scmp.ne.s32.totalorder %s471, %s485
    %p487 = scmp.eq.s32.totalorder %s83, 0
    %p488 = por %p486, %p487
    %s490 = sadd.s32 %s489, 1
    %p493 = scmp.eq.s32.totalorder %s77, 1
    %p494 = scmp.ne.s32.totalorder %s489, %s491
    %p495 = scmp.eq.s32.totalorder %s77, 0
    %p496 = por %p494, %p495
    %p497 = scmp.ne.s32.totalorder %s489, %s491
    %p498 = scmp.eq.s32.totalorder %s82, 1
    %p499 = por %p497, %p498
    %p500 = scmp.ne.s32.totalorder %s491, %s492
    %p501 = scmp.eq.s32.totalorder %s82, 0
    %p502 = por %p500, %p501
    %p503 = scmp.ne.s32.totalorder %s491, %s492
    %p504 = scmp.eq.s32.totalorder %s83, 1
    %p505 = por %p503, %p504
    %p507 = scmp.ne.s32.totalorder %s492, %s506
    %p508 = scmp.eq.s32.totalorder %s83, 0
    %p509 = por %p507, %p508
    %s511 = sadd.s32 %s510, 1
    %p514 = scmp.eq.s32.totalorder %s77, 1
    %p515 = scmp.ne.s32.totalorder %s510, %s512
    %p516 = scmp.eq.s32.totalorder %s77, 0
    %p517 = por %p515, %p516
    %p518 = scmp.ne.s32.totalorder %s510, %s512
    %p519 = scmp.eq.s32.totalorder %s82, 1
    %p520 = por %p518, %p519
    %p521 = scmp.ne.s32.totalorder %s512, %s513
    %p522 = scmp.eq.s32.totalorder %s82, 0
    %p523 = por %p521, %p522
    %p524 = scmp.ne.s32.totalorder %s512, %s513
    %p525 = scmp.eq.s32.totalorder %s83, 1
    %p526 = por %p524, %p525
    %p528 = scmp.ne.s32.totalorder %s513, %s527
    %p529 = scmp.eq.s32.totalorder %s83, 0
    %p530 = por %p528, %p529
    %s532 = sadd.s32 %s531, 1
    %p535 = scmp.eq.s32.totalorder %s77, 1
    %p536 = scmp.ne.s32.totalorder %s531, %s533
    %p537 = scmp.eq.s32.totalorder %s77, 0
    %p538 = por %p536, %p537
    %p539 = scmp.ne.s32.totalorder %s531, %s533
    %p540 = scmp.eq.s32.totalorder %s82, 1
    %p541 = por %p539, %p540
    %p542 = scmp.ne.s32.totalorder %s533, %s534
    %p543 = scmp.eq.s32.totalorder %s82, 0
    %p544 = por %p542, %p543
    %p545 = scmp.ne.s32.totalorder %s533, %s534
    %p546 = scmp.eq.s32.totalorder %s83, 1
    %p547 = por %p545, %p546
    %p549 = scmp.ne.s32.totalorder %s534, %s548
    %p550 = scmp.eq.s32.totalorder %s83, 0
    %p551 = por %p549, %p550
    %s553 = sadd.s32 %s552, 1
    %p556 = scmp.eq.s32.totalorder %s77, 1
    %p557 = scmp.ne.s32.totalorder %s552, %s554
    %p558 = scmp.eq.s32.totalorder %s77, 0
    %p559 = por %p557, %p558
    %p560 = scmp.ne.s32.totalorder %s552, %s554
    %p561 = scmp.eq.s32.totalorder %s82, 1
    %p562 = por %p560, %p561
    %p563 = scmp.ne.s32.totalorder %s554, %s555
    %p564 = scmp.eq.s32.totalorder %s82, 0
    %p565 = por %p563, %p564
    %p566 = scmp.ne.s32.totalorder %s554, %s555
    %p567 = scmp.eq.s32.totalorder %s83, 1
    %p568 = por %p566, %p567
    %p570 = scmp.ne.s32.totalorder %s555, %s569
    %p571 = scmp.eq.s32.totalorder %s83, 0
    %p572 = por %p570, %p571
    %s574 = sadd.s32 %s573, 1
    %p577 = scmp.eq.s32.totalorder %s77, 1
    %p578 = scmp.ne.s32.totalorder %s573, %s575
    %p579 = scmp.eq.s32.totalorder %s77, 0
    %p580 = por %p578, %p579
    %p581 = scmp.ne.s32.totalorder %s573, %s575
    %p582 = scmp.eq.s32.totalorder %s82, 1
    %p583 = por %p581, %p582
    %p584 = scmp.ne.s32.totalorder %s575, %s576
    %p585 = scmp.eq.s32.totalorder %s82, 0
    %p586 = por %p584, %p585
    %p587 = scmp.ne.s32.totalorder %s575, %s576
    %p588 = scmp.eq.s32.totalorder %s83, 1
    %p589 = por %p587, %p588
    %p591 = scmp.ne.s32.totalorder %s576, %s590
    %p592 = scmp.eq.s32.totalorder %s83, 0
    %p593 = por %p591, %p592
    %s595 = sadd.s32 %s594, 1
    %p598 = scmp.eq.s32.totalorder %s77, 1
    %p599 = scmp.ne.s32.totalorder %s594, %s596
    %p600 = scmp.eq.s32.totalorder %s77, 0
    %p601 = por %p599, %p600
    %p602 = scmp.ne.s32.totalorder %s594, %s596
    %p603 = scmp.eq.s32.totalorder %s82, 1
    %p604 = por %p602, %p603
    %p605 = scmp.ne.s32.totalorder %s596, %s597
    %p606 = scmp.eq.s32.totalorder %s82, 0
    %p607 = por %p605, %p606
    %p608 = scmp.ne.s32.totalorder %s596, %s597
    %p609 = scmp.eq.s32.totalorder %s83, 1
    %p610 = por %p608, %p609
    %p612 = scmp.ne.s32.totalorder %s597, %s611
    %p613 = scmp.eq.s32.totalorder %s83, 0
    %p614 = por %p612, %p613
    %s616 = sadd.s32 %s615, 1
    %p619 = scmp.eq.s32.totalorder %s77, 1
    %p620 = scmp.ne.s32.totalorder %s615, %s617
    %p621 = scmp.eq.s32.totalorder %s77, 0
    %p622 = por %p620, %p621
    %p623 = scmp.ne.s32.totalorder %s615, %s617
    %p624 = scmp.eq.s32.totalorder %s82, 1
    %p625 = por %p623, %p624
    %p626 = scmp.ne.s32.totalorder %s617, %s618
    %p627 = scmp.eq.s32.totalorder %s82, 0
    %p628 = por %p626, %p627
    %p629 = scmp.ne.s32.totalorder %s617, %s618
    %p630 = scmp.eq.s32.totalorder %s83, 1
    %p631 = por %p629, %p630
    %p633 = scmp.ne.s32.totalorder %s618, %s632
    %p634 = scmp.eq.s32.totalorder %s83, 0
    %p635 = por %p633, %p634
    %s637 = sadd.s32 %s636, 1
    %p640 = scmp.eq.s32.totalorder %s77, 1
    %p641 = scmp.ne.s32.totalorder %s636, %s638
    %p642 = scmp.eq.s32.totalorder %s77, 0
    %p643 = por %p641, %p642
    %p644 = scmp.ne.s32.totalorder %s636, %s638
    %p645 = scmp.eq.s32.totalorder %s82, 1
    %p646 = por %p644, %p645
    %p647 = scmp.ne.s32.totalorder %s638, %s639
    %p648 = scmp.eq.s32.totalorder %s82, 0
    %p649 = por %p647, %p648
    %p650 = scmp.ne.s32.totalorder %s638, %s639
    %p651 = scmp.eq.s32.totalorder %s83, 1
    %p652 = por %p650, %p651
    %p654 = scmp.ne.s32.totalorder %s639, %s653
    %p655 = scmp.eq.s32.totalorder %s83, 0
    %p656 = por %p654, %p655
    %s658 = sadd.s32 %s657, 1
    %p661 = scmp.eq.s32.totalorder %s77, 1
    %p662 = scmp.ne.s32.totalorder %s657, %s659
    %p663 = scmp.eq.s32.totalorder %s77, 0
    %p664 = por %p662, %p663
    %p665 = scmp.ne.s32.totalorder %s657, %s659
    %p666 = scmp.eq.s32.totalorder %s82, 1
    %p667 = por %p665, %p666
    %p668 = scmp.ne.s32.totalorder %s659, %s660
    %p669 = scmp.eq.s32.totalorder %s82, 0
    %p670 = por %p668, %p669
    %p671 = scmp.ne.s32.totalorder %s659, %s660
    %p672 = scmp.eq.s32.totalorder %s83, 1
    %p673 = por %p671, %p672
    %p675 = scmp.ne.s32.totalorder %s660, %s674
    %p676 = scmp.eq.s32.totalorder %s83, 0
    %p677 = por %p675, %p676
    %s679 = sadd.s32 %s678, 1
    %p682 = scmp.eq.s32.totalorder %s77, 1
    %p683 = scmp.ne.s32.totalorder %s678, %s680
    %p684 = scmp.eq.s32.totalorder %s77, 0
    %p685 = por %p683, %p684
    %p686 = scmp.ne.s32.totalorder %s678, %s680
    %p687 = scmp.eq.s32.totalorder %s82, 1
    %p688 = por %p686, %p687
    %p689 = scmp.ne.s32.totalorder %s680, %s681
    %p690 = scmp.eq.s32.totalorder %s82, 0
    %p691 = por %p689, %p690
    %p692 = scmp.ne.s32.totalorder %s680, %s681
    %p693 = scmp.eq.s32.totalorder %s83, 1
    %p694 = por %p692, %p693
    %p696 = scmp.ne.s32.totalorder %s681, %s695
    %p697 = scmp.eq.s32.totalorder %s83, 0
    %p698 = por %p696, %p697
    %s700 = sadd.s32 %s699, 1
    %p703 = scmp.eq.s32.totalorder %s77, 1
    %p704 = scmp.ne.s32.totalorder %s699, %s701
    %p705 = scmp.eq.s32.totalorder %s77, 0
    %p706 = por %p704, %p705
    %p707 = scmp.ne.s32.totalorder %s699, %s701
    %p708 = scmp.eq.s32.totalorder %s82, 1
    %p709 = por %p707, %p708
    %p710 = scmp.ne.s32.totalorder %s701, %s702
    %p711 = scmp.eq.s32.totalorder %s82, 0
    %p712 = por %p710, %p711
    %p713 = scmp.ne.s32.totalorder %s701, %s702
    %p714 = scmp.eq.s32.totalorder %s83, 1
    %p715 = por %p713, %p714
    %p717 = scmp.ne.s32.totalorder %s702, %s716
    %p718 = scmp.eq.s32.totalorder %s83, 0
    %p719 = por %p717, %p718
    %s721 = sadd.s32 %s720, 1
    %p724 = scmp.eq.s32.totalorder %s77, 1
    %p725 = scmp.ne.s32.totalorder %s720, %s722
    %p726 = scmp.eq.s32.totalorder %s77, 0
    %p727 = por %p725, %p726
    %p728 = scmp.ne.s32.totalorder %s720, %s722
    %p729 = scmp.eq.s32.totalorder %s82, 1
    %p730 = por %p728, %p729
    %p731 = scmp.ne.s32.totalorder %s722, %s723
    %p732 = scmp.eq.s32.totalorder %s82, 0
    %p733 = por %p731, %p732
    %p734 = scmp.ne.s32.totalorder %s722, %s723
    %p735 = scmp.eq.s32.totalorder %s83, 1
    %p736 = por %p734, %p735
    %p738 = scmp.ne.s32.totalorder %s723, %s737
    %p739 = scmp.eq.s32.totalorder %s83, 0
    %p740 = por %p738, %p739
    %s742 = sadd.s32 %s741, 1
    %p745 = scmp.eq.s32.totalorder %s77, 1
    %p746 = scmp.ne.s32.totalorder %s741, %s743
    %p747 = scmp.eq.s32.totalorder %s77, 0
    %p748 = por %p746, %p747
    %p749 = scmp.ne.s32.totalorder %s741, %s743
    %p750 = scmp.eq.s32.totalorder %s82, 1
    %p751 = por %p749, %p750
    %p752 = scmp.ne.s32.totalorder %s743, %s744
    %p753 = scmp.eq.s32.totalorder %s82, 0
    %p754 = por %p752, %p753
    %p755 = scmp.ne.s32.totalorder %s743, %s744
    %p756 = scmp.eq.s32.totalorder %s83, 1
    %p757 = por %p755, %p756
    %p759 = scmp.ne.s32.totalorder %s744, %s758
    %p760 = scmp.eq.s32.totalorder %s83, 0
    %p761 = por %p759, %p760
    %s763 = sadd.s32 %s762, 1
    %p766 = scmp.eq.s32.totalorder %s77, 1
    %p767 = scmp.ne.s32.totalorder %s762, %s764
    %p768 = scmp.eq.s32.totalorder %s77, 0
    %p769 = por %p767, %p768
    %p770 = scmp.ne.s32.totalorder %s762, %s764
    %p771 = scmp.eq.s32.totalorder %s82, 1
    %p772 = por %p770, %p771
    %p773 = scmp.ne.s32.totalorder %s764, %s765
    %p774 = scmp.eq.s32.totalorder %s82, 0
    %p775 = por %p773, %p774
    %p776 = scmp.ne.s32.totalorder %s764, %s765
    %p777 = scmp.eq.s32.totalorder %s83, 1
    %p778 = por %p776, %p777
    %p780 = scmp.ne.s32.totalorder %s765, %s779
    %p781 = scmp.eq.s32.totalorder %s83, 0
    %p782 = por %p780, %p781
    %s784 = sadd.s32 %s783, 1
    %p787 = scmp.eq.s32.totalorder %s77, 1
    %p788 = scmp.ne.s32.totalorder %s783, %s785
    %p789 = scmp.eq.s32.totalorder %s77, 0
    %p790 = por %p788, %p789
    %p791 = scmp.ne.s32.totalorder %s783, %s785
    %p792 = scmp.eq.s32.totalorder %s82, 1
    %p793 = por %p791, %p792
    %p794 = scmp.ne.s32.totalorder %s785, %s786
    %p795 = scmp.eq.s32.totalorder %s82, 0
    %p796 = por %p794, %p795
    %p797 = scmp.ne.s32.totalorder %s785, %s786
    %p798 = scmp.eq.s32.totalorder %s83, 1
    %p799 = por %p797, %p798
    %p801 = scmp.ne.s32.totalorder %s786, %s800
    %p802 = scmp.eq.s32.totalorder %s83, 0
    %p803 = por %p801, %p802
    %s805 = sadd.s32 %s804, 1
    %p808 = scmp.eq.s32.totalorder %s77, 1
    %p809 = scmp.ne.s32.totalorder %s804, %s806
    %p810 = scmp.eq.s32.totalorder %s77, 0
    %p811 = por %p809, %p810
    %p812 = scmp.ne.s32.totalorder %s804, %s806
    %p813 = scmp.eq.s32.totalorder %s82, 1
    %p814 = por %p812, %p813
    %p815 = scmp.ne.s32.totalorder %s806, %s807
    %p816 = scmp.eq.s32.totalorder %s82, 0
    %p817 = por %p815, %p816
    %p818 = scmp.ne.s32.totalorder %s806, %s807
    %p819 = scmp.eq.s32.totalorder %s83, 1
    %p820 = por %p818, %p819
    %p822 = scmp.ne.s32.totalorder %s807, %s821
    %p823 = scmp.eq.s32.totalorder %s83, 0
    %p824 = por %p822, %p823
    %s825 = ssub.s32 %s77, %s84
    %p826 = scmp.eq.s32.totalorder %s825, 0
    %s828 = sadd.s32 %s827, 1
    %s829 = scalar_select %p826, %s827, %s828
    %p832 = pneg %p826
    %p833 = scmp.eq.s32.totalorder %s77, 1
    %p834 = por %p832, %p833
    %p835 = scmp.ne.s32.totalorder %s827, %s830
    %p836 = scmp.eq.s32.totalorder %s77, 0
    %p837 = por %p835, %p836
    %p838 = scmp.ne.s32.totalorder %s827, %s830
    %p839 = scmp.eq.s32.totalorder %s82, 1
    %p840 = por %p838, %p839
    %p841 = scmp.ne.s32.totalorder %s830, %s831
    %p842 = scmp.eq.s32.totalorder %s82, 0
    %p843 = por %p841, %p842
    %p844 = scmp.ne.s32.totalorder %s830, %s831
    %p845 = scmp.eq.s32.totalorder %s83, 1
    %p846 = por %p844, %p845
    %p848 = scmp.ne.s32.totalorder %s831, %s847
    %p849 = scmp.eq.s32.totalorder %s83, 0
    %p850 = por %p848, %p849
    %p851 = scmp.le.s32.totalorder 1, %s77
    %p852 = scmp.lt.s32.totalorder %s77, 3
    %p853 = pnand %p851, %p852
    %p854 = pneg %p853
    // Predicated region
    $region9: #{h_gcn_wh_forward.3} parent=5 // pred_check
      _
    $region10: #{h_gcn_wh_forward.3} parent=5 // pred_check_branch
      %856 = sbr.rel (%p853) target = $region12
    $region11: #{h_gcn_wh_forward.3} parent=5 // pred_region
      %s857 = ssub.s32 %s77, 1
      // Predicated region
      $region13: #{h_gcn_wh_forward.3} parent=11 // pred_check
        %p858 = pneg %p124
      $region14: #{h_gcn_wh_forward.3} parent=11 // pred_check_branch
        %860 = sbr.rel (%p858) target = $region16
      $region15: #{h_gcn_wh_forward.3} parent=11 // pred_region
        _
      $region16: #{h_gcn_wh_forward.3} parent=11 // pred_fallthru
        _
      // Predicated region
      $region17: #{h_gcn_wh_forward.3} parent=11 // pred_check
        %p861 = pneg %p145
      $region18: #{h_gcn_wh_forward.3} parent=11 // pred_check_branch
        %863 = sbr.rel (%p861) target = $region20
      $region19: #{h_gcn_wh_forward.3} parent=11 // pred_region
        _
      $region20: #{h_gcn_wh_forward.3} parent=11 // pred_fallthru
        _
      // Predicated region
      $region21: #{h_gcn_wh_forward.3} parent=11 // pred_check
        %p864 = pneg %p166
      $region22: #{h_gcn_wh_forward.3} parent=11 // pred_check_branch
        %866 = sbr.rel (%p864) target = $region24
      $region23: #{h_gcn_wh_forward.3} parent=11 // pred_region
        _
      $region24: #{h_gcn_wh_forward.3} parent=11 // pred_fallthru
        _
      // Predicated region
      $region25: #{h_gcn_wh_forward.3} parent=11 // pred_check
        %p867 = pneg %p187
      $region26: #{h_gcn_wh_forward.3} parent=11 // pred_check_branch
        %869 = sbr.rel (%p867) target = $region28
      $region27: #{h_gcn_wh_forward.3} parent=11 // pred_region
        _
      $region28: #{h_gcn_wh_forward.3} parent=11 // pred_fallthru
        _
      // Predicated region
      $region29: #{h_gcn_wh_forward.3} parent=11 // pred_check
        %p870 = pneg %p208
      $region30: #{h_gcn_wh_forward.3} parent=11 // pred_check_branch
        %872 = sbr.rel (%p870) target = $region32
      $region31: #{h_gcn_wh_forward.3} parent=11 // pred_region
        _
      $region32: #{h_gcn_wh_forward.3} parent=11 // pred_fallthru
        _
      // Predicated region
      $region33: #{h_gcn_wh_forward.3} parent=11 // pred_check
        %p873 = pneg %p229
      $region34: #{h_gcn_wh_forward.3} parent=11 // pred_check_branch
        %875 = sbr.rel (%p873) target = $region36
      $region35: #{h_gcn_wh_forward.3} parent=11 // pred_region
        _
      $region36: #{h_gcn_wh_forward.3} parent=11 // pred_fallthru
        _
      // Predicated region
      $region37: #{h_gcn_wh_forward.3} parent=11 // pred_check
        %p876 = pneg %p250
      $region38: #{h_gcn_wh_forward.3} parent=11 // pred_check_branch
        %878 = sbr.rel (%p876) target = $region40
      $region39: #{h_gcn_wh_forward.3} parent=11 // pred_region
        _
      $region40: #{h_gcn_wh_forward.3} parent=11 // pred_fallthru
        _
      // Predicated region
      $region41: #{h_gcn_wh_forward.3} parent=11 // pred_check
        %p879 = pneg %p271
      $region42: #{h_gcn_wh_forward.3} parent=11 // pred_check_branch
        %881 = sbr.rel (%p879) target = $region44
      $region43: #{h_gcn_wh_forward.3} parent=11 // pred_region
        _
      $region44: #{h_gcn_wh_forward.3} parent=11 // pred_fallthru
        _
      // Predicated region
      $region45: #{h_gcn_wh_forward.3} parent=11 // pred_check
        %p882 = pneg %p292
      $region46: #{h_gcn_wh_forward.3} parent=11 // pred_check_branch
        %884 = sbr.rel (%p882) target = $region48
      $region47: #{h_gcn_wh_forward.3} parent=11 // pred_region
        _
      $region48: #{h_gcn_wh_forward.3} parent=11 // pred_fallthru
        _
      // Predicated region
      $region49: #{h_gcn_wh_forward.3} parent=11 // pred_check
        %p885 = pneg %p313
      $region50: #{h_gcn_wh_forward.3} parent=11 // pred_check_branch
        %887 = sbr.rel (%p885) target = $region52
      $region51: #{h_gcn_wh_forward.3} parent=11 // pred_region
        _
      $region52: #{h_gcn_wh_forward.3} parent=11 // pred_fallthru
        _
      // Predicated region
      $region53: #{h_gcn_wh_forward.3} parent=11 // pred_check
        %p888 = pneg %p334
      $region54: #{h_gcn_wh_forward.3} parent=11 // pred_check_branch
        %890 = sbr.rel (%p888) target = $region56
      $region55: #{h_gcn_wh_forward.3} parent=11 // pred_region
        _
      $region56: #{h_gcn_wh_forward.3} parent=11 // pred_fallthru
        _
      // Predicated region
      $region57: #{h_gcn_wh_forward.3} parent=11 // pred_check
        %p891 = pneg %p355
      $region58: #{h_gcn_wh_forward.3} parent=11 // pred_check_branch
        %893 = sbr.rel (%p891) target = $region60
      $region59: #{h_gcn_wh_forward.3} parent=11 // pred_region
        _
      $region60: #{h_gcn_wh_forward.3} parent=11 // pred_fallthru
        _
      // Predicated region
      $region61: #{h_gcn_wh_forward.3} parent=11 // pred_check
        %p894 = pneg %p376
      $region62: #{h_gcn_wh_forward.3} parent=11 // pred_check_branch
        %896 = sbr.rel (%p894) target = $region64
      $region63: #{h_gcn_wh_forward.3} parent=11 // pred_region
        _
      $region64: #{h_gcn_wh_forward.3} parent=11 // pred_fallthru
        _
      // Predicated region
      $region65: #{h_gcn_wh_forward.3} parent=11 // pred_check
        %p897 = pneg %p397
      $region66: #{h_gcn_wh_forward.3} parent=11 // pred_check_branch
        %899 = sbr.rel (%p897) target = $region68
      $region67: #{h_gcn_wh_forward.3} parent=11 // pred_region
        _
      $region68: #{h_gcn_wh_forward.3} parent=11 // pred_fallthru
        _
      // Predicated region
      $region69: #{h_gcn_wh_forward.3} parent=11 // pred_check
        %p900 = pneg %p418
      $region70: #{h_gcn_wh_forward.3} parent=11 // pred_check_branch
        %902 = sbr.rel (%p900) target = $region72
      $region71: #{h_gcn_wh_forward.3} parent=11 // pred_region
        _
      $region72: #{h_gcn_wh_forward.3} parent=11 // pred_fallthru
        _
      // Predicated region
      $region73: #{h_gcn_wh_forward.3} parent=11 // pred_check
        %p903 = pneg %p439
      $region74: #{h_gcn_wh_forward.3} parent=11 // pred_check_branch
        %905 = sbr.rel (%p903) target = $region76
      $region75: #{h_gcn_wh_forward.3} parent=11 // pred_region
        _
      $region76: #{h_gcn_wh_forward.3} parent=11 // pred_fallthru
        _
      // Predicated region
      $region77: #{h_gcn_wh_forward.3} parent=11 // pred_check
        %p906 = pneg %p460
      $region78: #{h_gcn_wh_forward.3} parent=11 // pred_check_branch
        %908 = sbr.rel (%p906) target = $region80
      $region79: #{h_gcn_wh_forward.3} parent=11 // pred_region
        _
      $region80: #{h_gcn_wh_forward.3} parent=11 // pred_fallthru
        _
      // Predicated region
      $region81: #{h_gcn_wh_forward.3} parent=11 // pred_check
        %p909 = pneg %p481
      $region82: #{h_gcn_wh_forward.3} parent=11 // pred_check_branch
        %911 = sbr.rel (%p909) target = $region84
      $region83: #{h_gcn_wh_forward.3} parent=11 // pred_region
        _
      $region84: #{h_gcn_wh_forward.3} parent=11 // pred_fallthru
        _
      // Predicated region
      $region85: #{h_gcn_wh_forward.3} parent=11 // pred_check
        %p912 = pneg %p502
      $region86: #{h_gcn_wh_forward.3} parent=11 // pred_check_branch
        %914 = sbr.rel (%p912) target = $region88
      $region87: #{h_gcn_wh_forward.3} parent=11 // pred_region
        _
      $region88: #{h_gcn_wh_forward.3} parent=11 // pred_fallthru
        _
      // Predicated region
      $region89: #{h_gcn_wh_forward.3} parent=11 // pred_check
        %p915 = pneg %p523
      $region90: #{h_gcn_wh_forward.3} parent=11 // pred_check_branch
        %917 = sbr.rel (%p915) target = $region92
      $region91: #{h_gcn_wh_forward.3} parent=11 // pred_region
        _
      $region92: #{h_gcn_wh_forward.3} parent=11 // pred_fallthru
        _
      // Predicated region
      $region93: #{h_gcn_wh_forward.3} parent=11 // pred_check
        %p918 = pneg %p544
      $region94: #{h_gcn_wh_forward.3} parent=11 // pred_check_branch
        %920 = sbr.rel (%p918) target = $region96
      $region95: #{h_gcn_wh_forward.3} parent=11 // pred_region
        _
      $region96: #{h_gcn_wh_forward.3} parent=11 // pred_fallthru
        _
      // Predicated region
      $region97: #{h_gcn_wh_forward.3} parent=11 // pred_check
        %p921 = pneg %p565
      $region98: #{h_gcn_wh_forward.3} parent=11 // pred_check_branch
        %923 = sbr.rel (%p921) target = $region100
      $region99: #{h_gcn_wh_forward.3} parent=11 // pred_region
        _
      $region100: #{h_gcn_wh_forward.3} parent=11 // pred_fallthru
        _
      // Predicated region
      $region101: #{h_gcn_wh_forward.3} parent=11 // pred_check
        %p924 = pneg %p586
      $region102: #{h_gcn_wh_forward.3} parent=11 // pred_check_branch
        %926 = sbr.rel (%p924) target = $region104
      $region103: #{h_gcn_wh_forward.3} parent=11 // pred_region
        _
      $region104: #{h_gcn_wh_forward.3} parent=11 // pred_fallthru
        _
      // Predicated region
      $region105: #{h_gcn_wh_forward.3} parent=11 // pred_check
        %p927 = pneg %p607
      $region106: #{h_gcn_wh_forward.3} parent=11 // pred_check_branch
        %929 = sbr.rel (%p927) target = $region108
      $region107: #{h_gcn_wh_forward.3} parent=11 // pred_region
        _
      $region108: #{h_gcn_wh_forward.3} parent=11 // pred_fallthru
        _
      // Predicated region
      $region109: #{h_gcn_wh_forward.3} parent=11 // pred_check
        %p930 = pneg %p628
      $region110: #{h_gcn_wh_forward.3} parent=11 // pred_check_branch
        %932 = sbr.rel (%p930) target = $region112
      $region111: #{h_gcn_wh_forward.3} parent=11 // pred_region
        _
      $region112: #{h_gcn_wh_forward.3} parent=11 // pred_fallthru
        _
      // Predicated region
      $region113: #{h_gcn_wh_forward.3} parent=11 // pred_check
        %p933 = pneg %p649
      $region114: #{h_gcn_wh_forward.3} parent=11 // pred_check_branch
        %935 = sbr.rel (%p933) target = $region116
      $region115: #{h_gcn_wh_forward.3} parent=11 // pred_region
        _
      $region116: #{h_gcn_wh_forward.3} parent=11 // pred_fallthru
        _
      // Predicated region
      $region117: #{h_gcn_wh_forward.3} parent=11 // pred_check
        %p936 = pneg %p670
      $region118: #{h_gcn_wh_forward.3} parent=11 // pred_check_branch
        %938 = sbr.rel (%p936) target = $region120
      $region119: #{h_gcn_wh_forward.3} parent=11 // pred_region
        _
      $region120: #{h_gcn_wh_forward.3} parent=11 // pred_fallthru
        _
      // Predicated region
      $region121: #{h_gcn_wh_forward.3} parent=11 // pred_check
        %p939 = pneg %p691
      $region122: #{h_gcn_wh_forward.3} parent=11 // pred_check_branch
        %941 = sbr.rel (%p939) target = $region124
      $region123: #{h_gcn_wh_forward.3} parent=11 // pred_region
        _
      $region124: #{h_gcn_wh_forward.3} parent=11 // pred_fallthru
        _
      // Predicated region
      $region125: #{h_gcn_wh_forward.3} parent=11 // pred_check
        %p942 = pneg %p712
      $region126: #{h_gcn_wh_forward.3} parent=11 // pred_check_branch
        %944 = sbr.rel (%p942) target = $region128
      $region127: #{h_gcn_wh_forward.3} parent=11 // pred_region
        _
      $region128: #{h_gcn_wh_forward.3} parent=11 // pred_fallthru
        _
      // Predicated region
      $region129: #{h_gcn_wh_forward.3} parent=11 // pred_check
        %p945 = pneg %p733
      $region130: #{h_gcn_wh_forward.3} parent=11 // pred_check_branch
        %947 = sbr.rel (%p945) target = $region132
      $region131: #{h_gcn_wh_forward.3} parent=11 // pred_region
        _
      $region132: #{h_gcn_wh_forward.3} parent=11 // pred_fallthru
        _
      // Predicated region
      $region133: #{h_gcn_wh_forward.3} parent=11 // pred_check
        %p948 = pneg %p754
      $region134: #{h_gcn_wh_forward.3} parent=11 // pred_check_branch
        %950 = sbr.rel (%p948) target = $region136
      $region135: #{h_gcn_wh_forward.3} parent=11 // pred_region
        _
      $region136: #{h_gcn_wh_forward.3} parent=11 // pred_fallthru
        _
      // Predicated region
      $region137: #{h_gcn_wh_forward.3} parent=11 // pred_check
        %p951 = pneg %p775
      $region138: #{h_gcn_wh_forward.3} parent=11 // pred_check_branch
        %953 = sbr.rel (%p951) target = $region140
      $region139: #{h_gcn_wh_forward.3} parent=11 // pred_region
        _
      $region140: #{h_gcn_wh_forward.3} parent=11 // pred_fallthru
        _
      // Predicated region
      $region141: #{h_gcn_wh_forward.3} parent=11 // pred_check
        %p954 = pneg %p796
      $region142: #{h_gcn_wh_forward.3} parent=11 // pred_check_branch
        %956 = sbr.rel (%p954) target = $region144
      $region143: #{h_gcn_wh_forward.3} parent=11 // pred_region
        _
      $region144: #{h_gcn_wh_forward.3} parent=11 // pred_fallthru
        _
      // Predicated region
      $region145: #{h_gcn_wh_forward.3} parent=11 // pred_check
        %p957 = pneg %p817
      $region146: #{h_gcn_wh_forward.3} parent=11 // pred_check_branch
        %959 = sbr.rel (%p957) target = $region148
      $region147: #{h_gcn_wh_forward.3} parent=11 // pred_region
        _
      $region148: #{h_gcn_wh_forward.3} parent=11 // pred_fallthru
        _
    $region12: #{h_gcn_wh_forward.3} parent=5 // pred_fallthru
      _
    %p960 = scmp.lt.s32.totalorder %s77, 2
    // Predicated region
    $region149: #{h_gcn_wh_forward.3} parent=5 // pred_check
      %p961 = pneg %p960
    $region150: #{h_gcn_wh_forward.3} parent=5 // pred_check_branch
      %963 = sbr.rel (%p961) target = $region152
    $region151: #{h_gcn_wh_forward.3} parent=5 // pred_region
      // Predicated region
      $region153: #{h_gcn_wh_forward.3} parent=151 // pred_check
        %p964 = pneg %p97
      $region154: #{h_gcn_wh_forward.3} parent=151 // pred_check_branch
        %966 = sbr.rel (%p964) target = $region156
      $region155: #{h_gcn_wh_forward.3} parent=151 // pred_region
        %p967 = scmp.lt.s32.totalorder %s77, 1
        %s968 = scalar_select %p967, %s77, 1
        %s969 = smul.addr %s968, 12
        %s970 = smul.addr %s969, 8
        %s971 = scalar_lea.vmem %s1, %s970
      $region156: #{h_gcn_wh_forward.3} parent=151 // pred_fallthru
        _
    $region152: #{h_gcn_wh_forward.3} parent=5 // pred_fallthru
      _
    %p972 = scmp.le.s32.totalorder 1, %s77
    %p973 = scmp.lt.s32.totalorder %s77, 3
    %p974 = pnand %p972, %p973
    %p975 = pneg %p974
    // Predicated region
    $region157: #{h_gcn_wh_forward.3} parent=5 // pred_check
      _
    $region158: #{h_gcn_wh_forward.3} parent=5 // pred_check_branch
      %977 = sbr.rel (%p974) target = $region160
    $region159: #{h_gcn_wh_forward.3} parent=5 // pred_region
      %s978 = ssub.s32 %s77, 1
      %p979 = scmp.lt.s32.totalorder %s82, 1
      %s980 = scalar_select %p979, %s82, 1
      %s981 = smul.addr %s980, 12
      %s982 = smul.addr %s981, 8
      %s983 = scalar_lea.vmem %s1, %s982
      %p984 = pneg %p103
      %p985 = pneg %p100
      %p986 = pneg %p124
      %p987 = pneg %p121
      %p988 = pneg %p145
      %p989 = pneg %p142
      %p990 = pneg %p166
      %p991 = pneg %p163
      %p992 = pneg %p187
      %p993 = pneg %p184
      %p994 = pneg %p208
      %p995 = pneg %p205
      %p996 = pneg %p229
      %p997 = pneg %p226
      %p998 = pneg %p250
      %p999 = pneg %p247
      %p1000 = pneg %p271
      %p1001 = pneg %p268
      %p1002 = pneg %p292
      %p1003 = pneg %p289
      %p1004 = pneg %p313
      %p1005 = pneg %p310
      %p1006 = pneg %p334
      %p1007 = pneg %p331
      %p1008 = pneg %p355
      %p1009 = pneg %p352
      %p1010 = pneg %p376
      %p1011 = pneg %p373
      %p1012 = pneg %p397
      %p1013 = pneg %p394
      %p1014 = pneg %p418
      %p1015 = pneg %p415
      %p1016 = pneg %p439
      %p1017 = pneg %p436
      %p1018 = pneg %p460
      %p1019 = pneg %p457
      %p1020 = pneg %p481
      %p1021 = pneg %p478
      %p1022 = pneg %p502
      %p1023 = pneg %p499
      %p1024 = pneg %p523
      %p1025 = pneg %p520
      %p1026 = pneg %p544
      %p1027 = pneg %p541
      %p1028 = pneg %p565
      %p1029 = pneg %p562
      %p1030 = pneg %p586
      %p1031 = pneg %p583
      %p1032 = pneg %p607
      %p1033 = pneg %p604
      %p1034 = pneg %p628
      %p1035 = pneg %p625
      %p1036 = pneg %p649
      %p1037 = pneg %p646
      %p1038 = pneg %p670
      %p1039 = pneg %p667
      %p1040 = pneg %p691
      %p1041 = pneg %p688
      %p1042 = pneg %p712
      %p1043 = pneg %p709
      %p1044 = pneg %p733
      %p1045 = pneg %p730
      %p1046 = pneg %p754
      %p1047 = pneg %p751
      %p1048 = pneg %p775
      %p1049 = pneg %p772
      %p1050 = pneg %p796
      %p1051 = pneg %p793
      %p1052 = pneg %p817
      %p1053 = pneg %p814
      %p1054 = pneg %p843
      %p1055 = pneg %p840
      %p1056 = scmp.lt.s32.totalorder %s82, 1
      %s1057 = scalar_select %p1056, %s82, 1
      %s1058 = smul.addr %s1057, 8
      %s1059 = scalar_lea.vmem %s71, %s1058
      %p1060 = scmp.lt.s32.totalorder %s82, 1
      %s1061 = scalar_select %p1060, %s82, 1
      %s1062 = smul.addr %s1061, 12
      %s1063 = smul.addr %s1062, 8
      %s1064 = scalar_lea.vmem %s1, %s1063
      %p1065 = scmp.lt.s32.totalorder %s82, 1
      %s1066 = scalar_select %p1065, %s82, 1
      %s1067 = smul.addr %s1066, 8
      %s1068 = scalar_lea.vmem %s71, %s1067
      %v1070 = vld [vmem:[%s1064] sm:$0xff]
      %v1071 = vld [vmem:[%s1064 + $0x8] sm:$0xff]
      %v1072 = vld [vmem:[%s1064 + $0x10] sm:$0xff]
      %v1073 = vld [vmem:[%s1064 + $0x18] sm:$0xff]
      %v1074 = vld [vmem:[%s1064 + $0x20] sm:$0xff]
      %v1075 = vld [vmem:[%s1064 + $0x28] sm:$0xff]
      %v1076 = vld [vmem:[%s1064 + $0x30] sm:$0xff]
      %v1077 = vld [vmem:[%s1064 + $0x38] sm:$0xff]
      %v1078 = vld [vmem:[%s1064 + $0x40] sm:$0xff]
      %v1079 = vld [vmem:[%s1064 + $0x48] sm:$0xff]
      %v1080 = vld [vmem:[%s1064 + $0x50] sm:$0xff]
      %v1081 = vld [vmem:[%s1064 + $0x58] sm:$0xff]
      %v1082 = vld [vmem:[%s69] sm:$0x1]
      %1084 = vset.pattern.permute.xlu0 0
      %1085 = vperm.xlu0 %1084, %v1070
      %v1086 = vpop.permute.xlu0 %1085
      %1089 = vset.pattern.permute.xlu0 0
      %1090 = vperm.xlu0 %1089, %v1071
      %v1091 = vpop.permute.xlu0 %1090
      %1094 = vset.pattern.permute.xlu0 0
      %1095 = vperm.xlu0 %1094, %v1072
      %v1096 = vpop.permute.xlu0 %1095
      %1099 = vset.pattern.permute.xlu0 0
      %1100 = vperm.xlu0 %1099, %v1073
      %v1101 = vpop.permute.xlu0 %1100
      %1104 = vset.pattern.permute.xlu0 0
      %1105 = vperm.xlu0 %1104, %v1074
      %v1106 = vpop.permute.xlu0 %1105
      %1109 = vset.pattern.permute.xlu0 0
      %1110 = vperm.xlu0 %1109, %v1075
      %v1111 = vpop.permute.xlu0 %1110
      %1114 = vset.pattern.permute.xlu0 0
      %1115 = vperm.xlu0 %1114, %v1076
      %v1116 = vpop.permute.xlu0 %1115
      %1119 = vset.pattern.permute.xlu0 0
      %1120 = vperm.xlu0 %1119, %v1077
      %v1121 = vpop.permute.xlu0 %1120
      %1124 = vset.pattern.permute.xlu0 0
      %1125 = vperm.xlu0 %1124, %v1078
      %v1126 = vpop.permute.xlu0 %1125
      %1129 = vset.pattern.permute.xlu0 0
      %1130 = vperm.xlu0 %1129, %v1079
      %v1131 = vpop.permute.xlu0 %1130
      %1134 = vset.pattern.permute.xlu0 0
      %1135 = vperm.xlu0 %1134, %v1080
      %v1136 = vpop.permute.xlu0 %1135
      %1139 = vset.pattern.permute.xlu0 0
      %1140 = vperm.xlu0 %1139, %v1081
      %v1141 = vpop.permute.xlu0 %1140
      %v1144 = vperm.slane %v1082, 0
      %v1146 = vmul.f32 %v1086, %v1144
      %v1147 = vmul.f32 %v1091, %v1144
      %v1148 = vmul.f32 %v1096, %v1144
      %v1149 = vmul.f32 %v1101, %v1144
      %v1150 = vmul.f32 %v1106, %v1144
      %v1151 = vmul.f32 %v1111, %v1144
      %v1152 = vmul.f32 %v1116, %v1144
      %v1153 = vmul.f32 %v1121, %v1144
      %v1154 = vmul.f32 %v1126, %v1144
      %v1155 = vmul.f32 %v1131, %v1144
      %v1156 = vmul.f32 %v1136, %v1144
      %v1157 = vmul.f32 %v1141, %v1144
      %v1158 = vld [vmem:[%s67] sm:$0x1]
      %v1160 = vperm.slane %v1158, 0
      %v1162 = vadd.f32 %v1146, %v1160
      %v1163 = vadd.f32 %v1147, %v1160
      %v1164 = vadd.f32 %v1148, %v1160
      %v1165 = vadd.f32 %v1149, %v1160
      %v1166 = vadd.f32 %v1150, %v1160
      %v1167 = vadd.f32 %v1151, %v1160
      %v1168 = vadd.f32 %v1152, %v1160
      %v1169 = vadd.f32 %v1153, %v1160
      %v1170 = vadd.f32 %v1154, %v1160
      %v1171 = vadd.f32 %v1155, %v1160
      %v1172 = vadd.f32 %v1156, %v1160
      %v1173 = vadd.f32 %v1157, %v1160
      %v1174 = vld [vmem:[%s3] sm:$0xf]
      %v1175 = vld [vmem:[%s3 + $0x4] sm:$0xf]
      %v1176 = vld [vmem:[%s3 + $0x8] sm:$0xf]
      %v1177 = vld [vmem:[%s3 + $0xc] sm:$0xf]
      %v1178 = vld [vmem:[%s3 + $0x10] sm:$0xf]
      %v1179 = vld [vmem:[%s3 + $0x14] sm:$0xf]
      %v1180 = vld [vmem:[%s3 + $0x18] sm:$0xf]
      %v1181 = vld [vmem:[%s3 + $0x1c] sm:$0xf]
      %v1182 = vld [vmem:[%s23] sm:$0xf]
      %v1183 = vld [vmem:[%s23 + $0x4] sm:$0xf]
      %v1184 = vld [vmem:[%s23 + $0x8] sm:$0xf]
      %v1185 = vld [vmem:[%s23 + $0xc] sm:$0xf]
      %v1186 = vpack.c.bf16 %v1163, %v1162
      %v1187 = vpack.c.bf16 %v1165, %v1164
      %v1188 = vpack.c.bf16 %v1167, %v1166
      %v1189 = vpack.c.bf16 %v1169, %v1168
      %v1190 = vpack.c.bf16 %v1171, %v1170
      %v1191 = vpack.c.bf16 %v1173, %v1172
      %v1192 = vld [vmem:[%s21] sm:$0x1]
      %v1194 = vperm.slane %v1192, 0
      %v1200 = vunpack.c.l.b16 %v1182
      %v1201 = vunpack.c.l.b16 %v1183
      %v1202 = vunpack.c.l.b16 %v1184
      %v1203 = vunpack.c.l.b16 %v1185
      %v1204 = vpack.c.b16 %v1201, %v1200
      %v1205 = vpack.c.b16 %v1203, %v1202
      %vm1208 = vcmask 261120
      %v1210 = vsel %vm1208, %v1186, 0
      %v1213 = vsel %vm1208, %v1187, 0
      %v1216 = vsel %vm1208, %v1188, 0
      %v1219 = vsel %vm1208, %v1189, 0
      %v1222 = vsel %vm1208, %v1190, 0
      %v1225 = vsel %vm1208, %v1191, 0
      %1227 = vmatpush.bf16.msra.mxu0 0
      %1228 = vmatpush.bf16.msra.mxu0 0
      %1229 = vmatpush.bf16.msra.mxu0 0
      %1230 = vmatpush.bf16.msra.mxu0 0
      %1231 = vmatpush.bf16.msra.mxu0 0
      %1232 = vmatpush.bf16.msra.mxu0 0
      %1233 = vmatpush.bf16.msra.mxu0 %v1205
      %1234 = vmatpush.bf16.msra.mxu0 %v1204
      %1235 = vmatmul.bf16.gmra.mxu0 %v1210
      %v1236 = vpop.f32.mrf.mxu0
      %v1237 = vpop.f32.mrf.mxu0
      %1238 = vmatmul.bf16.gmra.mxu0 %v1213
      %v1239 = vpop.f32.mrf.mxu0
      %v1240 = vpop.f32.mrf.mxu0
      %1241 = vmatmul.bf16.gmra.mxu0 %v1216
      %v1242 = vpop.f32.mrf.mxu0
      %v1243 = vpop.f32.mrf.mxu0
      %1244 = vmatmul.bf16.gmra.mxu0 %v1219
      %v1245 = vpop.f32.mrf.mxu0
      %v1246 = vadd.f32 %v1194, %v1245
      %v1247 = vpop.f32.mrf.mxu0
      %v1248 = vadd.f32 %v1194, %v1247
      %1249 = vmatmul.bf16.gmra.mxu0 %v1222
      %v1250 = vpop.f32.mrf.mxu0
      %v1251 = vadd.f32 %v1194, %v1250
      %v1252 = vpop.f32.mrf.mxu0
      %v1253 = vadd.f32 %v1194, %v1252
      %1254 = vmatmul.bf16.gmra.mxu0 %v1225
      %v1255 = vpop.f32.mrf.mxu0
      %v1256 = vadd.f32 %v1194, %v1255
      %v1257 = vpop.f32.mrf.mxu0
      %v1258 = vadd.f32 %v1194, %v1257
      %1259 = vdwg.mxu0
      %1268 = vrot.lane.b32.xlu0 %v1164, 32
      %v1269 = vpop.permute.xlu0 %1268
      %1270 = vrot.lane.b32.xlu0 %v1165, 32
      %v1271 = vpop.permute.xlu0 %1270
      %1272 = vrot.lane.b32.xlu0 %v1166, 32
      %v1273 = vpop.permute.xlu0 %1272
      %1274 = vrot.lane.b32.xlu0 %v1167, 32
      %v1275 = vpop.permute.xlu0 %1274
      %1276 = vrot.lane.b32.xlu0 %v1168, 32
      %v1277 = vpop.permute.xlu0 %1276
      %1278 = vrot.lane.b32.xlu0 %v1169, 32
      %v1279 = vpop.permute.xlu0 %1278
      %1280 = vrot.lane.b32.xlu0 %v1170, 32
      %v1281 = vpop.permute.xlu0 %1280
      %1282 = vrot.lane.b32.xlu0 %v1171, 32
      %v1283 = vpop.permute.xlu0 %1282
      %1294 = vrot.lane.b32.xlu0 %v1166, 64
      %v1295 = vpop.permute.xlu0 %1294
      %1296 = vrot.lane.b32.xlu0 %v1167, 64
      %v1297 = vpop.permute.xlu0 %1296
      %1298 = vrot.lane.b32.xlu0 %v1168, 64
      %v1299 = vpop.permute.xlu0 %1298
      %1300 = vrot.lane.b32.xlu0 %v1169, 64
      %v1301 = vpop.permute.xlu0 %1300
      %1302 = vrot.lane.b32.xlu0 %v1170, 64
      %v1303 = vpop.permute.xlu0 %1302
      %1304 = vrot.lane.b32.xlu0 %v1171, 64
      %v1305 = vpop.permute.xlu0 %1304
      %1306 = vrot.lane.b32.xlu0 %v1172, 64
      %v1307 = vpop.permute.xlu0 %1306
      %1308 = vrot.lane.b32.xlu0 %v1173, 64
      %v1309 = vpop.permute.xlu0 %1308
      %v1318 = vsel %vm1208, %v1162, %v1269
      %v1319 = vsel %vm1208, %v1163, %v1271
      %v1320 = vsel %vm1208, %v1164, %v1273
      %v1321 = vsel %vm1208, %v1165, %v1275
      %v1322 = vsel %vm1208, %v1166, %v1277
      %v1323 = vsel %vm1208, %v1167, %v1279
      %v1324 = vsel %vm1208, %v1168, %v1281
      %v1325 = vsel %vm1208, %v1169, %v1283
      %vm1326 = vcmask 523264
      %v1327 = vsel %vm1326, %v1318, %v1295
      %v1328 = vsel %vm1326, %v1319, %v1297
      %v1329 = vsel %vm1326, %v1320, %v1299
      %v1330 = vsel %vm1326, %v1321, %v1301
      %v1331 = vsel %vm1326, %v1322, %v1303
      %v1332 = vsel %vm1326, %v1323, %v1305
      %v1333 = vsel %vm1326, %v1324, %v1307
      %v1334 = vsel %vm1326, %v1325, %v1309
      %v1335 = vld [vmem:[%s27] sm:$0xf]
      %v1336 = vld [vmem:[%s27 + $0x4] sm:$0xf]
      %v1337 = vld [vmem:[%s27 + $0x8] sm:$0xf]
      %v1338 = vld [vmem:[%s27 + $0xc] sm:$0xf]
      %v1339 = vld [vmem:[%s27 + $0x10] sm:$0xf]
      %v1340 = vld [vmem:[%s27 + $0x14] sm:$0xf]
      %v1341 = vld [vmem:[%s27 + $0x18] sm:$0xf]
      %v1342 = vld [vmem:[%s27 + $0x1c] sm:$0xf]
      %v1343 = vld [vmem:[%s27 + $0x20] sm:$0xf]
      %v1344 = vld [vmem:[%s27 + $0x24] sm:$0xf]
      %v1345 = vld [vmem:[%s27 + $0x28] sm:$0xf]
      %v1346 = vld [vmem:[%s27 + $0x2c] sm:$0xf]
      %v1347 = vpack.c.bf16 %v1328, %v1327
      %v1348 = vpack.c.bf16 %v1330, %v1329
      %v1349 = vpack.c.bf16 %v1332, %v1331
      %v1350 = vpack.c.bf16 %v1334, %v1333
      %v1351 = vld [vmem:[%s25] sm:$0x1]
      %v1353 = vperm.slane %v1351, 0
      %v1367 = vunpack.c.l.b16 %v1335
      %v1368 = vunpack.c.l.b16 %v1336
      %v1369 = vunpack.c.l.b16 %v1337
      %v1370 = vunpack.c.l.b16 %v1338
      %v1371 = vunpack.c.l.b16 %v1339
      %v1372 = vunpack.c.l.b16 %v1340
      %v1373 = vunpack.c.l.b16 %v1341
      %v1374 = vunpack.c.l.b16 %v1342
      %v1375 = vunpack.c.l.b16 %v1343
      %v1376 = vunpack.c.l.b16 %v1344
      %v1377 = vunpack.c.l.b16 %v1345
      %v1378 = vunpack.c.l.b16 %v1346
      %v1379 = vpack.c.b16 %v1368, %v1367
      %v1380 = vpack.c.b16 %v1370, %v1369
      %v1381 = vpack.c.b16 %v1372, %v1371
      %v1382 = vpack.c.b16 %v1374, %v1373
      %v1383 = vpack.c.b16 %v1376, %v1375
      %v1384 = vpack.c.b16 %v1378, %v1377
      %vm1391 = vcmask 785408
      %v1393 = vsel %vm1391, %v1347, 0
      %v1396 = vsel %vm1391, %v1348, 0
      %v1399 = vsel %vm1391, %v1349, 0
      %v1402 = vsel %vm1391, %v1350, 0
      %1404 = vmatpush.bf16.msra.mxu0 0
      %1405 = vmatpush.bf16.msra.mxu0 0
      %1406 = vmatpush.bf16.msra.mxu0 %v1384
      %1407 = vmatpush.bf16.msra.mxu0 %v1383
      %1408 = vmatpush.bf16.msra.mxu0 %v1382
      %1409 = vmatpush.bf16.msra.mxu0 %v1381
      %1410 = vmatpush.bf16.msra.mxu0 %v1380
      %1411 = vmatpush.bf16.msra.mxu0 %v1379
      %1412 = vmatmul.bf16.gmra.mxu0 %v1393
      %v1413 = vpop.f32.mrf.mxu0
      %v1414 = vadd.f32 %v1353, %v1413
      %v1415 = vpop.f32.mrf.mxu0
      %v1416 = vadd.f32 %v1353, %v1415
      %1417 = vmatmul.bf16.gmra.mxu0 %v1396
      %v1418 = vpop.f32.mrf.mxu0
      %v1419 = vadd.f32 %v1353, %v1418
      %v1420 = vpop.f32.mrf.mxu0
      %v1421 = vadd.f32 %v1353, %v1420
      %1422 = vmatmul.bf16.gmra.mxu0 %v1399
      %v1423 = vpop.f32.mrf.mxu0
      %v1424 = vadd.f32 %v1353, %v1423
      %v1425 = vpop.f32.mrf.mxu0
      %v1426 = vadd.f32 %v1353, %v1425
      %1427 = vmatmul.bf16.gmra.mxu0 %v1402
      %v1428 = vpop.f32.mrf.mxu0
      %v1429 = vadd.f32 %v1353, %v1428
      %v1430 = vpop.f32.mrf.mxu0
      %v1431 = vadd.f32 %v1353, %v1430
      %1432 = vdwg.mxu0
      %v1433 = vtanh.pop %v1414
      %v1434 = vtanh.pop %v1416
      %v1435 = vtanh.pop %v1419
      %v1436 = vtanh.pop %v1421
      %v1437 = vtanh.pop %v1424
      %v1438 = vtanh.pop %v1426
      %v1439 = vtanh.pop %v1429
      %v1440 = vtanh.pop %v1431
      %v1441 = vxor.u32 %v1414, 2147483648
      %v1442 = vxor.u32 %v1416, 2147483648
      %v1443 = vxor.u32 %v1419, 2147483648
      %v1444 = vxor.u32 %v1421, 2147483648
      %v1445 = vxor.u32 %v1424, 2147483648
      %v1446 = vxor.u32 %v1426, 2147483648
      %v1447 = vxor.u32 %v1429, 2147483648
      %v1448 = vxor.u32 %v1431, 2147483648
      %v1449 = vmul.f32 %v1441, 1.442695
      %v1450 = vpow.pop %v1449
      %v1451 = vmul.f32 %v1442, 1.442695
      %v1452 = vpow.pop %v1451
      %v1453 = vmul.f32 %v1443, 1.442695
      %v1454 = vpow.pop %v1453
      %v1455 = vmul.f32 %v1444, 1.442695
      %v1456 = vpow.pop %v1455
      %v1457 = vmul.f32 %v1445, 1.442695
      %v1458 = vpow.pop %v1457
      %v1459 = vmul.f32 %v1446, 1.442695
      %v1460 = vpow.pop %v1459
      %v1461 = vmul.f32 %v1447, 1.442695
      %v1462 = vpow.pop %v1461
      %v1463 = vmul.f32 %v1448, 1.442695
      %v1464 = vpow.pop %v1463
      %v1465 = vadd.f32 %v1450, 1.0
      %v1466 = vadd.f32 %v1452, 1.0
      %v1467 = vadd.f32 %v1454, 1.0
      %v1468 = vadd.f32 %v1456, 1.0
      %v1469 = vadd.f32 %v1458, 1.0
      %v1470 = vadd.f32 %v1460, 1.0
      %v1471 = vadd.f32 %v1462, 1.0
      %v1472 = vadd.f32 %v1464, 1.0
      %v1473 = vrcp.pop %v1465
      %v1474 = vmul.f32 %v1465, %v1473
      %v1475 = vsub.f32 1.0, %v1474
      %v1476 = vmul.f32 %v1473, %v1475
      %v1477 = vadd.f32 %v1473, %v1476
      %vm1478 = vweird.f32 %v1465
      %vm1479 = vweird.f32 %v1473
      %vm1480 = vmor %vm1478, %vm1479
      %v1481 = vsel %vm1480, %v1473, %v1477
      %v1482 = vand.u32 2147483647, %v1465
      %vm1483 = vcmp.eq.f32.partialorder %v1482, 8.507059e+37
      %v1484 = vand.u32 %v1465, 2147483648
      %v1485 = vor.u32 1.1754944e-38, %v1484
      %v1486 = vsel %vm1483, %v1485, %v1481
      %v1487 = vmul.f32 1.0, %v1486
      %v1488 = vrcp.pop %v1466
      %v1489 = vmul.f32 %v1466, %v1488
      %v1490 = vsub.f32 1.0, %v1489
      %v1491 = vmul.f32 %v1488, %v1490
      %v1492 = vadd.f32 %v1488, %v1491
      %vm1493 = vweird.f32 %v1466
      %vm1494 = vweird.f32 %v1488
      %vm1495 = vmor %vm1493, %vm1494
      %v1496 = vsel %vm1495, %v1488, %v1492
      %v1497 = vand.u32 2147483647, %v1466
      %vm1498 = vcmp.eq.f32.partialorder %v1497, 8.507059e+37
      %v1499 = vand.u32 %v1466, 2147483648
      %v1500 = vor.u32 1.1754944e-38, %v1499
      %v1501 = vsel %vm1498, %v1500, %v1496
      %v1502 = vmul.f32 1.0, %v1501
      %v1503 = vrcp.pop %v1467
      %v1504 = vmul.f32 %v1467, %v1503
      %v1505 = vsub.f32 1.0, %v1504
      %v1506 = vmul.f32 %v1503, %v1505
      %v1507 = vadd.f32 %v1503, %v1506
      %vm1508 = vweird.f32 %v1467
      %vm1509 = vweird.f32 %v1503
      %vm1510 = vmor %vm1508, %vm1509
      %v1511 = vsel %vm1510, %v1503, %v1507
      %v1512 = vand.u32 2147483647, %v1467
      %vm1513 = vcmp.eq.f32.partialorder %v1512, 8.507059e+37
      %v1514 = vand.u32 %v1467, 2147483648
      %v1515 = vor.u32 1.1754944e-38, %v1514
      %v1516 = vsel %vm1513, %v1515, %v1511
      %v1517 = vmul.f32 1.0, %v1516
      %v1518 = vrcp.pop %v1468
      %v1519 = vmul.f32 %v1468, %v1518
      %v1520 = vsub.f32 1.0, %v1519
      %v1521 = vmul.f32 %v1518, %v1520
      %v1522 = vadd.f32 %v1518, %v1521
      %vm1523 = vweird.f32 %v1468
      %vm1524 = vweird.f32 %v1518
      %vm1525 = vmor %vm1523, %vm1524
      %v1526 = vsel %vm1525, %v1518, %v1522
      %v1527 = vand.u32 2147483647, %v1468
      %vm1528 = vcmp.eq.f32.partialorder %v1527, 8.507059e+37
      %v1529 = vand.u32 %v1468, 2147483648
      %v1530 = vor.u32 1.1754944e-38, %v1529
      %v1531 = vsel %vm1528, %v1530, %v1526
      %v1532 = vmul.f32 1.0, %v1531
      %v1533 = vrcp.pop %v1469
      %v1534 = vmul.f32 %v1469, %v1533
      %v1535 = vsub.f32 1.0, %v1534
      %v1536 = vmul.f32 %v1533, %v1535
      %v1537 = vadd.f32 %v1533, %v1536
      %vm1538 = vweird.f32 %v1469
      %vm1539 = vweird.f32 %v1533
      %vm1540 = vmor %vm1538, %vm1539
      %v1541 = vsel %vm1540, %v1533, %v1537
      %v1542 = vand.u32 2147483647, %v1469
      %vm1543 = vcmp.eq.f32.partialorder %v1542, 8.507059e+37
      %v1544 = vand.u32 %v1469, 2147483648
      %v1545 = vor.u32 1.1754944e-38, %v1544
      %v1546 = vsel %vm1543, %v1545, %v1541
      %v1547 = vmul.f32 1.0, %v1546
      %v1548 = vrcp.pop %v1470
      %v1549 = vmul.f32 %v1470, %v1548
      %v1550 = vsub.f32 1.0, %v1549
      %v1551 = vmul.f32 %v1548, %v1550
      %v1552 = vadd.f32 %v1548, %v1551
      %vm1553 = vweird.f32 %v1470
      %vm1554 = vweird.f32 %v1548
      %vm1555 = vmor %vm1553, %vm1554
      %v1556 = vsel %vm1555, %v1548, %v1552
      %v1557 = vand.u32 2147483647, %v1470
      %vm1558 = vcmp.eq.f32.partialorder %v1557, 8.507059e+37
      %v1559 = vand.u32 %v1470, 2147483648
      %v1560 = vor.u32 1.1754944e-38, %v1559
      %v1561 = vsel %vm1558, %v1560, %v1556
      %v1562 = vmul.f32 1.0, %v1561
      %v1563 = vrcp.pop %v1471
      %v1564 = vmul.f32 %v1471, %v1563
      %v1565 = vsub.f32 1.0, %v1564
      %v1566 = vmul.f32 %v1563, %v1565
      %v1567 = vadd.f32 %v1563, %v1566
      %vm1568 = vweird.f32 %v1471
      %vm1569 = vweird.f32 %v1563
      %vm1570 = vmor %vm1568, %vm1569
      %v1571 = vsel %vm1570, %v1563, %v1567
      %v1572 = vand.u32 2147483647, %v1471
      %vm1573 = vcmp.eq.f32.partialorder %v1572, 8.507059e+37
      %v1574 = vand.u32 %v1471, 2147483648
      %v1575 = vor.u32 1.1754944e-38, %v1574
      %v1576 = vsel %vm1573, %v1575, %v1571
      %v1577 = vmul.f32 1.0, %v1576
      %v1578 = vrcp.pop %v1472
      %v1579 = vmul.f32 %v1472, %v1578
      %v1580 = vsub.f32 1.0, %v1579
      %v1581 = vmul.f32 %v1578, %v1580
      %v1582 = vadd.f32 %v1578, %v1581
      %vm1583 = vweird.f32 %v1472
      %vm1584 = vweird.f32 %v1578
      %vm1585 = vmor %vm1583, %vm1584
      %v1586 = vsel %vm1585, %v1578, %v1582
      %v1587 = vand.u32 2147483647, %v1472
      %vm1588 = vcmp.eq.f32.partialorder %v1587, 8.507059e+37
      %v1589 = vand.u32 %v1472, 2147483648
      %v1590 = vor.u32 1.1754944e-38, %v1589
      %v1591 = vsel %vm1588, %v1590, %v1586
      %v1592 = vmul.f32 1.0, %v1591
      %1601 = vrot.lane.b32.xlu0 %v1487, 96
      %v1602 = vpop.permute.xlu0 %1601
      %1603 = vrot.lane.b32.xlu0 %v1502, 96
      %v1604 = vpop.permute.xlu0 %1603
      %1605 = vrot.lane.b32.xlu0 %v1517, 96
      %v1606 = vpop.permute.xlu0 %1605
      %1607 = vrot.lane.b32.xlu0 %v1532, 96
      %v1608 = vpop.permute.xlu0 %1607
      %1609 = vrot.lane.b32.xlu0 %v1547, 96
      %v1610 = vpop.permute.xlu0 %1609
      %1611 = vrot.lane.b32.xlu0 %v1562, 96
      %v1612 = vpop.permute.xlu0 %1611
      %1613 = vrot.lane.b32.xlu0 %v1577, 96
      %v1614 = vpop.permute.xlu0 %1613
      %1615 = vrot.lane.b32.xlu0 %v1592, 96
      %v1616 = vpop.permute.xlu0 %1615
      %v1625 = vmul.f32 %v1433, %v1602
      %v1626 = vmul.f32 %v1434, %v1604
      %v1627 = vmul.f32 %v1435, %v1606
      %v1628 = vmul.f32 %v1436, %v1608
      %v1629 = vmul.f32 %v1437, %v1610
      %v1630 = vmul.f32 %v1438, %v1612
      %v1631 = vmul.f32 %v1439, %v1614
      %v1632 = vmul.f32 %v1440, %v1616
      %v1633 = vpack.c.bf16 %v1626, %v1625
      %v1634 = vpack.c.bf16 %v1628, %v1627
      %v1635 = vpack.c.bf16 %v1630, %v1629
      %v1636 = vpack.c.bf16 %v1632, %v1631
      %v1645 = vunpack.c.l.b16 %v1174
      %v1646 = vunpack.c.l.b16 %v1175
      %v1647 = vunpack.c.l.b16 %v1176
      %v1648 = vunpack.c.l.b16 %v1177
      %v1649 = vunpack.c.l.b16 %v1178
      %v1650 = vunpack.c.l.b16 %v1179
      %v1651 = vunpack.c.l.b16 %v1180
      %v1652 = vunpack.c.l.b16 %v1181
      %v1653 = vpack.c.b16 %v1646, %v1645
      %v1654 = vpack.c.b16 %v1648, %v1647
      %v1655 = vpack.c.b16 %v1650, %v1649
      %v1656 = vpack.c.b16 %v1652, %v1651
      %v1658 = vsel %vm1326, %v1653, 0
      %v1661 = vsel %vm1326, %v1654, 0
      %v1664 = vsel %vm1326, %v1655, 0
      %v1667 = vsel %vm1326, %v1656, 0
      %1669 = vmatpush.bf16.msra.mxu0 0
      %1670 = vmatpush.bf16.msra.mxu0 0
      %1671 = vmatpush.bf16.msra.mxu0 0
      %1672 = vmatpush.bf16.msra.mxu0 0
      %1673 = vmatpush.bf16.msra.mxu0 %v1636
      %1674 = vmatpush.bf16.msra.mxu0 %v1635
      %1675 = vmatpush.bf16.msra.mxu0 %v1634
      %1676 = vmatpush.bf16.msra.mxu0 %v1633
      %1677 = vmatmul.bf16.gmra.mxu0 %v1658
      %v1678 = vpop.f32.mrf.mxu0
      %v1679 = vadd.f32 0.0, %v1678
      %v1680 = vpop.f32.mrf.mxu0
      %v1681 = vadd.f32 0.0, %v1680
      %1682 = vmatmul.bf16.gmra.mxu0 %v1661
      %v1683 = vpop.f32.mrf.mxu0
      %v1684 = vadd.f32 0.0, %v1683
      %v1685 = vpop.f32.mrf.mxu0
      %v1686 = vadd.f32 0.0, %v1685
      %1687 = vmatmul.bf16.gmra.mxu0 %v1664
      %v1688 = vpop.f32.mrf.mxu0
      %v1689 = vadd.f32 0.0, %v1688
      %v1690 = vpop.f32.mrf.mxu0
      %v1691 = vadd.f32 0.0, %v1690
      %1692 = vmatmul.bf16.gmra.mxu0 %v1667
      %v1693 = vpop.f32.mrf.mxu0
      %v1694 = vadd.f32 0.0, %v1693
      %v1695 = vpop.f32.mrf.mxu0
      %v1696 = vadd.f32 0.0, %v1695
      %1697 = vdwg.mxu0
      %v1698 = vpack.c.bf16 %v1681, %v1679
      %v1699 = vpack.c.bf16 %v1686, %v1684
      %v1700 = vpack.c.bf16 %v1691, %v1689
      %v1701 = vpack.c.bf16 %v1696, %v1694
      %1702 = vmatpush.bf16.msra.mxu0 0
      %1703 = vmatpush.bf16.msra.mxu0 0
      %1704 = vmatpush.bf16.msra.mxu0 0
      %1705 = vmatpush.bf16.msra.mxu0 0
      %1706 = vmatpush.bf16.msra.mxu0 %v1701
      %1707 = vmatpush.bf16.msra.mxu0 %v1700
      %1708 = vmatpush.bf16.msra.mxu0 %v1699
      %1709 = vmatpush.bf16.msra.mxu0 %v1698
      %1710 = vmatmul.bf16.gmra.mxu0 %v1658
      %v1711 = vpop.f32.mrf.mxu0
      %v1712 = vadd.f32 0.0, %v1711
      %v1713 = vpop.f32.mrf.mxu0
      %v1714 = vadd.f32 0.0, %v1713
      %1715 = vmatmul.bf16.gmra.mxu0 %v1661
      %v1716 = vpop.f32.mrf.mxu0
      %v1717 = vadd.f32 0.0, %v1716
      %v1718 = vpop.f32.mrf.mxu0
      %v1719 = vadd.f32 0.0, %v1718
      %1720 = vmatmul.bf16.gmra.mxu0 %v1664
      %v1721 = vpop.f32.mrf.mxu0
      %v1722 = vadd.f32 0.0, %v1721
      %v1723 = vpop.f32.mrf.mxu0
      %v1724 = vadd.f32 0.0, %v1723
      %1725 = vmatmul.bf16.gmra.mxu0 %v1667
      %v1726 = vpop.f32.mrf.mxu0
      %v1727 = vadd.f32 0.0, %v1726
      %v1728 = vpop.f32.mrf.mxu0
      %v1729 = vadd.f32 0.0, %v1728
      %1730 = vdwg.mxu0
      %1739 = vrot.lane.b32.xlu0 %v1679, 32
      %v1740 = vpop.permute.xlu0 %1739
      %1741 = vrot.lane.b32.xlu0 %v1681, 32
      %v1742 = vpop.permute.xlu0 %1741
      %1743 = vrot.lane.b32.xlu0 %v1684, 32
      %v1744 = vpop.permute.xlu0 %1743
      %1745 = vrot.lane.b32.xlu0 %v1686, 32
      %v1746 = vpop.permute.xlu0 %1745
      %1747 = vrot.lane.b32.xlu0 %v1689, 32
      %v1748 = vpop.permute.xlu0 %1747
      %1749 = vrot.lane.b32.xlu0 %v1691, 32
      %v1750 = vpop.permute.xlu0 %1749
      %1751 = vrot.lane.b32.xlu0 %v1694, 32
      %v1752 = vpop.permute.xlu0 %1751
      %1753 = vrot.lane.b32.xlu0 %v1696, 32
      %v1754 = vpop.permute.xlu0 %1753
      %1771 = vrot.lane.b32.xlu0 %v1712, 64
      %v1772 = vpop.permute.xlu0 %1771
      %1773 = vrot.lane.b32.xlu0 %v1714, 64
      %v1774 = vpop.permute.xlu0 %1773
      %1775 = vrot.lane.b32.xlu0 %v1717, 64
      %v1776 = vpop.permute.xlu0 %1775
      %1777 = vrot.lane.b32.xlu0 %v1719, 64
      %v1778 = vpop.permute.xlu0 %1777
      %1779 = vrot.lane.b32.xlu0 %v1722, 64
      %v1780 = vpop.permute.xlu0 %1779
      %1781 = vrot.lane.b32.xlu0 %v1724, 64
      %v1782 = vpop.permute.xlu0 %1781
      %1783 = vrot.lane.b32.xlu0 %v1727, 64
      %v1784 = vpop.permute.xlu0 %1783
      %1785 = vrot.lane.b32.xlu0 %v1729, 64
      %v1786 = vpop.permute.xlu0 %1785
      %v1795 = vsel %vm1208, %v1625, %v1740
      %v1796 = vsel %vm1208, %v1626, %v1742
      %v1797 = vsel %vm1208, %v1627, %v1744
      %v1798 = vsel %vm1208, %v1628, %v1746
      %v1799 = vsel %vm1208, %v1629, %v1748
      %v1800 = vsel %vm1208, %v1630, %v1750
      %v1801 = vsel %vm1208, %v1631, %v1752
      %v1802 = vsel %vm1208, %v1632, %v1754
      %v1803 = vsel %vm1326, %v1795, %v1772
      %v1804 = vsel %vm1326, %v1796, %v1774
      %v1805 = vsel %vm1326, %v1797, %v1776
      %v1806 = vsel %vm1326, %v1798, %v1778
      %v1807 = vsel %vm1326, %v1799, %v1780
      %v1808 = vsel %vm1326, %v1800, %v1782
      %v1809 = vsel %vm1326, %v1801, %v1784
      %v1810 = vsel %vm1326, %v1802, %v1786
      %1817 = vrot.lane.b32.xlu0 %v1804, 96
      %v1818 = vpop.permute.xlu0 %1817
      %1819 = vrot.lane.b32.xlu0 %v1805, 96
      %v1820 = vpop.permute.xlu0 %1819
      %1821 = vrot.lane.b32.xlu0 %v1806, 96
      %v1822 = vpop.permute.xlu0 %1821
      %1823 = vrot.lane.b32.xlu0 %v1807, 96
      %v1824 = vpop.permute.xlu0 %1823
      %1825 = vrot.lane.b32.xlu0 %v1808, 96
      %v1826 = vpop.permute.xlu0 %1825
      %1827 = vrot.lane.b32.xlu0 %v1809, 96
      %v1828 = vpop.permute.xlu0 %1827
      %1836 = vrot.lane.b32.xlu0 %v1805, 64
      %v1837 = vpop.permute.xlu0 %1836
      %1838 = vrot.lane.b32.xlu0 %v1806, 64
      %v1839 = vpop.permute.xlu0 %1838
      %1840 = vrot.lane.b32.xlu0 %v1807, 64
      %v1841 = vpop.permute.xlu0 %1840
      %1842 = vrot.lane.b32.xlu0 %v1808, 64
      %v1843 = vpop.permute.xlu0 %1842
      %1844 = vrot.lane.b32.xlu0 %v1809, 64
      %v1845 = vpop.permute.xlu0 %1844
      %1846 = vrot.lane.b32.xlu0 %v1810, 64
      %v1847 = vpop.permute.xlu0 %1846
      %v1854 = vsel %vm1391, %v1803, %v1818
      %v1855 = vsel %vm1391, %v1804, %v1820
      %v1856 = vsel %vm1391, %v1805, %v1822
      %v1857 = vsel %vm1391, %v1806, %v1824
      %v1858 = vsel %vm1391, %v1807, %v1826
      %v1859 = vsel %vm1391, %v1808, %v1828
      %v1860 = vsel %vm1326, %v1818, %v1837
      %v1861 = vsel %vm1326, %v1820, %v1839
      %v1862 = vsel %vm1326, %v1822, %v1841
      %v1863 = vsel %vm1326, %v1824, %v1843
      %v1864 = vsel %vm1326, %v1826, %v1845
      %v1865 = vsel %vm1326, %v1828, %v1847
      %v1866 = vld [vmem:[%s19] sm:$0xf]
      %v1867 = vld [vmem:[%s19 + $0x4] sm:$0xf]
      %v1868 = vld [vmem:[%s19 + $0x8] sm:$0xf]
      %v1869 = vld [vmem:[%s19 + $0xc] sm:$0xf]
      %v1870 = vld [vmem:[%s19 + $0x10] sm:$0xf]
      %v1871 = vld [vmem:[%s19 + $0x14] sm:$0xf]
      %v1872 = vld [vmem:[%s19 + $0x18] sm:$0xf]
      %v1873 = vld [vmem:[%s19 + $0x1c] sm:$0xf]
      %v1874 = vld [vmem:[%s19 + $0x20] sm:$0xf]
      %v1875 = vld [vmem:[%s19 + $0x24] sm:$0xf]
      %v1876 = vld [vmem:[%s19 + $0x28] sm:$0xf]
      %v1877 = vld [vmem:[%s19 + $0x2c] sm:$0xf]
      %v1878 = vld [vmem:[%s19 + $0x30] sm:$0xf]
      %v1879 = vld [vmem:[%s19 + $0x34] sm:$0xf]
      %v1880 = vld [vmem:[%s19 + $0x38] sm:$0xf]
      %v1881 = vld [vmem:[%s19 + $0x3c] sm:$0xf]
      %v1882 = vld [vmem:[%s19 + $0x40] sm:$0xf]
      %v1883 = vld [vmem:[%s19 + $0x44] sm:$0xf]
      %v1884 = vld [vmem:[%s19 + $0x48] sm:$0xf]
      %v1885 = vld [vmem:[%s19 + $0x4c] sm:$0xf]
      %v1886 = vld [vmem:[%s19 + $0x50] sm:$0xf]
      %v1887 = vld [vmem:[%s19 + $0x54] sm:$0xf]
      %v1888 = vld [vmem:[%s19 + $0x58] sm:$0xf]
      %v1889 = vld [vmem:[%s19 + $0x5c] sm:$0xf]
      %v1890 = vld [vmem:[%s19 + $0x60] sm:$0xf]
      %v1891 = vld [vmem:[%s19 + $0x64] sm:$0xf]
      %v1892 = vld [vmem:[%s19 + $0x68] sm:$0xf]
      %v1893 = vld [vmem:[%s19 + $0x6c] sm:$0xf]
      %v1894 = vld [vmem:[%s19 + $0x70] sm:$0xf]
      %v1895 = vld [vmem:[%s19 + $0x74] sm:$0xf]
      %v1896 = vld [vmem:[%s19 + $0x78] sm:$0xf]
      %v1897 = vld [vmem:[%s19 + $0x7c] sm:$0xf]
      %v1898 = vld [vmem:[%s19 + $0x80] sm:$0xf]
      %v1899 = vld [vmem:[%s19 + $0x84] sm:$0xf]
      %v1900 = vld [vmem:[%s19 + $0x88] sm:$0xf]
      %v1901 = vld [vmem:[%s19 + $0x8c] sm:$0xf]
      %v1902 = vpack.c.bf16 %v1855, %v1854
      %v1903 = vpack.c.bf16 %v1861, %v1860
      %v1904 = vpack.c.bf16 %v1839, %v1837
      %v1905 = vpack.c.bf16 %v1857, %v1856
      %v1906 = vpack.c.bf16 %v1863, %v1862
      %v1907 = vpack.c.bf16 %v1843, %v1841
      %v1908 = vpack.c.bf16 %v1859, %v1858
      %v1909 = vpack.c.bf16 %v1865, %v1864
      %v1910 = vpack.c.bf16 %v1847, %v1845
      %v1911 = vld [vmem:[%s17] sm:$0x1]
      %v1913 = vperm.slane %v1911, 0
      %v1951 = vunpack.c.l.b16 %v1866
      %v1952 = vunpack.c.l.b16 %v1867
      %v1953 = vunpack.c.l.b16 %v1868
      %v1954 = vunpack.c.l.b16 %v1869
      %v1955 = vunpack.c.l.b16 %v1870
      %v1956 = vunpack.c.l.b16 %v1871
      %v1957 = vunpack.c.l.b16 %v1872
      %v1958 = vunpack.c.l.b16 %v1873
      %v1959 = vunpack.c.l.b16 %v1874
      %v1960 = vunpack.c.l.b16 %v1875
      %v1961 = vunpack.c.l.b16 %v1876
      %v1962 = vunpack.c.l.b16 %v1877
      %v1963 = vunpack.c.l.b16 %v1878
      %v1964 = vunpack.c.l.b16 %v1879
      %v1965 = vunpack.c.l.b16 %v1880
      %v1966 = vunpack.c.l.b16 %v1881
      %v1967 = vunpack.c.l.b16 %v1882
      %v1968 = vunpack.c.l.b16 %v1883
      %v1969 = vunpack.c.l.b16 %v1884
      %v1970 = vunpack.c.l.b16 %v1885
      %v1971 = vunpack.c.l.b16 %v1886
      %v1972 = vunpack.c.l.b16 %v1887
      %v1973 = vunpack.c.l.b16 %v1888
      %v1974 = vunpack.c.l.b16 %v1889
      %v1975 = vunpack.c.l.b16 %v1890
      %v1976 = vunpack.c.l.b16 %v1891
      %v1977 = vunpack.c.l.b16 %v1892
      %v1978 = vunpack.c.l.b16 %v1893
      %v1979 = vunpack.c.l.b16 %v1894
      %v1980 = vunpack.c.l.b16 %v1895
      %v1981 = vunpack.c.l.b16 %v1896
      %v1982 = vunpack.c.l.b16 %v1897
      %v1983 = vunpack.c.l.b16 %v1898
      %v1984 = vunpack.c.l.b16 %v1899
      %v1985 = vunpack.c.l.b16 %v1900
      %v1986 = vunpack.c.l.b16 %v1901
      %v1987 = vpack.c.b16 %v1952, %v1951
      %v1988 = vpack.c.b16 %v1954, %v1953
      %v1989 = vpack.c.b16 %v1956, %v1955
      %v1990 = vpack.c.b16 %v1958, %v1957
      %v1991 = vpack.c.b16 %v1960, %v1959
      %v1992 = vpack.c.b16 %v1962, %v1961
      %v1993 = vpack.c.b16 %v1964, %v1963
      %v1994 = vpack.c.b16 %v1966, %v1965
      %v1995 = vpack.c.b16 %v1968, %v1967
      %v1996 = vpack.c.b16 %v1970, %v1969
      %v1997 = vpack.c.b16 %v1972, %v1971
      %v1998 = vpack.c.b16 %v1974, %v1973
      %v1999 = vpack.c.b16 %v1976, %v1975
      %v2000 = vpack.c.b16 %v1978, %v1977
      %v2001 = vpack.c.b16 %v1980, %v1979
      %v2002 = vpack.c.b16 %v1982, %v1981
      %v2003 = vpack.c.b16 %v1984, %v1983
      %v2004 = vpack.c.b16 %v1986, %v1985
      %v2024 = vsel %vm1208, %v1904, 0
      %v2027 = vsel %vm1208, %v1907, 0
      %v2030 = vsel %vm1208, %v1910, 0
      %2032 = vmatpush.bf16.msra.mxu0 %v1994
      %2033 = vmatpush.bf16.msra.mxu0 %v1993
      %2034 = vmatpush.bf16.msra.mxu0 %v1992
      %2035 = vmatpush.bf16.msra.mxu0 %v1991
      %2036 = vmatpush.bf16.msra.mxu0 %v1990
      %2037 = vmatpush.bf16.msra.mxu0 %v1989
      %2038 = vmatpush.bf16.msra.mxu0 %v1988
      %2039 = vmatpush.bf16.msra.mxu0 %v1987
      %2040 = vmatmul.bf16.gmra.mxu0 %v1902
      %v2041 = vpop.f32.mrf.mxu0
      %v2042 = vadd.f32 %v1913, %v2041
      %v2043 = vpop.f32.mrf.mxu0
      %v2044 = vadd.f32 %v1913, %v2043
      %2045 = vmatmul.bf16.gmra.mxu0 %v1905
      %v2046 = vpop.f32.mrf.mxu0
      %v2047 = vadd.f32 %v1913, %v2046
      %v2048 = vpop.f32.mrf.mxu0
      %v2049 = vadd.f32 %v1913, %v2048
      %2050 = vmatmul.bf16.gmra.mxu0 %v1908
      %v2051 = vpop.f32.mrf.mxu0
      %v2052 = vadd.f32 %v1913, %v2051
      %v2053 = vpop.f32.mrf.mxu0
      %v2054 = vadd.f32 %v1913, %v2053
      %2055 = vdwg.mxu0
      %2056 = vmatpush.bf16.msra.mxu0 %v2002
      %2057 = vmatpush.bf16.msra.mxu0 %v2001
      %2058 = vmatpush.bf16.msra.mxu0 %v2000
      %2059 = vmatpush.bf16.msra.mxu0 %v1999
      %2060 = vmatpush.bf16.msra.mxu0 %v1998
      %2061 = vmatpush.bf16.msra.mxu0 %v1997
      %2062 = vmatpush.bf16.msra.mxu0 %v1996
      %2063 = vmatpush.bf16.msra.mxu0 %v1995
      %2064 = vmatmul.bf16.gmra.mxu0 %v1903
      %v2065 = vpop.f32.mrf.mxu0
      %v2066 = vadd.f32 %v2042, %v2065
      %v2067 = vpop.f32.mrf.mxu0
      %v2068 = vadd.f32 %v2044, %v2067
      %2069 = vmatmul.bf16.gmra.mxu0 %v1906
      %v2070 = vpop.f32.mrf.mxu0
      %v2071 = vadd.f32 %v2047, %v2070
      %v2072 = vpop.f32.mrf.mxu0
      %v2073 = vadd.f32 %v2049, %v2072
      %2074 = vmatmul.bf16.gmra.mxu0 %v1909
      %v2075 = vpop.f32.mrf.mxu0
      %v2076 = vadd.f32 %v2052, %v2075
      %v2077 = vpop.f32.mrf.mxu0
      %v2078 = vadd.f32 %v2054, %v2077
      %2079 = vdwg.mxu0
      %2080 = vmatpush.bf16.msra.mxu0 0
      %2081 = vmatpush.bf16.msra.mxu0 0
      %2082 = vmatpush.bf16.msra.mxu0 0
      %2083 = vmatpush.bf16.msra.mxu0 0
      %2084 = vmatpush.bf16.msra.mxu0 0
      %2085 = vmatpush.bf16.msra.mxu0 0
      %2086 = vmatpush.bf16.msra.mxu0 %v2004
      %2087 = vmatpush.bf16.msra.mxu0 %v2003
      %2088 = vmatmul.bf16.gmra.mxu0 %v2024
      %v2089 = vpop.f32.mrf.mxu0
      %v2090 = vadd.f32 %v2066, %v2089
      %v2091 = vpop.f32.mrf.mxu0
      %v2092 = vadd.f32 %v2068, %v2091
      %2093 = vmatmul.bf16.gmra.mxu0 %v2027
      %v2094 = vpop.f32.mrf.mxu0
      %v2095 = vadd.f32 %v2071, %v2094
      %v2096 = vpop.f32.mrf.mxu0
      %v2097 = vadd.f32 %v2073, %v2096
      %2098 = vmatmul.bf16.gmra.mxu0 %v2030
      %v2099 = vpop.f32.mrf.mxu0
      %v2100 = vadd.f32 %v2076, %v2099
      %v2101 = vpop.f32.mrf.mxu0
      %v2102 = vadd.f32 %v2078, %v2101
      %2103 = vdwg.mxu0
      %v2104 = vtanh.pop %v2090
      %v2105 = vtanh.pop %v2092
      %v2106 = vtanh.pop %v2095
      %v2107 = vtanh.pop %v2097
      %v2108 = vtanh.pop %v2100
      %v2109 = vtanh.pop %v2102
      %v2110 = vxor.u32 %v2090, 2147483648
      %v2111 = vxor.u32 %v2092, 2147483648
      %v2112 = vxor.u32 %v2095, 2147483648
      %v2113 = vxor.u32 %v2097, 2147483648
      %v2114 = vxor.u32 %v2100, 2147483648
      %v2115 = vxor.u32 %v2102, 2147483648
      %v2116 = vmul.f32 %v2110, 1.442695
      %v2117 = vpow.pop %v2116
      %v2118 = vmul.f32 %v2111, 1.442695
      %v2119 = vpow.pop %v2118
      %v2120 = vmul.f32 %v2112, 1.442695
      %v2121 = vpow.pop %v2120
      %v2122 = vmul.f32 %v2113, 1.442695
      %v2123 = vpow.pop %v2122
      %v2124 = vmul.f32 %v2114, 1.442695
      %v2125 = vpow.pop %v2124
      %v2126 = vmul.f32 %v2115, 1.442695
      %v2127 = vpow.pop %v2126
      %v2128 = vadd.f32 %v2117, 1.0
      %v2129 = vadd.f32 %v2119, 1.0
      %v2130 = vadd.f32 %v2121, 1.0
      %v2131 = vadd.f32 %v2123, 1.0
      %v2132 = vadd.f32 %v2125, 1.0
      %v2133 = vadd.f32 %v2127, 1.0
      %v2134 = vrcp.pop %v2128
      %v2135 = vmul.f32 %v2128, %v2134
      %v2136 = vsub.f32 1.0, %v2135
      %v2137 = vmul.f32 %v2134, %v2136
      %v2138 = vadd.f32 %v2134, %v2137
      %vm2139 = vweird.f32 %v2128
      %vm2140 = vweird.f32 %v2134
      %vm2141 = vmor %vm2139, %vm2140
      %v2142 = vsel %vm2141, %v2134, %v2138
      %v2143 = vand.u32 2147483647, %v2128
      %vm2144 = vcmp.eq.f32.partialorder %v2143, 8.507059e+37
      %v2145 = vand.u32 %v2128, 2147483648
      %v2146 = vor.u32 1.1754944e-38, %v2145
      %v2147 = vsel %vm2144, %v2146, %v2142
      %v2148 = vmul.f32 1.0, %v2147
      %v2149 = vrcp.pop %v2129
      %v2150 = vmul.f32 %v2129, %v2149
      %v2151 = vsub.f32 1.0, %v2150
      %v2152 = vmul.f32 %v2149, %v2151
      %v2153 = vadd.f32 %v2149, %v2152
      %vm2154 = vweird.f32 %v2129
      %vm2155 = vweird.f32 %v2149
      %vm2156 = vmor %vm2154, %vm2155
      %v2157 = vsel %vm2156, %v2149, %v2153
      %v2158 = vand.u32 2147483647, %v2129
      %vm2159 = vcmp.eq.f32.partialorder %v2158, 8.507059e+37
      %v2160 = vand.u32 %v2129, 2147483648
      %v2161 = vor.u32 1.1754944e-38, %v2160
      %v2162 = vsel %vm2159, %v2161, %v2157
      %v2163 = vmul.f32 1.0, %v2162
      %v2164 = vrcp.pop %v2130
      %v2165 = vmul.f32 %v2130, %v2164
      %v2166 = vsub.f32 1.0, %v2165
      %v2167 = vmul.f32 %v2164, %v2166
      %v2168 = vadd.f32 %v2164, %v2167
      %vm2169 = vweird.f32 %v2130
      %vm2170 = vweird.f32 %v2164
      %vm2171 = vmor %vm2169, %vm2170
      %v2172 = vsel %vm2171, %v2164, %v2168
      %v2173 = vand.u32 2147483647, %v2130
      %vm2174 = vcmp.eq.f32.partialorder %v2173, 8.507059e+37
      %v2175 = vand.u32 %v2130, 2147483648
      %v2176 = vor.u32 1.1754944e-38, %v2175
      %v2177 = vsel %vm2174, %v2176, %v2172
      %v2178 = vmul.f32 1.0, %v2177
      %v2179 = vrcp.pop %v2131
      %v2180 = vmul.f32 %v2131, %v2179
      %v2181 = vsub.f32 1.0, %v2180
      %v2182 = vmul.f32 %v2179, %v2181
      %v2183 = vadd.f32 %v2179, %v2182
      %vm2184 = vweird.f32 %v2131
      %vm2185 = vweird.f32 %v2179
      %vm2186 = vmor %vm2184, %vm2185
      %v2187 = vsel %vm2186, %v2179, %v2183
      %v2188 = vand.u32 2147483647, %v2131
      %vm2189 = vcmp.eq.f32.partialorder %v2188, 8.507059e+37
      %v2190 = vand.u32 %v2131, 2147483648
      %v2191 = vor.u32 1.1754944e-38, %v2190
      %v2192 = vsel %vm2189, %v2191, %v2187
      %v2193 = vmul.f32 1.0, %v2192
      %v2194 = vrcp.pop %v2132
      %v2195 = vmul.f32 %v2132, %v2194
      %v2196 = vsub.f32 1.0, %v2195
      %v2197 = vmul.f32 %v2194, %v2196
      %v2198 = vadd.f32 %v2194, %v2197
      %vm2199 = vweird.f32 %v2132
      %vm2200 = vweird.f32 %v2194
      %vm2201 = vmor %vm2199, %vm2200
      %v2202 = vsel %vm2201, %v2194, %v2198
      %v2203 = vand.u32 2147483647, %v2132
      %vm2204 = vcmp.eq.f32.partialorder %v2203, 8.507059e+37
      %v2205 = vand.u32 %v2132, 2147483648
      %v2206 = vor.u32 1.1754944e-38, %v2205
      %v2207 = vsel %vm2204, %v2206, %v2202
      %v2208 = vmul.f32 1.0, %v2207
      %v2209 = vrcp.pop %v2133
      %v2210 = vmul.f32 %v2133, %v2209
      %v2211 = vsub.f32 1.0, %v2210
      %v2212 = vmul.f32 %v2209, %v2211
      %v2213 = vadd.f32 %v2209, %v2212
      %vm2214 = vweird.f32 %v2133
      %vm2215 = vweird.f32 %v2209
      %vm2216 = vmor %vm2214, %vm2215
      %v2217 = vsel %vm2216, %v2209, %v2213
      %v2218 = vand.u32 2147483647, %v2133
      %vm2219 = vcmp.eq.f32.partialorder %v2218, 8.507059e+37
      %v2220 = vand.u32 %v2133, 2147483648
      %v2221 = vor.u32 1.1754944e-38, %v2220
      %v2222 = vsel %vm2219, %v2221, %v2217
      %v2223 = vmul.f32 1.0, %v2222
      %2230 = vrot.lane.b32.xlu0 %v2148, 96
      %v2231 = vpop.permute.xlu0 %2230
      %2232 = vrot.lane.b32.xlu0 %v2163, 96
      %v2233 = vpop.permute.xlu0 %2232
      %2234 = vrot.lane.b32.xlu0 %v2178, 96
      %v2235 = vpop.permute.xlu0 %2234
      %2236 = vrot.lane.b32.xlu0 %v2193, 96
      %v2237 = vpop.permute.xlu0 %2236
      %2238 = vrot.lane.b32.xlu0 %v2208, 96
      %v2239 = vpop.permute.xlu0 %2238
      %2240 = vrot.lane.b32.xlu0 %v2223, 96
      %v2241 = vpop.permute.xlu0 %2240
      %v2248 = vmul.f32 %v2104, %v2231
      %v2249 = vmul.f32 %v2105, %v2233
      %v2250 = vmul.f32 %v2106, %v2235
      %v2251 = vmul.f32 %v2107, %v2237
      %v2252 = vmul.f32 %v2108, %v2239
      %v2253 = vmul.f32 %v2109, %v2241
      %v2254 = vld [vmem:[%s13] sm:$0x1]
      %v2256 = vperm.slane %v2254, 0
      %v2258 = vmul.f32 %v2248, %v2256
      %v2259 = vmul.f32 %v2249, %v2256
      %v2260 = vmul.f32 %v2250, %v2256
      %v2261 = vmul.f32 %v2251, %v2256
      %v2262 = vmul.f32 %v2252, %v2256
      %v2263 = vmul.f32 %v2253, %v2256
      %v2264 = vsel %vm1208, %v2258, 0.0
      %2265 = vadd.xlane.f32.xlu0 %v2264
      %v2266 = vpop.xlane.xlu0 %2265
      %v2267 = vsel %vm1208, %v2259, 0.0
      %2268 = vadd.xlane.f32.xlu0 %v2267
      %v2269 = vpop.xlane.xlu0 %2268
      %v2270 = vsel %vm1208, %v2260, 0.0
      %2271 = vadd.xlane.f32.xlu0 %v2270
      %v2272 = vpop.xlane.xlu0 %2271
      %v2273 = vsel %vm1208, %v2261, 0.0
      %2274 = vadd.xlane.f32.xlu0 %v2273
      %v2275 = vpop.xlane.xlu0 %2274
      %v2276 = vsel %vm1208, %v2262, 0.0
      %2277 = vadd.xlane.f32.xlu0 %v2276
      %v2278 = vpop.xlane.xlu0 %2277
      %v2279 = vsel %vm1208, %v2263, 0.0
      %2280 = vadd.xlane.f32.xlu0 %v2279
      %v2281 = vpop.xlane.xlu0 %2280
      %v2282 = vld [vmem:[%s15] sm:$0xff]
      %2284 = vset.pattern.permute.xlu0 0
      %2285 = vperm.xlu0 %2284, %v2282
      %v2286 = vpop.permute.xlu0 %2285
      %v2288 = vmul.f32 %v2248, %v2286
      %v2289 = vmul.f32 %v2249, %v2286
      %v2290 = vmul.f32 %v2250, %v2286
      %v2291 = vmul.f32 %v2251, %v2286
      %v2292 = vmul.f32 %v2252, %v2286
      %v2293 = vmul.f32 %v2253, %v2286
      %v2294 = vsel %vm1208, %v2288, 0.0
      %v2295 = vrot.slane %v2294, 4
      %v2296 = vadd.f32 %v2294, %v2295
      %v2297 = vrot.slane %v2296, 2
      %v2298 = vadd.f32 %v2296, %v2297
      %v2299 = vrot.slane %v2298, 1
      %v2300 = vadd.f32 %v2298, %v2299
      %v2301 = vsel %vm1208, %v2289, 0.0
      %v2302 = vrot.slane %v2301, 4
      %v2303 = vadd.f32 %v2301, %v2302
      %v2304 = vrot.slane %v2303, 2
      %v2305 = vadd.f32 %v2303, %v2304
      %v2306 = vrot.slane %v2305, 1
      %v2307 = vadd.f32 %v2305, %v2306
      %v2308 = vsel %vm1208, %v2290, 0.0
      %v2309 = vrot.slane %v2308, 4
      %v2310 = vadd.f32 %v2308, %v2309
      %v2311 = vrot.slane %v2310, 2
      %v2312 = vadd.f32 %v2310, %v2311
      %v2313 = vrot.slane %v2312, 1
      %v2314 = vadd.f32 %v2312, %v2313
      %v2315 = vsel %vm1208, %v2291, 0.0
      %v2316 = vrot.slane %v2315, 4
      %v2317 = vadd.f32 %v2315, %v2316
      %v2318 = vrot.slane %v2317, 2
      %v2319 = vadd.f32 %v2317, %v2318
      %v2320 = vrot.slane %v2319, 1
      %v2321 = vadd.f32 %v2319, %v2320
      %v2322 = vsel %vm1208, %v2292, 0.0
      %v2323 = vrot.slane %v2322, 4
      %v2324 = vadd.f32 %v2322, %v2323
      %v2325 = vrot.slane %v2324, 2
      %v2326 = vadd.f32 %v2324, %v2325
      %v2327 = vrot.slane %v2326, 1
      %v2328 = vadd.f32 %v2326, %v2327
      %v2329 = vsel %vm1208, %v2293, 0.0
      %v2330 = vrot.slane %v2329, 4
      %v2331 = vadd.f32 %v2329, %v2330
      %v2332 = vrot.slane %v2331, 2
      %v2333 = vadd.f32 %v2331, %v2332
      %v2334 = vrot.slane %v2333, 1
      %v2335 = vadd.f32 %v2333, %v2334
      %v2336 = vld [vmem:[%s11] sm:$0xff]
      %v2343 = vlaneseq
      %v2344 = vand.u32 %v2343, 127
      %v2345 = vperm.slane %v2266, %v2344
      %v2346 = vperm.slane %v2269, %v2344
      %v2347 = vperm.slane %v2272, %v2344
      %v2348 = vperm.slane %v2275, %v2344
      %v2349 = vperm.slane %v2278, %v2344
      %v2350 = vperm.slane %v2281, %v2344
      %vm2351 = vcmask 1041409
      %v2352 = vsel %vm2351, %v2346, %v2345
      %vm2353 = vcmask 1042434
      %v2354 = vsel %vm2353, %v2347, %v2352
      %vm2355 = vcmask 1043459
      %v2356 = vsel %vm2355, %v2348, %v2354
      %vm2357 = vcmask 1044484
      %v2358 = vsel %vm2357, %v2349, %v2356
      %vm2359 = vcmask 1045509
      %v2360 = vsel %vm2359, %v2350, %v2358
      %vm2361 = vcmask 64512
      %v2362 = vsel %vm2361, %v2360, 0
      %2364 = vmatpush.msra.mxu0 0.0
      %2365 = vmatpush.msra.mxu0 0.0
      %2366 = vmatpush.msra.mxu0 0.0
      %2367 = vmatpush.msra.mxu0 0.0
      %2368 = vmatpush.msra.mxu0 0.0
      %2369 = vmatpush.msra.mxu0 0.0
      %2370 = vmatpush.msra.mxu0 0.0
      %2371 = vmatpush.msra.mxu0 0.0
      %2372 = vmatpush.msra.mxu0 0.0
      %2373 = vmatpush.msra.mxu0 0.0
      %2374 = vmatpush.msra.mxu0 0.0
      %2375 = vmatpush.msra.mxu0 0.0
      %2376 = vmatpush.msra.mxu0 0.0
      %2377 = vmatpush.msra.mxu0 0.0
      %2378 = vmatpush.msra.mxu0 0.0
      %2379 = vmatpush.msra.mxu0 %v2336
      %2380 = vmatmul.f32.gmra.mxu0 %v2362
      %v2381 = vpop.f32.mrf.mxu0
      %v2382 = vadd.f32 0.0, %v2381
      %2383 = vdwg.mxu0
      %v2384 = vld [vmem:[%s7] sm:$0x3f]
      %v2391 = vsel %vm2351, %v2307, %v2300
      %v2392 = vsel %vm2353, %v2314, %v2391
      %v2393 = vsel %vm2355, %v2321, %v2392
      %v2394 = vsel %vm2357, %v2328, %v2393
      %v2395 = vsel %vm2359, %v2335, %v2394
      %v2397 = vsel %vm1208, %v2382, 0
      %v2399 = vsel %vm1208, %v2395, 0
      %2401 = vmatpush.xpose.msra.mxu0 0.0
      %2402 = vmatpush.xpose.msra.mxu0 0.0
      %2403 = vmatpush.xpose.msra.mxu0 0.0
      %2404 = vmatpush.xpose.msra.mxu0 0.0
      %2405 = vmatpush.xpose.msra.mxu0 0.0
      %2406 = vmatpush.xpose.msra.mxu0 0.0
      %2407 = vmatpush.xpose.msra.mxu0 0.0
      %2408 = vmatpush.xpose.msra.mxu0 0.0
      %2409 = vmatpush.xpose.msra.mxu0 0.0
      %2410 = vmatpush.xpose.msra.mxu0 0.0
      %2411 = vmatpush.xpose.msra.mxu0 0.0
      %2412 = vmatpush.xpose.msra.mxu0 0.0
      %2413 = vmatpush.xpose.msra.mxu0 0.0
      %2414 = vmatpush.xpose.msra.mxu0 0.0
      %2415 = vmatpush.xpose.msra.mxu0 0.0
      %2416 = vmatpush.xpose.msra.mxu0 %v2399
      %2417 = vmatmul.f32.gmra.mxu0 %v2397
      %v2418 = vpop.f32.mrf.mxu0
      %v2419 = vadd.f32 %v2384, %v2418
      %2420 = vdwg.mxu0
      %v2421 = vxor.u32 %v2419, 2147483648
      %v2422 = vmul.f32 %v2421, 1.442695
      %v2423 = vpow.pop %v2422
      %v2424 = vadd.f32 %v2423, 1.0
      %v2425 = vrcp.pop %v2424
      %v2426 = vmul.f32 %v2424, %v2425
      %v2427 = vsub.f32 1.0, %v2426
      %v2428 = vmul.f32 %v2425, %v2427
      %v2429 = vadd.f32 %v2425, %v2428
      %vm2430 = vweird.f32 %v2424
      %vm2431 = vweird.f32 %v2425
      %vm2432 = vmor %vm2430, %vm2431
      %v2433 = vsel %vm2432, %v2425, %v2429
      %v2434 = vand.u32 2147483647, %v2424
      %vm2435 = vcmp.eq.f32.partialorder %v2434, 8.507059e+37
      %v2436 = vand.u32 %v2424, 2147483648
      %v2437 = vor.u32 1.1754944e-38, %v2436
      %v2438 = vsel %vm2435, %v2437, %v2433
      %v2439 = vmul.f32 1.0, %v2438
      %v2440 = vld [vmem:[%s9] sm:$0x3f]
      %vm2441 = vcmask 48128
      %v2443 = vsel %vm2441, %v2440, 0
      %vm2445 = vcmask 1045504
      %v2447 = vsel %vm2445, %v2439, 0
      %2449 = vmatpush.msra.mxu0 0.0
      %2450 = vmatpush.msra.mxu0 0.0
      %2451 = vmatpush.msra.mxu0 0.0
      %2452 = vmatpush.msra.mxu0 0.0
      %2453 = vmatpush.msra.mxu0 0.0
      %2454 = vmatpush.msra.mxu0 0.0
      %2455 = vmatpush.msra.mxu0 0.0
      %2456 = vmatpush.msra.mxu0 0.0
      %2457 = vmatpush.msra.mxu0 0.0
      %2458 = vmatpush.msra.mxu0 0.0
      %2459 = vmatpush.msra.mxu0 0.0
      %2460 = vmatpush.msra.mxu0 0.0
      %2461 = vmatpush.msra.mxu0 0.0
      %2462 = vmatpush.msra.mxu0 0.0
      %2463 = vmatpush.msra.mxu0 0.0
      %2464 = vmatpush.msra.mxu0 %v2447
      %2465 = vmatmul.f32.gmra.mxu0 %v2443
      %v2466 = vpop.f32.mrf.mxu0
      %v2467 = vadd.f32 0.0, %v2466
      %2468 = vdwg.mxu0
      %vm2469 = vcmask 46080
      %v2470 = vsel %vm2469, %v2467, -inf
      %2471 = vmax.xlane.f32.xlu0 %v2470
      %v2472 = vpop.xlane.xlu0 %2471
      %v2473 = vsub.f32 %v2467, %v2472
      %v2474 = vmul.f32 %v2473, 1.442695
      %v2475 = vpow.pop %v2474
      %v2476 = vsel %vm2469, %v2475, 0.0
      %2477 = vadd.xlane.f32.xlu0 %v2476
      %v2478 = vpop.xlane.xlu0 %2477
      %v2479 = vrcp.pop %v2478
      %v2480 = vmul.f32 %v2475, %v2479
      %v2482 = vrot.slane %v2480, 1
      %v2483 = vrot.slane %v2480, 2
      %v2484 = vrot.slane %v2480, 3
      %v2485 = vrot.slane %v2480, 4
      %v2486 = vrot.slane %v2480, 5
      %v2487 = vperm.slane %v2480, 0
      %v2488 = vperm.slane %v2482, 0
      %v2489 = vperm.slane %v2483, 0
      %v2490 = vperm.slane %v2484, 0
      %v2491 = vperm.slane %v2485, 0
      %v2492 = vperm.slane %v2486, 0
      %2493 = vset.pattern.permute.xlu0 0
      %2494 = vperm.xlu0 %2493, %v2487
      %v2495 = vpop.permute.xlu0 %2494
      %2497 = vset.pattern.permute.xlu0 0
      %2498 = vperm.xlu0 %2497, %v2488
      %v2499 = vpop.permute.xlu0 %2498
      %2501 = vset.pattern.permute.xlu0 0
      %2502 = vperm.xlu0 %2501, %v2489
      %v2503 = vpop.permute.xlu0 %2502
      %2505 = vset.pattern.permute.xlu0 0
      %2506 = vperm.xlu0 %2505, %v2490
      %v2507 = vpop.permute.xlu0 %2506
      %2509 = vset.pattern.permute.xlu0 0
      %2510 = vperm.xlu0 %2509, %v2491
      %v2511 = vpop.permute.xlu0 %2510
      %2513 = vset.pattern.permute.xlu0 0
      %2514 = vperm.xlu0 %2513, %v2492
      %v2515 = vpop.permute.xlu0 %2514
      %v2517 = vmul.f32 %v2495, %v2248
      %v2518 = vmul.f32 %v2499, %v2248
      %v2519 = vmul.f32 %v2503, %v2248
      %v2520 = vmul.f32 %v2507, %v2248
      %v2521 = vmul.f32 %v2511, %v2248
      %v2522 = vmul.f32 %v2515, %v2248
      %2523 = vset.pattern.permute.xlu0 1
      %2524 = vperm.xlu0 %2523, %v2487
      %v2525 = vpop.permute.xlu0 %2524
      %2527 = vset.pattern.permute.xlu0 1
      %2528 = vperm.xlu0 %2527, %v2488
      %v2529 = vpop.permute.xlu0 %2528
      %2531 = vset.pattern.permute.xlu0 1
      %2532 = vperm.xlu0 %2531, %v2489
      %v2533 = vpop.permute.xlu0 %2532
      %2535 = vset.pattern.permute.xlu0 1
      %2536 = vperm.xlu0 %2535, %v2490
      %v2537 = vpop.permute.xlu0 %2536
      %2539 = vset.pattern.permute.xlu0 1
      %2540 = vperm.xlu0 %2539, %v2491
      %v2541 = vpop.permute.xlu0 %2540
      %2543 = vset.pattern.permute.xlu0 1
      %2544 = vperm.xlu0 %2543, %v2492
      %v2545 = vpop.permute.xlu0 %2544
      %v2547 = vmul.f32 %v2525, %v2249
      %v2548 = vmul.f32 %v2529, %v2249
      %v2549 = vmul.f32 %v2533, %v2249
      %v2550 = vmul.f32 %v2537, %v2249
      %v2551 = vmul.f32 %v2541, %v2249
      %v2552 = vmul.f32 %v2545, %v2249
      %v2553 = vadd.f32 %v2517, %v2547
      %v2554 = vadd.f32 %v2518, %v2548
      %v2555 = vadd.f32 %v2519, %v2549
      %v2556 = vadd.f32 %v2520, %v2550
      %v2557 = vadd.f32 %v2521, %v2551
      %v2558 = vadd.f32 %v2522, %v2552
      %2559 = vset.pattern.permute.xlu0 2
      %2560 = vperm.xlu0 %2559, %v2487
      %v2561 = vpop.permute.xlu0 %2560
      %2563 = vset.pattern.permute.xlu0 2
      %2564 = vperm.xlu0 %2563, %v2488
      %v2565 = vpop.permute.xlu0 %2564
      %2567 = vset.pattern.permute.xlu0 2
      %2568 = vperm.xlu0 %2567, %v2489
      %v2569 = vpop.permute.xlu0 %2568
      %2571 = vset.pattern.permute.xlu0 2
      %2572 = vperm.xlu0 %2571, %v2490
      %v2573 = vpop.permute.xlu0 %2572
      %2575 = vset.pattern.permute.xlu0 2
      %2576 = vperm.xlu0 %2575, %v2491
      %v2577 = vpop.permute.xlu0 %2576
      %2579 = vset.pattern.permute.xlu0 2
      %2580 = vperm.xlu0 %2579, %v2492
      %v2581 = vpop.permute.xlu0 %2580
      %v2583 = vmul.f32 %v2561, %v2250
      %v2584 = vmul.f32 %v2565, %v2250
      %v2585 = vmul.f32 %v2569, %v2250
      %v2586 = vmul.f32 %v2573, %v2250
      %v2587 = vmul.f32 %v2577, %v2250
      %v2588 = vmul.f32 %v2581, %v2250
      %v2589 = vadd.f32 %v2553, %v2583
      %v2590 = vadd.f32 %v2554, %v2584
      %v2591 = vadd.f32 %v2555, %v2585
      %v2592 = vadd.f32 %v2556, %v2586
      %v2593 = vadd.f32 %v2557, %v2587
      %v2594 = vadd.f32 %v2558, %v2588
      %2595 = vset.pattern.permute.xlu0 3
      %2596 = vperm.xlu0 %2595, %v2487
      %v2597 = vpop.permute.xlu0 %2596
      %2599 = vset.pattern.permute.xlu0 3
      %2600 = vperm.xlu0 %2599, %v2488
      %v2601 = vpop.permute.xlu0 %2600
      %2603 = vset.pattern.permute.xlu0 3
      %2604 = vperm.xlu0 %2603, %v2489
      %v2605 = vpop.permute.xlu0 %2604
      %2607 = vset.pattern.permute.xlu0 3
      %2608 = vperm.xlu0 %2607, %v2490
      %v2609 = vpop.permute.xlu0 %2608
      %2611 = vset.pattern.permute.xlu0 3
      %2612 = vperm.xlu0 %2611, %v2491
      %v2613 = vpop.permute.xlu0 %2612
      %2615 = vset.pattern.permute.xlu0 3
      %2616 = vperm.xlu0 %2615, %v2492
      %v2617 = vpop.permute.xlu0 %2616
      %v2619 = vmul.f32 %v2597, %v2251
      %v2620 = vmul.f32 %v2601, %v2251
      %v2621 = vmul.f32 %v2605, %v2251
      %v2622 = vmul.f32 %v2609, %v2251
      %v2623 = vmul.f32 %v2613, %v2251
      %v2624 = vmul.f32 %v2617, %v2251
      %v2625 = vadd.f32 %v2589, %v2619
      %v2626 = vadd.f32 %v2590, %v2620
      %v2627 = vadd.f32 %v2591, %v2621
      %v2628 = vadd.f32 %v2592, %v2622
      %v2629 = vadd.f32 %v2593, %v2623
      %v2630 = vadd.f32 %v2594, %v2624
      %2631 = vset.pattern.permute.xlu0 4
      %2632 = vperm.xlu0 %2631, %v2487
      %v2633 = vpop.permute.xlu0 %2632
      %2635 = vset.pattern.permute.xlu0 4
      %2636 = vperm.xlu0 %2635, %v2488
      %v2637 = vpop.permute.xlu0 %2636
      %2639 = vset.pattern.permute.xlu0 4
      %2640 = vperm.xlu0 %2639, %v2489
      %v2641 = vpop.permute.xlu0 %2640
      %2643 = vset.pattern.permute.xlu0 4
      %2644 = vperm.xlu0 %2643, %v2490
      %v2645 = vpop.permute.xlu0 %2644
      %2647 = vset.pattern.permute.xlu0 4
      %2648 = vperm.xlu0 %2647, %v2491
      %v2649 = vpop.permute.xlu0 %2648
      %2651 = vset.pattern.permute.xlu0 4
      %2652 = vperm.xlu0 %2651, %v2492
      %v2653 = vpop.permute.xlu0 %2652
      %v2655 = vmul.f32 %v2633, %v2252
      %v2656 = vmul.f32 %v2637, %v2252
      %v2657 = vmul.f32 %v2641, %v2252
      %v2658 = vmul.f32 %v2645, %v2252
      %v2659 = vmul.f32 %v2649, %v2252
      %v2660 = vmul.f32 %v2653, %v2252
      %v2661 = vadd.f32 %v2625, %v2655
      %v2662 = vadd.f32 %v2626, %v2656
      %v2663 = vadd.f32 %v2627, %v2657
      %v2664 = vadd.f32 %v2628, %v2658
      %v2665 = vadd.f32 %v2629, %v2659
      %v2666 = vadd.f32 %v2630, %v2660
      %2667 = vset.pattern.permute.xlu0 5
      %2668 = vperm.xlu0 %2667, %v2487
      %v2669 = vpop.permute.xlu0 %2668
      %2671 = vset.pattern.permute.xlu0 5
      %2672 = vperm.xlu0 %2671, %v2488
      %v2673 = vpop.permute.xlu0 %2672
      %2675 = vset.pattern.permute.xlu0 5
      %2676 = vperm.xlu0 %2675, %v2489
      %v2677 = vpop.permute.xlu0 %2676
      %2679 = vset.pattern.permute.xlu0 5
      %2680 = vperm.xlu0 %2679, %v2490
      %v2681 = vpop.permute.xlu0 %2680
      %2683 = vset.pattern.permute.xlu0 5
      %2684 = vperm.xlu0 %2683, %v2491
      %v2685 = vpop.permute.xlu0 %2684
      %2687 = vset.pattern.permute.xlu0 5
      %2688 = vperm.xlu0 %2687, %v2492
      %v2689 = vpop.permute.xlu0 %2688
      %v2691 = vmul.f32 %v2669, %v2253
      %v2692 = vmul.f32 %v2673, %v2253
      %v2693 = vmul.f32 %v2677, %v2253
      %v2694 = vmul.f32 %v2681, %v2253
      %v2695 = vmul.f32 %v2685, %v2253
      %v2696 = vmul.f32 %v2689, %v2253
      %v2697 = vadd.f32 %v2661, %v2691
      %v2698 = vadd.f32 %v2662, %v2692
      %v2699 = vadd.f32 %v2663, %v2693
      %v2700 = vadd.f32 %v2664, %v2694
      %v2701 = vadd.f32 %v2665, %v2695
      %v2702 = vadd.f32 %v2666, %v2696
      %v2703 = vadd.f32 %v2697, %v1246
      %v2704 = vadd.f32 %v2698, %v1248
      %v2705 = vadd.f32 %v2699, %v1251
      %v2706 = vadd.f32 %v2700, %v1253
      %v2707 = vadd.f32 %v2701, %v1256
      %v2708 = vadd.f32 %v2702, %v1258
      %v2709 = vld [vmem:[%s61] sm:$0xff]
      %v2710 = vld [vmem:[%s61 + $0x8] sm:$0xff]
      %v2711 = vld [vmem:[%s61 + $0x10] sm:$0xff]
      %v2712 = vld [vmem:[%s61 + $0x18] sm:$0xff]
      %v2713 = vpack.c.bf16 %v2704, %v2703
      %v2714 = vpack.c.bf16 %v2706, %v2705
      %v2715 = vpack.c.bf16 %v2708, %v2707
      %v2716 = vld [vmem:[%s59] sm:$0x3]
      %v2718 = vperm.slane %v2716, 0
      %v2719 = vperm.slane %v2716, 1
      %v2726 = vunpack.c.l.b16 %v2709
      %v2727 = vunpack.c.h.b16 %v2709
      %v2728 = vunpack.c.l.b16 %v2710
      %v2729 = vunpack.c.h.b16 %v2710
      %v2730 = vunpack.c.l.b16 %v2711
      %v2731 = vunpack.c.h.b16 %v2711
      %v2732 = vunpack.c.l.b16 %v2712
      %v2733 = vunpack.c.h.b16 %v2712
      %v2734 = vpack.c.b16 %v2728, %v2726
      %v2735 = vpack.c.b16 %v2729, %v2727
      %v2736 = vpack.c.b16 %v2732, %v2730
      %v2737 = vpack.c.b16 %v2733, %v2731
      %v2743 = vsel %vm1208, %v2713, 0
      %v2746 = vsel %vm1208, %v2714, 0
      %v2749 = vsel %vm1208, %v2715, 0
      %2751 = vmatpush.bf16.msra.mxu0 0
      %2752 = vmatpush.bf16.msra.mxu0 0
      %2753 = vmatpush.bf16.msra.mxu0 0
      %2754 = vmatpush.bf16.msra.mxu0 0
      %2755 = vmatpush.bf16.msra.mxu0 0
      %2756 = vmatpush.bf16.msra.mxu0 0
      %2757 = vmatpush.bf16.msra.mxu0 %v2736
      %2758 = vmatpush.bf16.msra.mxu0 %v2734
      %2759 = vmatmul.bf16.gmra.mxu0 %v2743
      %v2760 = vpop.f32.mrf.mxu0
      %v2761 = vpop.f32.mrf.mxu0
      %2762 = vmatmul.bf16.gmra.mxu0 %v2746
      %v2763 = vpop.f32.mrf.mxu0
      %v2764 = vpop.f32.mrf.mxu0
      %v2765 = vadd.f32 %v2718, %v2764
      %2766 = vmatmul.bf16.gmra.mxu0 %v2749
      %v2767 = vpop.f32.mrf.mxu0
      %v2768 = vadd.f32 %v2718, %v2767
      %v2769 = vpop.f32.mrf.mxu0
      %v2770 = vadd.f32 %v2718, %v2769
      %2771 = vdwg.mxu0
      %2772 = vmatpush.bf16.msra.mxu0 0
      %2773 = vmatpush.bf16.msra.mxu0 0
      %2774 = vmatpush.bf16.msra.mxu0 0
      %2775 = vmatpush.bf16.msra.mxu0 0
      %2776 = vmatpush.bf16.msra.mxu0 0
      %2777 = vmatpush.bf16.msra.mxu0 0
      %2778 = vmatpush.bf16.msra.mxu0 %v2737
      %2779 = vmatpush.bf16.msra.mxu0 %v2735
      %2780 = vmatmul.bf16.gmra.mxu0 %v2743
      %v2781 = vpop.f32.mrf.mxu0
      %v2782 = vpop.f32.mrf.mxu0
      %2783 = vmatmul.bf16.gmra.mxu0 %v2746
      %v2784 = vpop.f32.mrf.mxu0
      %v2785 = vpop.f32.mrf.mxu0
      %v2786 = vadd.f32 %v2719, %v2785
      %2787 = vmatmul.bf16.gmra.mxu0 %v2749
      %v2788 = vpop.f32.mrf.mxu0
      %v2789 = vadd.f32 %v2719, %v2788
      %v2790 = vpop.f32.mrf.mxu0
      %v2791 = vadd.f32 %v2719, %v2790
      %2792 = vdwg.mxu0
      %v2793 = vld [vmem:[%s5] sm:$0xf]
      %v2794 = vld [vmem:[%s5 + $0x4] sm:$0xf]
      %v2795 = vld [vmem:[%s5 + $0x8] sm:$0xf]
      %v2796 = vld [vmem:[%s5 + $0xc] sm:$0xf]
      %v2797 = vld [vmem:[%s45] sm:$0xf]
      %v2798 = vld [vmem:[%s45 + $0x4] sm:$0xf]
      %v2799 = vld [vmem:[%s45 + $0x8] sm:$0xf]
      %v2800 = vld [vmem:[%s45 + $0xc] sm:$0xf]
      %v2801 = vld [vmem:[%s43] sm:$0x1]
      %v2803 = vperm.slane %v2801, 0
      %v2809 = vunpack.c.l.b16 %v2797
      %v2810 = vunpack.c.l.b16 %v2798
      %v2811 = vunpack.c.l.b16 %v2799
      %v2812 = vunpack.c.l.b16 %v2800
      %v2813 = vpack.c.b16 %v2810, %v2809
      %v2814 = vpack.c.b16 %v2812, %v2811
      %2817 = vmatpush.bf16.msra.mxu0 0
      %2818 = vmatpush.bf16.msra.mxu0 0
      %2819 = vmatpush.bf16.msra.mxu0 0
      %2820 = vmatpush.bf16.msra.mxu0 0
      %2821 = vmatpush.bf16.msra.mxu0 0
      %2822 = vmatpush.bf16.msra.mxu0 0
      %2823 = vmatpush.bf16.msra.mxu0 %v2814
      %2824 = vmatpush.bf16.msra.mxu0 %v2813
      %2825 = vmatmul.bf16.gmra.mxu0 %v2743
      %v2826 = vpop.f32.mrf.mxu0
      %v2827 = vpop.f32.mrf.mxu0
      %2828 = vmatmul.bf16.gmra.mxu0 %v2746
      %v2829 = vpop.f32.mrf.mxu0
      %v2830 = vpop.f32.mrf.mxu0
      %v2831 = vadd.f32 %v2803, %v2830
      %2832 = vmatmul.bf16.gmra.mxu0 %v2749
      %v2833 = vpop.f32.mrf.mxu0
      %v2834 = vadd.f32 %v2803, %v2833
      %v2835 = vpop.f32.mrf.mxu0
      %v2836 = vadd.f32 %v2803, %v2835
      %2837 = vdwg.mxu0
      %2842 = vrot.lane.b32.xlu0 %v2705, 32
      %v2843 = vpop.permute.xlu0 %2842
      %2844 = vrot.lane.b32.xlu0 %v2706, 32
      %v2845 = vpop.permute.xlu0 %2844
      %2846 = vrot.lane.b32.xlu0 %v2707, 32
      %v2847 = vpop.permute.xlu0 %2846
      %2848 = vrot.lane.b32.xlu0 %v2708, 32
      %v2849 = vpop.permute.xlu0 %2848
      %v2854 = vsel %vm1208, %v2703, %v2843
      %v2855 = vsel %vm1208, %v2704, %v2845
      %v2856 = vsel %vm1208, %v2705, %v2847
      %v2857 = vsel %vm1208, %v2706, %v2849
      %v2858 = vld [vmem:[%s49] sm:$0xf]
      %v2859 = vld [vmem:[%s49 + $0x4] sm:$0xf]
      %v2860 = vld [vmem:[%s49 + $0x8] sm:$0xf]
      %v2861 = vld [vmem:[%s49 + $0xc] sm:$0xf]
      %v2862 = vld [vmem:[%s49 + $0x10] sm:$0xf]
      %v2863 = vld [vmem:[%s49 + $0x14] sm:$0xf]
      %v2864 = vld [vmem:[%s49 + $0x18] sm:$0xf]
      %v2865 = vld [vmem:[%s49 + $0x1c] sm:$0xf]
      %v2866 = vpack.c.bf16 %v2855, %v2854
      %v2867 = vpack.c.bf16 %v2857, %v2856
      %v2868 = vld [vmem:[%s47] sm:$0x1]
      %v2870 = vperm.slane %v2868, 0
      %v2880 = vunpack.c.l.b16 %v2858
      %v2881 = vunpack.c.l.b16 %v2859
      %v2882 = vunpack.c.l.b16 %v2860
      %v2883 = vunpack.c.l.b16 %v2861
      %v2884 = vunpack.c.l.b16 %v2862
      %v2885 = vunpack.c.l.b16 %v2863
      %v2886 = vunpack.c.l.b16 %v2864
      %v2887 = vunpack.c.l.b16 %v2865
      %v2888 = vpack.c.b16 %v2881, %v2880
      %v2889 = vpack.c.b16 %v2883, %v2882
      %v2890 = vpack.c.b16 %v2885, %v2884
      %v2891 = vpack.c.b16 %v2887, %v2886
      %v2897 = vsel %vm1326, %v2866, 0
      %v2900 = vsel %vm1326, %v2867, 0
      %2902 = vmatpush.bf16.msra.mxu0 0
      %2903 = vmatpush.bf16.msra.mxu0 0
      %2904 = vmatpush.bf16.msra.mxu0 0
      %2905 = vmatpush.bf16.msra.mxu0 0
      %2906 = vmatpush.bf16.msra.mxu0 %v2891
      %2907 = vmatpush.bf16.msra.mxu0 %v2890
      %2908 = vmatpush.bf16.msra.mxu0 %v2889
      %2909 = vmatpush.bf16.msra.mxu0 %v2888
      %2910 = vmatmul.bf16.gmra.mxu0 %v2897
      %v2911 = vpop.f32.mrf.mxu0
      %v2912 = vadd.f32 %v2870, %v2911
      %v2913 = vpop.f32.mrf.mxu0
      %v2914 = vadd.f32 %v2870, %v2913
      %2915 = vmatmul.bf16.gmra.mxu0 %v2900
      %v2916 = vpop.f32.mrf.mxu0
      %v2917 = vadd.f32 %v2870, %v2916
      %v2918 = vpop.f32.mrf.mxu0
      %v2919 = vadd.f32 %v2870, %v2918
      %2920 = vdwg.mxu0
      %v2921 = vtanh.pop %v2912
      %v2922 = vtanh.pop %v2914
      %v2923 = vtanh.pop %v2917
      %v2924 = vtanh.pop %v2919
      %v2925 = vxor.u32 %v2912, 2147483648
      %v2926 = vxor.u32 %v2914, 2147483648
      %v2927 = vxor.u32 %v2917, 2147483648
      %v2928 = vxor.u32 %v2919, 2147483648
      %v2929 = vmul.f32 %v2925, 1.442695
      %v2930 = vpow.pop %v2929
      %v2931 = vmul.f32 %v2926, 1.442695
      %v2932 = vpow.pop %v2931
      %v2933 = vmul.f32 %v2927, 1.442695
      %v2934 = vpow.pop %v2933
      %v2935 = vmul.f32 %v2928, 1.442695
      %v2936 = vpow.pop %v2935
      %v2937 = vadd.f32 %v2930, 1.0
      %v2938 = vadd.f32 %v2932, 1.0
      %v2939 = vadd.f32 %v2934, 1.0
      %v2940 = vadd.f32 %v2936, 1.0
      %v2941 = vrcp.pop %v2937
      %v2942 = vmul.f32 %v2937, %v2941
      %v2943 = vsub.f32 1.0, %v2942
      %v2944 = vmul.f32 %v2941, %v2943
      %v2945 = vadd.f32 %v2941, %v2944
      %vm2946 = vweird.f32 %v2937
      %vm2947 = vweird.f32 %v2941
      %vm2948 = vmor %vm2946, %vm2947
      %v2949 = vsel %vm2948, %v2941, %v2945
      %v2950 = vand.u32 2147483647, %v2937
      %vm2951 = vcmp.eq.f32.partialorder %v2950, 8.507059e+37
      %v2952 = vand.u32 %v2937, 2147483648
      %v2953 = vor.u32 1.1754944e-38, %v2952
      %v2954 = vsel %vm2951, %v2953, %v2949
      %v2955 = vmul.f32 1.0, %v2954
      %v2956 = vrcp.pop %v2938
      %v2957 = vmul.f32 %v2938, %v2956
      %v2958 = vsub.f32 1.0, %v2957
      %v2959 = vmul.f32 %v2956, %v2958
      %v2960 = vadd.f32 %v2956, %v2959
      %vm2961 = vweird.f32 %v2938
      %vm2962 = vweird.f32 %v2956
      %vm2963 = vmor %vm2961, %vm2962
      %v2964 = vsel %vm2963, %v2956, %v2960
      %v2965 = vand.u32 2147483647, %v2938
      %vm2966 = vcmp.eq.f32.partialorder %v2965, 8.507059e+37
      %v2967 = vand.u32 %v2938, 2147483648
      %v2968 = vor.u32 1.1754944e-38, %v2967
      %v2969 = vsel %vm2966, %v2968, %v2964
      %v2970 = vmul.f32 1.0, %v2969
      %v2971 = vrcp.pop %v2939
      %v2972 = vmul.f32 %v2939, %v2971
      %v2973 = vsub.f32 1.0, %v2972
      %v2974 = vmul.f32 %v2971, %v2973
      %v2975 = vadd.f32 %v2971, %v2974
      %vm2976 = vweird.f32 %v2939
      %vm2977 = vweird.f32 %v2971
      %vm2978 = vmor %vm2976, %vm2977
      %v2979 = vsel %vm2978, %v2971, %v2975
      %v2980 = vand.u32 2147483647, %v2939
      %vm2981 = vcmp.eq.f32.partialorder %v2980, 8.507059e+37
      %v2982 = vand.u32 %v2939, 2147483648
      %v2983 = vor.u32 1.1754944e-38, %v2982
      %v2984 = vsel %vm2981, %v2983, %v2979
      %v2985 = vmul.f32 1.0, %v2984
      %v2986 = vrcp.pop %v2940
      %v2987 = vmul.f32 %v2940, %v2986
      %v2988 = vsub.f32 1.0, %v2987
      %v2989 = vmul.f32 %v2986, %v2988
      %v2990 = vadd.f32 %v2986, %v2989
      %vm2991 = vweird.f32 %v2940
      %vm2992 = vweird.f32 %v2986
      %vm2993 = vmor %vm2991, %vm2992
      %v2994 = vsel %vm2993, %v2986, %v2990
      %v2995 = vand.u32 2147483647, %v2940
      %vm2996 = vcmp.eq.f32.partialorder %v2995, 8.507059e+37
      %v2997 = vand.u32 %v2940, 2147483648
      %v2998 = vor.u32 1.1754944e-38, %v2997
      %v2999 = vsel %vm2996, %v2998, %v2994
      %v3000 = vmul.f32 1.0, %v2999
      %3005 = vrot.lane.b32.xlu0 %v2955, 96
      %v3006 = vpop.permute.xlu0 %3005
      %3007 = vrot.lane.b32.xlu0 %v2970, 96
      %v3008 = vpop.permute.xlu0 %3007
      %3009 = vrot.lane.b32.xlu0 %v2985, 96
      %v3010 = vpop.permute.xlu0 %3009
      %3011 = vrot.lane.b32.xlu0 %v3000, 96
      %v3012 = vpop.permute.xlu0 %3011
      %v3017 = vmul.f32 %v2921, %v3006
      %v3018 = vmul.f32 %v2922, %v3008
      %v3019 = vmul.f32 %v2923, %v3010
      %v3020 = vmul.f32 %v2924, %v3012
      %v3021 = vpack.c.bf16 %v3018, %v3017
      %v3022 = vpack.c.bf16 %v3020, %v3019
      %v3027 = vunpack.c.l.b16 %v2793
      %v3028 = vunpack.c.l.b16 %v2794
      %v3029 = vunpack.c.l.b16 %v2795
      %v3030 = vunpack.c.l.b16 %v2796
      %v3031 = vpack.c.b16 %v3028, %v3027
      %v3032 = vpack.c.b16 %v3030, %v3029
      %v3034 = vsel %vm1208, %v3031, 0
      %v3037 = vsel %vm1208, %v3032, 0
      %3039 = vmatpush.bf16.msra.mxu0 0
      %3040 = vmatpush.bf16.msra.mxu0 0
      %3041 = vmatpush.bf16.msra.mxu0 0
      %3042 = vmatpush.bf16.msra.mxu0 0
      %3043 = vmatpush.bf16.msra.mxu0 0
      %3044 = vmatpush.bf16.msra.mxu0 0
      %3045 = vmatpush.bf16.msra.mxu0 %v3022
      %3046 = vmatpush.bf16.msra.mxu0 %v3021
      %3047 = vmatmul.bf16.gmra.mxu0 %v3034
      %v3048 = vpop.f32.mrf.mxu0
      %v3049 = vadd.f32 0.0, %v3048
      %v3050 = vpop.f32.mrf.mxu0
      %v3051 = vadd.f32 0.0, %v3050
      %3052 = vmatmul.bf16.gmra.mxu0 %v3037
      %v3053 = vpop.f32.mrf.mxu0
      %v3054 = vadd.f32 0.0, %v3053
      %v3055 = vpop.f32.mrf.mxu0
      %v3056 = vadd.f32 0.0, %v3055
      %3057 = vdwg.mxu0
      %v3058 = vpack.c.bf16 %v3051, %v3049
      %v3059 = vpack.c.bf16 %v3056, %v3054
      %3060 = vmatpush.bf16.msra.mxu0 0
      %3061 = vmatpush.bf16.msra.mxu0 0
      %3062 = vmatpush.bf16.msra.mxu0 0
      %3063 = vmatpush.bf16.msra.mxu0 0
      %3064 = vmatpush.bf16.msra.mxu0 0
      %3065 = vmatpush.bf16.msra.mxu0 0
      %3066 = vmatpush.bf16.msra.mxu0 %v3059
      %3067 = vmatpush.bf16.msra.mxu0 %v3058
      %3068 = vmatmul.bf16.gmra.mxu0 %v3034
      %v3069 = vpop.f32.mrf.mxu0
      %v3070 = vadd.f32 0.0, %v3069
      %v3071 = vpop.f32.mrf.mxu0
      %v3072 = vadd.f32 0.0, %v3071
      %3073 = vmatmul.bf16.gmra.mxu0 %v3037
      %v3074 = vpop.f32.mrf.mxu0
      %v3075 = vadd.f32 0.0, %v3074
      %v3076 = vpop.f32.mrf.mxu0
      %v3077 = vadd.f32 0.0, %v3076
      %3078 = vdwg.mxu0
      %3083 = vrot.lane.b32.xlu0 %v3049, 32
      %v3084 = vpop.permute.xlu0 %3083
      %3085 = vrot.lane.b32.xlu0 %v3051, 32
      %v3086 = vpop.permute.xlu0 %3085
      %3087 = vrot.lane.b32.xlu0 %v3054, 32
      %v3088 = vpop.permute.xlu0 %3087
      %3089 = vrot.lane.b32.xlu0 %v3056, 32
      %v3090 = vpop.permute.xlu0 %3089
      %3099 = vrot.lane.b32.xlu0 %v3070, 64
      %v3100 = vpop.permute.xlu0 %3099
      %3101 = vrot.lane.b32.xlu0 %v3072, 64
      %v3102 = vpop.permute.xlu0 %3101
      %3103 = vrot.lane.b32.xlu0 %v3075, 64
      %v3104 = vpop.permute.xlu0 %3103
      %3105 = vrot.lane.b32.xlu0 %v3077, 64
      %v3106 = vpop.permute.xlu0 %3105
      %v3111 = vsel %vm1208, %v3017, %v3084
      %v3112 = vsel %vm1208, %v3018, %v3086
      %v3113 = vsel %vm1208, %v3019, %v3088
      %v3114 = vsel %vm1208, %v3020, %v3090
      %v3115 = vsel %vm1326, %v3111, %v3100
      %v3116 = vsel %vm1326, %v3112, %v3102
      %v3117 = vsel %vm1326, %v3113, %v3104
      %v3118 = vsel %vm1326, %v3114, %v3106
      %3122 = vrot.lane.b32.xlu0 %v3116, 96
      %v3123 = vpop.permute.xlu0 %3122
      %3124 = vrot.lane.b32.xlu0 %v3117, 96
      %v3125 = vpop.permute.xlu0 %3124
      %3126 = vrot.lane.b32.xlu0 %v3118, 96
      %v3127 = vpop.permute.xlu0 %3126
      %v3131 = vsel %vm1391, %v3115, %v3123
      %v3132 = vsel %vm1391, %v3116, %v3125
      %v3133 = vsel %vm1391, %v3117, %v3127
      %v3134 = vld [vmem:[%s41] sm:$0xf]
      %v3135 = vld [vmem:[%s41 + $0x4] sm:$0xf]
      %v3136 = vld [vmem:[%s41 + $0x8] sm:$0xf]
      %v3137 = vld [vmem:[%s41 + $0xc] sm:$0xf]
      %v3138 = vld [vmem:[%s41 + $0x10] sm:$0xf]
      %v3139 = vld [vmem:[%s41 + $0x14] sm:$0xf]
      %v3140 = vld [vmem:[%s41 + $0x18] sm:$0xf]
      %v3141 = vld [vmem:[%s41 + $0x1c] sm:$0xf]
      %v3142 = vld [vmem:[%s41 + $0x20] sm:$0xf]
      %v3143 = vld [vmem:[%s41 + $0x24] sm:$0xf]
      %v3144 = vld [vmem:[%s41 + $0x28] sm:$0xf]
      %v3145 = vld [vmem:[%s41 + $0x2c] sm:$0xf]
      %v3146 = vld [vmem:[%s41 + $0x30] sm:$0xf]
      %v3147 = vld [vmem:[%s41 + $0x34] sm:$0xf]
      %v3148 = vld [vmem:[%s41 + $0x38] sm:$0xf]
      %v3149 = vld [vmem:[%s41 + $0x3c] sm:$0xf]
      %v3150 = vld [vmem:[%s41 + $0x40] sm:$0xf]
      %v3151 = vld [vmem:[%s41 + $0x44] sm:$0xf]
      %v3152 = vld [vmem:[%s41 + $0x48] sm:$0xf]
      %v3153 = vld [vmem:[%s41 + $0x4c] sm:$0xf]
      %v3154 = vld [vmem:[%s41 + $0x50] sm:$0xf]
      %v3155 = vld [vmem:[%s41 + $0x54] sm:$0xf]
      %v3156 = vld [vmem:[%s41 + $0x58] sm:$0xf]
      %v3157 = vld [vmem:[%s41 + $0x5c] sm:$0xf]
      %v3158 = vpack.c.bf16 %v3132, %v3131
      %v3159 = vpack.c.bf16 %v3125, %v3123
      %v3160 = vpack.c.bf16 %v3133, %v3133
      %v3161 = vpack.c.bf16 %v3127, %v3127
      %v3162 = vld [vmem:[%s39] sm:$0x1]
      %v3164 = vperm.slane %v3162, 0
      %v3190 = vunpack.c.l.b16 %v3134
      %v3191 = vunpack.c.l.b16 %v3135
      %v3192 = vunpack.c.l.b16 %v3136
      %v3193 = vunpack.c.l.b16 %v3137
      %v3194 = vunpack.c.l.b16 %v3138
      %v3195 = vunpack.c.l.b16 %v3139
      %v3196 = vunpack.c.l.b16 %v3140
      %v3197 = vunpack.c.l.b16 %v3141
      %v3198 = vunpack.c.l.b16 %v3142
      %v3199 = vunpack.c.l.b16 %v3143
      %v3200 = vunpack.c.l.b16 %v3144
      %v3201 = vunpack.c.l.b16 %v3145
      %v3202 = vunpack.c.l.b16 %v3146
      %v3203 = vunpack.c.l.b16 %v3147
      %v3204 = vunpack.c.l.b16 %v3148
      %v3205 = vunpack.c.l.b16 %v3149
      %v3206 = vunpack.c.l.b16 %v3150
      %v3207 = vunpack.c.l.b16 %v3151
      %v3208 = vunpack.c.l.b16 %v3152
      %v3209 = vunpack.c.l.b16 %v3153
      %v3210 = vunpack.c.l.b16 %v3154
      %v3211 = vunpack.c.l.b16 %v3155
      %v3212 = vunpack.c.l.b16 %v3156
      %v3213 = vunpack.c.l.b16 %v3157
      %v3214 = vpack.c.b16 %v3191, %v3190
      %v3215 = vpack.c.b16 %v3193, %v3192
      %v3216 = vpack.c.b16 %v3195, %v3194
      %v3217 = vpack.c.b16 %v3197, %v3196
      %v3218 = vpack.c.b16 %v3199, %v3198
      %v3219 = vpack.c.b16 %v3201, %v3200
      %v3220 = vpack.c.b16 %v3203, %v3202
      %v3221 = vpack.c.b16 %v3205, %v3204
      %v3222 = vpack.c.b16 %v3207, %v3206
      %v3223 = vpack.c.b16 %v3209, %v3208
      %v3224 = vpack.c.b16 %v3211, %v3210
      %v3225 = vpack.c.b16 %v3213, %v3212
      %v3239 = vsel %vm1326, %v3159, 0
      %v3242 = vsel %vm1326, %v3161, 0
      %3244 = vmatpush.bf16.msra.mxu0 %v3221
      %3245 = vmatpush.bf16.msra.mxu0 %v3220
      %3246 = vmatpush.bf16.msra.mxu0 %v3219
      %3247 = vmatpush.bf16.msra.mxu0 %v3218
      %3248 = vmatpush.bf16.msra.mxu0 %v3217
      %3249 = vmatpush.bf16.msra.mxu0 %v3216
      %3250 = vmatpush.bf16.msra.mxu0 %v3215
      %3251 = vmatpush.bf16.msra.mxu0 %v3214
      %3252 = vmatmul.bf16.gmra.mxu0 %v3158
      %v3253 = vpop.f32.mrf.mxu0
      %v3254 = vadd.f32 %v3164, %v3253
      %v3255 = vpop.f32.mrf.mxu0
      %v3256 = vadd.f32 %v3164, %v3255
      %3257 = vmatmul.bf16.gmra.mxu0 %v3160
      %v3258 = vpop.f32.mrf.mxu0
      %v3259 = vadd.f32 %v3164, %v3258
      %v3260 = vpop.f32.mrf.mxu0
      %3261 = vdwg.mxu0
      %3262 = vmatpush.bf16.msra.mxu0 0
      %3263 = vmatpush.bf16.msra.mxu0 0
      %3264 = vmatpush.bf16.msra.mxu0 0
      %3265 = vmatpush.bf16.msra.mxu0 0
      %3266 = vmatpush.bf16.msra.mxu0 %v3225
      %3267 = vmatpush.bf16.msra.mxu0 %v3224
      %3268 = vmatpush.bf16.msra.mxu0 %v3223
      %3269 = vmatpush.bf16.msra.mxu0 %v3222
      %3270 = vmatmul.bf16.gmra.mxu0 %v3239
      %v3271 = vpop.f32.mrf.mxu0
      %v3272 = vadd.f32 %v3254, %v3271
      %v3273 = vpop.f32.mrf.mxu0
      %v3274 = vadd.f32 %v3256, %v3273
      %3275 = vmatmul.bf16.gmra.mxu0 %v3242
      %v3276 = vpop.f32.mrf.mxu0
      %v3277 = vadd.f32 %v3259, %v3276
      %v3278 = vpop.f32.mrf.mxu0
      %3279 = vdwg.mxu0
      %v3280 = vtanh.pop %v3272
      %v3281 = vtanh.pop %v3274
      %v3282 = vtanh.pop %v3277
      %v3283 = vxor.u32 %v3272, 2147483648
      %v3284 = vxor.u32 %v3274, 2147483648
      %v3285 = vxor.u32 %v3277, 2147483648
      %v3286 = vmul.f32 %v3283, 1.442695
      %v3287 = vpow.pop %v3286
      %v3288 = vmul.f32 %v3284, 1.442695
      %v3289 = vpow.pop %v3288
      %v3290 = vmul.f32 %v3285, 1.442695
      %v3291 = vpow.pop %v3290
      %v3292 = vadd.f32 %v3287, 1.0
      %v3293 = vadd.f32 %v3289, 1.0
      %v3294 = vadd.f32 %v3291, 1.0
      %v3295 = vrcp.pop %v3292
      %v3296 = vmul.f32 %v3292, %v3295
      %v3297 = vsub.f32 1.0, %v3296
      %v3298 = vmul.f32 %v3295, %v3297
      %v3299 = vadd.f32 %v3295, %v3298
      %vm3300 = vweird.f32 %v3292
      %vm3301 = vweird.f32 %v3295
      %vm3302 = vmor %vm3300, %vm3301
      %v3303 = vsel %vm3302, %v3295, %v3299
      %v3304 = vand.u32 2147483647, %v3292
      %vm3305 = vcmp.eq.f32.partialorder %v3304, 8.507059e+37
      %v3306 = vand.u32 %v3292, 2147483648
      %v3307 = vor.u32 1.1754944e-38, %v3306
      %v3308 = vsel %vm3305, %v3307, %v3303
      %v3309 = vmul.f32 1.0, %v3308
      %v3310 = vrcp.pop %v3293
      %v3311 = vmul.f32 %v3293, %v3310
      %v3312 = vsub.f32 1.0, %v3311
      %v3313 = vmul.f32 %v3310, %v3312
      %v3314 = vadd.f32 %v3310, %v3313
      %vm3315 = vweird.f32 %v3293
      %vm3316 = vweird.f32 %v3310
      %vm3317 = vmor %vm3315, %vm3316
      %v3318 = vsel %vm3317, %v3310, %v3314
      %v3319 = vand.u32 2147483647, %v3293
      %vm3320 = vcmp.eq.f32.partialorder %v3319, 8.507059e+37
      %v3321 = vand.u32 %v3293, 2147483648
      %v3322 = vor.u32 1.1754944e-38, %v3321
      %v3323 = vsel %vm3320, %v3322, %v3318
      %v3324 = vmul.f32 1.0, %v3323
      %v3325 = vrcp.pop %v3294
      %v3326 = vmul.f32 %v3294, %v3325
      %v3327 = vsub.f32 1.0, %v3326
      %v3328 = vmul.f32 %v3325, %v3327
      %v3329 = vadd.f32 %v3325, %v3328
      %vm3330 = vweird.f32 %v3294
      %vm3331 = vweird.f32 %v3325
      %vm3332 = vmor %vm3330, %vm3331
      %v3333 = vsel %vm3332, %v3325, %v3329
      %v3334 = vand.u32 2147483647, %v3294
      %vm3335 = vcmp.eq.f32.partialorder %v3334, 8.507059e+37
      %v3336 = vand.u32 %v3294, 2147483648
      %v3337 = vor.u32 1.1754944e-38, %v3336
      %v3338 = vsel %vm3335, %v3337, %v3333
      %v3339 = vmul.f32 1.0, %v3338
      %3343 = vrot.lane.b32.xlu0 %v3309, 96
      %v3344 = vpop.permute.xlu0 %3343
      %3345 = vrot.lane.b32.xlu0 %v3324, 96
      %v3346 = vpop.permute.xlu0 %3345
      %3347 = vrot.lane.b32.xlu0 %v3339, 96
      %v3348 = vpop.permute.xlu0 %3347
      %v3352 = vmul.f32 %v3280, %v3344
      %v3353 = vmul.f32 %v3281, %v3346
      %v3354 = vmul.f32 %v3282, %v3348
      %v3355 = vld [vmem:[%s35] sm:$0x1]
      %v3357 = vperm.slane %v3355, 0
      %v3359 = vmul.f32 %v3352, %v3357
      %v3360 = vmul.f32 %v3353, %v3357
      %v3361 = vmul.f32 %v3354, %v3357
      %v3362 = vsel %vm1208, %v3359, 0.0
      %3363 = vadd.xlane.f32.xlu0 %v3362
      %v3364 = vpop.xlane.xlu0 %3363
      %v3365 = vsel %vm1208, %v3360, 0.0
      %3366 = vadd.xlane.f32.xlu0 %v3365
      %v3367 = vpop.xlane.xlu0 %3366
      %v3368 = vsel %vm1208, %v3361, 0.0
      %3369 = vadd.xlane.f32.xlu0 %v3368
      %v3370 = vpop.xlane.xlu0 %3369
      %v3371 = vld [vmem:[%s37] sm:$0xff]
      %3373 = vset.pattern.permute.xlu0 0
      %3374 = vperm.xlu0 %3373, %v3371
      %v3375 = vpop.permute.xlu0 %3374
      %v3377 = vmul.f32 %v3352, %v3375
      %v3378 = vmul.f32 %v3353, %v3375
      %v3379 = vmul.f32 %v3354, %v3375
      %v3380 = vsel %vm1208, %v3377, 0.0
      %v3381 = vrot.slane %v3380, 4
      %v3382 = vadd.f32 %v3380, %v3381
      %v3383 = vrot.slane %v3382, 2
      %v3384 = vadd.f32 %v3382, %v3383
      %v3385 = vrot.slane %v3384, 1
      %v3386 = vadd.f32 %v3384, %v3385
      %v3387 = vsel %vm1208, %v3378, 0.0
      %v3388 = vrot.slane %v3387, 4
      %v3389 = vadd.f32 %v3387, %v3388
      %v3390 = vrot.slane %v3389, 2
      %v3391 = vadd.f32 %v3389, %v3390
      %v3392 = vrot.slane %v3391, 1
      %v3393 = vadd.f32 %v3391, %v3392
      %v3394 = vsel %vm1208, %v3379, 0.0
      %v3395 = vrot.slane %v3394, 4
      %v3396 = vadd.f32 %v3394, %v3395
      %v3397 = vrot.slane %v3396, 2
      %v3398 = vadd.f32 %v3396, %v3397
      %v3399 = vrot.slane %v3398, 1
      %v3400 = vadd.f32 %v3398, %v3399
      %v3401 = vld [vmem:[%s33] sm:$0xff]
      %v3405 = vperm.slane %v3364, %v2344
      %v3406 = vperm.slane %v3367, %v2344
      %v3407 = vperm.slane %v3370, %v2344
      %v3408 = vsel %vm2351, %v3406, %v3405
      %v3409 = vsel %vm2353, %v3407, %v3408
      %v3410 = vsel %vm2361, %v3409, 0
      %3412 = vmatpush.msra.mxu0 0.0
      %3413 = vmatpush.msra.mxu0 0.0
      %3414 = vmatpush.msra.mxu0 0.0
      %3415 = vmatpush.msra.mxu0 0.0
      %3416 = vmatpush.msra.mxu0 0.0
      %3417 = vmatpush.msra.mxu0 0.0
      %3418 = vmatpush.msra.mxu0 0.0
      %3419 = vmatpush.msra.mxu0 0.0
      %3420 = vmatpush.msra.mxu0 0.0
      %3421 = vmatpush.msra.mxu0 0.0
      %3422 = vmatpush.msra.mxu0 0.0
      %3423 = vmatpush.msra.mxu0 0.0
      %3424 = vmatpush.msra.mxu0 0.0
      %3425 = vmatpush.msra.mxu0 0.0
      %3426 = vmatpush.msra.mxu0 0.0
      %3427 = vmatpush.msra.mxu0 %v3401
      %3428 = vmatmul.f32.gmra.mxu0 %v3410
      %v3429 = vpop.f32.mrf.mxu0
      %v3430 = vadd.f32 0.0, %v3429
      %3431 = vdwg.mxu0
      %v3432 = vld [vmem:[%s29] sm:$0x7]
      %v3436 = vsel %vm2351, %v3393, %v3386
      %v3437 = vsel %vm2353, %v3400, %v3436
      %v3439 = vsel %vm1208, %v3430, 0
      %v3441 = vsel %vm1208, %v3437, 0
      %3443 = vmatpush.xpose.msra.mxu0 0.0
      %3444 = vmatpush.xpose.msra.mxu0 0.0
      %3445 = vmatpush.xpose.msra.mxu0 0.0
      %3446 = vmatpush.xpose.msra.mxu0 0.0
      %3447 = vmatpush.xpose.msra.mxu0 0.0
      %3448 = vmatpush.xpose.msra.mxu0 0.0
      %3449 = vmatpush.xpose.msra.mxu0 0.0
      %3450 = vmatpush.xpose.msra.mxu0 0.0
      %3451 = vmatpush.xpose.msra.mxu0 0.0
      %3452 = vmatpush.xpose.msra.mxu0 0.0
      %3453 = vmatpush.xpose.msra.mxu0 0.0
      %3454 = vmatpush.xpose.msra.mxu0 0.0
      %3455 = vmatpush.xpose.msra.mxu0 0.0
      %3456 = vmatpush.xpose.msra.mxu0 0.0
      %3457 = vmatpush.xpose.msra.mxu0 0.0
      %3458 = vmatpush.xpose.msra.mxu0 %v3441
      %3459 = vmatmul.f32.gmra.mxu0 %v3439
      %v3460 = vpop.f32.mrf.mxu0
      %v3461 = vadd.f32 %v3432, %v3460
      %3462 = vdwg.mxu0
      %v3463 = vxor.u32 %v3461, 2147483648
      %v3464 = vmul.f32 %v3463, 1.442695
      %v3465 = vpow.pop %v3464
      %v3466 = vadd.f32 %v3465, 1.0
      %v3467 = vrcp.pop %v3466
      %v3468 = vmul.f32 %v3466, %v3467
      %v3469 = vsub.f32 1.0, %v3468
      %v3470 = vmul.f32 %v3467, %v3469
      %v3471 = vadd.f32 %v3467, %v3470
      %vm3472 = vweird.f32 %v3466
      %vm3473 = vweird.f32 %v3467
      %vm3474 = vmor %vm3472, %vm3473
      %v3475 = vsel %vm3474, %v3467, %v3471
      %v3476 = vand.u32 2147483647, %v3466
      %vm3477 = vcmp.eq.f32.partialorder %v3476, 8.507059e+37
      %v3478 = vand.u32 %v3466, 2147483648
      %v3479 = vor.u32 1.1754944e-38, %v3478
      %v3480 = vsel %vm3477, %v3479, %v3475
      %v3481 = vmul.f32 1.0, %v3480
      %v3482 = vld [vmem:[%s31] sm:$0x7]
      %vm3483 = vcmask 23552
      %v3485 = vsel %vm3483, %v3482, 0
      %vm3487 = vcmask 1042432
      %v3489 = vsel %vm3487, %v3481, 0
      %3491 = vmatpush.msra.mxu0 0.0
      %3492 = vmatpush.msra.mxu0 0.0
      %3493 = vmatpush.msra.mxu0 0.0
      %3494 = vmatpush.msra.mxu0 0.0
      %3495 = vmatpush.msra.mxu0 0.0
      %3496 = vmatpush.msra.mxu0 0.0
      %3497 = vmatpush.msra.mxu0 0.0
      %3498 = vmatpush.msra.mxu0 0.0
      %3499 = vmatpush.msra.mxu0 0.0
      %3500 = vmatpush.msra.mxu0 0.0
      %3501 = vmatpush.msra.mxu0 0.0
      %3502 = vmatpush.msra.mxu0 0.0
      %3503 = vmatpush.msra.mxu0 0.0
      %3504 = vmatpush.msra.mxu0 0.0
      %3505 = vmatpush.msra.mxu0 0.0
      %3506 = vmatpush.msra.mxu0 %v3489
      %3507 = vmatmul.f32.gmra.mxu0 %v3485
      %v3508 = vpop.f32.mrf.mxu0
      %v3509 = vadd.f32 0.0, %v3508
      %3510 = vdwg.mxu0
      %vm3511 = vcmask 18432
      %v3512 = vsel %vm3511, %v3509, -inf
      %3513 = vmax.xlane.f32.xlu0 %v3512
      %v3514 = vpop.xlane.xlu0 %3513
      %v3515 = vsub.f32 %v3509, %v3514
      %v3516 = vmul.f32 %v3515, 1.442695
      %v3517 = vpow.pop %v3516
      %v3518 = vsel %vm3511, %v3517, 0.0
      %3519 = vadd.xlane.f32.xlu0 %v3518
      %v3520 = vpop.xlane.xlu0 %3519
      %v3521 = vrcp.pop %v3520
      %v3522 = vmul.f32 %v3517, %v3521
      %v3524 = vrot.slane %v3522, 1
      %v3525 = vrot.slane %v3522, 2
      %v3526 = vperm.slane %v3522, 0
      %v3527 = vperm.slane %v3524, 0
      %v3528 = vperm.slane %v3525, 0
      %3529 = vset.pattern.permute.xlu0 0
      %3530 = vperm.xlu0 %3529, %v3526
      %v3531 = vpop.permute.xlu0 %3530
      %3533 = vset.pattern.permute.xlu0 0
      %3534 = vperm.xlu0 %3533, %v3527
      %v3535 = vpop.permute.xlu0 %3534
      %3537 = vset.pattern.permute.xlu0 0
      %3538 = vperm.xlu0 %3537, %v3528
      %v3539 = vpop.permute.xlu0 %3538
      %v3541 = vmul.f32 %v3531, %v3352
      %v3542 = vmul.f32 %v3535, %v3352
      %v3543 = vmul.f32 %v3539, %v3352
      %3544 = vset.pattern.permute.xlu0 1
      %3545 = vperm.xlu0 %3544, %v3526
      %v3546 = vpop.permute.xlu0 %3545
      %3548 = vset.pattern.permute.xlu0 1
      %3549 = vperm.xlu0 %3548, %v3527
      %v3550 = vpop.permute.xlu0 %3549
      %3552 = vset.pattern.permute.xlu0 1
      %3553 = vperm.xlu0 %3552, %v3528
      %v3554 = vpop.permute.xlu0 %3553
      %v3556 = vmul.f32 %v3546, %v3353
      %v3557 = vmul.f32 %v3550, %v3353
      %v3558 = vmul.f32 %v3554, %v3353
      %v3559 = vadd.f32 %v3541, %v3556
      %v3560 = vadd.f32 %v3542, %v3557
      %v3561 = vadd.f32 %v3543, %v3558
      %3562 = vset.pattern.permute.xlu0 2
      %3563 = vperm.xlu0 %3562, %v3526
      %v3564 = vpop.permute.xlu0 %3563
      %3566 = vset.pattern.permute.xlu0 2
      %3567 = vperm.xlu0 %3566, %v3527
      %v3568 = vpop.permute.xlu0 %3567
      %3570 = vset.pattern.permute.xlu0 2
      %3571 = vperm.xlu0 %3570, %v3528
      %v3572 = vpop.permute.xlu0 %3571
      %v3574 = vmul.f32 %v3564, %v3354
      %v3575 = vmul.f32 %v3568, %v3354
      %v3576 = vmul.f32 %v3572, %v3354
      %v3577 = vadd.f32 %v3559, %v3574
      %v3578 = vadd.f32 %v3560, %v3575
      %v3579 = vadd.f32 %v3561, %v3576
      %v3580 = vadd.f32 %v3577, %v2831
      %v3581 = vadd.f32 %v3578, %v2834
      %v3582 = vadd.f32 %v3579, %v2836
      %v3583 = vld [vmem:[%s65] sm:$0xff]
      %v3584 = vld [vmem:[%s65 + $0x8] sm:$0xff]
      %v3585 = vld [vmem:[%s65 + $0x10] sm:$0xff]
      %v3586 = vld [vmem:[%s65 + $0x18] sm:$0xff]
      %v3587 = vpack.c.bf16 %v3581, %v3580
      %v3588 = vpack.c.bf16 %v3582, %v3582
      %v3589 = vld [vmem:[%s63] sm:$0x3]
      %v3591 = vperm.slane %v3589, 0
      %v3592 = vperm.slane %v3589, 1
      %v3599 = vunpack.c.l.b16 %v3583
      %v3600 = vunpack.c.h.b16 %v3583
      %v3601 = vunpack.c.l.b16 %v3584
      %v3602 = vunpack.c.h.b16 %v3584
      %v3603 = vunpack.c.l.b16 %v3585
      %v3604 = vunpack.c.h.b16 %v3585
      %v3605 = vunpack.c.l.b16 %v3586
      %v3606 = vunpack.c.h.b16 %v3586
      %v3607 = vpack.c.b16 %v3601, %v3599
      %v3608 = vpack.c.b16 %v3602, %v3600
      %v3609 = vpack.c.b16 %v3605, %v3603
      %v3610 = vpack.c.b16 %v3606, %v3604
      %v3616 = vsel %vm1208, %v3587, 0
      %v3619 = vsel %vm1208, %v3588, 0
      %3621 = vmatpush.bf16.msra.mxu0 0
      %3622 = vmatpush.bf16.msra.mxu0 0
      %3623 = vmatpush.bf16.msra.mxu0 0
      %3624 = vmatpush.bf16.msra.mxu0 0
      %3625 = vmatpush.bf16.msra.mxu0 0
      %3626 = vmatpush.bf16.msra.mxu0 0
      %3627 = vmatpush.bf16.msra.mxu0 %v3609
      %3628 = vmatpush.bf16.msra.mxu0 %v3607
      %3629 = vmatmul.bf16.gmra.mxu0 %v3616
      %v3630 = vpop.f32.mrf.mxu0
      %v3631 = vadd.f32 %v3591, %v3630
      %v3632 = vpop.f32.mrf.mxu0
      %v3633 = vadd.f32 %v3591, %v3632
      %3634 = vmatmul.bf16.gmra.mxu0 %v3619
      %v3635 = vpop.f32.mrf.mxu0
      %v3636 = vadd.f32 %v3591, %v3635
      %v3637 = vpop.f32.mrf.mxu0
      %3638 = vdwg.mxu0
      %3639 = vmatpush.bf16.msra.mxu0 0
      %3640 = vmatpush.bf16.msra.mxu0 0
      %3641 = vmatpush.bf16.msra.mxu0 0
      %3642 = vmatpush.bf16.msra.mxu0 0
      %3643 = vmatpush.bf16.msra.mxu0 0
      %3644 = vmatpush.bf16.msra.mxu0 0
      %3645 = vmatpush.bf16.msra.mxu0 %v3610
      %3646 = vmatpush.bf16.msra.mxu0 %v3608
      %3647 = vmatmul.bf16.gmra.mxu0 %v3616
      %v3648 = vpop.f32.mrf.mxu0
      %v3649 = vadd.f32 %v3592, %v3648
      %v3650 = vpop.f32.mrf.mxu0
      %v3651 = vadd.f32 %v3592, %v3650
      %3652 = vmatmul.bf16.gmra.mxu0 %v3619
      %v3653 = vpop.f32.mrf.mxu0
      %v3654 = vadd.f32 %v3592, %v3653
      %v3655 = vpop.f32.mrf.mxu0
      %3656 = vdwg.mxu0
      %v3657 = vadd.f32 %v3631, %v2765
      %v3658 = vadd.f32 %v3649, %v2786
      %v3659 = vadd.f32 %v3633, %v2768
      %v3660 = vadd.f32 %v3651, %v2789
      %v3661 = vadd.f32 %v3636, %v2770
      %v3662 = vadd.f32 %v3654, %v2791
      %v3663 = vmax.f32 %v3657, 0.0
      %v3664 = vmax.f32 %v3658, 0.0
      %v3665 = vmax.f32 %v3659, 0.0
      %v3666 = vmax.f32 %v3660, 0.0
      %v3667 = vmax.f32 %v3661, 0.0
      %v3668 = vmax.f32 %v3662, 0.0
      %v3669 = vld [vmem:[%s53] sm:$0xff]
      %v3670 = vld [vmem:[%s53 + $0x8] sm:$0xff]
      %v3671 = vld [vmem:[%s53 + $0x10] sm:$0xff]
      %v3672 = vld [vmem:[%s53 + $0x18] sm:$0xff]
      %v3673 = vld [vmem:[%s53 + $0x20] sm:$0xff]
      %v3674 = vld [vmem:[%s53 + $0x28] sm:$0xff]
      %v3675 = vld [vmem:[%s53 + $0x30] sm:$0xff]
      %v3676 = vld [vmem:[%s53 + $0x38] sm:$0xff]
      %v3677 = vld [vmem:[%s53 + $0x40] sm:$0xff]
      %v3678 = vld [vmem:[%s53 + $0x48] sm:$0xff]
      %v3679 = vld [vmem:[%s53 + $0x50] sm:$0xff]
      %v3680 = vld [vmem:[%s53 + $0x58] sm:$0xff]
      %v3681 = vld [vmem:[%s53 + $0x60] sm:$0xff]
      %v3682 = vld [vmem:[%s53 + $0x68] sm:$0xff]
      %v3683 = vld [vmem:[%s53 + $0x70] sm:$0xff]
      %v3684 = vld [vmem:[%s53 + $0x78] sm:$0xff]
      %v3685 = vld [vmem:[%s53 + $0x80] sm:$0xff]
      %v3686 = vld [vmem:[%s53 + $0x88] sm:$0xff]
      %v3687 = vld [vmem:[%s53 + $0x90] sm:$0xff]
      %v3688 = vld [vmem:[%s53 + $0x98] sm:$0xff]
      %v3689 = vld [vmem:[%s53 + $0xa0] sm:$0xff]
      %v3690 = vld [vmem:[%s53 + $0xa8] sm:$0xff]
      %v3691 = vld [vmem:[%s53 + $0xb0] sm:$0xff]
      %v3692 = vld [vmem:[%s53 + $0xb8] sm:$0xff]
      %v3693 = vld [vmem:[%s53 + $0xc0] sm:$0xff]
      %v3694 = vld [vmem:[%s53 + $0xc8] sm:$0xff]
      %v3695 = vld [vmem:[%s53 + $0xd0] sm:$0xff]
      %v3696 = vld [vmem:[%s53 + $0xd8] sm:$0xff]
      %v3697 = vld [vmem:[%s53 + $0xe0] sm:$0xff]
      %v3698 = vld [vmem:[%s53 + $0xe8] sm:$0xff]
      %v3699 = vld [vmem:[%s53 + $0xf0] sm:$0xff]
      %v3700 = vld [vmem:[%s53 + $0xf8] sm:$0xff]
      %v3701 = vld [vmem:[%s53 + $0x100] sm:$0xff]
      %v3702 = vld [vmem:[%s53 + $0x108] sm:$0xff]
      %v3703 = vld [vmem:[%s53 + $0x110] sm:$0xff]
      %v3704 = vld [vmem:[%s53 + $0x118] sm:$0xff]
      %v3705 = vld [vmem:[%s53 + $0x120] sm:$0xff]
      %v3706 = vld [vmem:[%s53 + $0x128] sm:$0xff]
      %v3707 = vld [vmem:[%s53 + $0x130] sm:$0xff]
      %v3708 = vld [vmem:[%s53 + $0x138] sm:$0xff]
      %v3709 = vld [vmem:[%s53 + $0x140] sm:$0xff]
      %v3710 = vld [vmem:[%s53 + $0x148] sm:$0xff]
      %v3711 = vld [vmem:[%s53 + $0x150] sm:$0xff]
      %v3712 = vld [vmem:[%s53 + $0x158] sm:$0xff]
      %v3713 = vld [vmem:[%s53 + $0x160] sm:$0xff]
      %v3714 = vld [vmem:[%s53 + $0x168] sm:$0xff]
      %v3715 = vld [vmem:[%s53 + $0x170] sm:$0xff]
      %v3716 = vld [vmem:[%s53 + $0x178] sm:$0xff]
      %v3717 = vld [vmem:[%s53 + $0x180] sm:$0xff]
      %v3718 = vld [vmem:[%s53 + $0x188] sm:$0xff]
      %v3719 = vld [vmem:[%s53 + $0x190] sm:$0xff]
      %v3720 = vld [vmem:[%s53 + $0x198] sm:$0xff]
      %v3721 = vld [vmem:[%s53 + $0x1a0] sm:$0xff]
      %v3722 = vld [vmem:[%s53 + $0x1a8] sm:$0xff]
      %v3723 = vld [vmem:[%s53 + $0x1b0] sm:$0xff]
      %v3724 = vld [vmem:[%s53 + $0x1b8] sm:$0xff]
      %v3725 = vld [vmem:[%s53 + $0x1c0] sm:$0xff]
      %v3726 = vld [vmem:[%s53 + $0x1c8] sm:$0xff]
      %v3727 = vld [vmem:[%s53 + $0x1d0] sm:$0xff]
      %v3728 = vld [vmem:[%s53 + $0x1d8] sm:$0xff]
      %v3729 = vld [vmem:[%s53 + $0x1e0] sm:$0xff]
      %v3730 = vld [vmem:[%s53 + $0x1e8] sm:$0xff]
      %v3731 = vld [vmem:[%s53 + $0x1f0] sm:$0xff]
      %v3732 = vld [vmem:[%s53 + $0x1f8] sm:$0xff]
      %v3733 = vld [vmem:[%s53 + $0x200] sm:$0xff]
      %v3734 = vld [vmem:[%s53 + $0x208] sm:$0xff]
      %v3735 = vld [vmem:[%s53 + $0x210] sm:$0xff]
      %v3736 = vld [vmem:[%s53 + $0x218] sm:$0xff]
      %v3737 = vld [vmem:[%s53 + $0x220] sm:$0xff]
      %v3738 = vld [vmem:[%s53 + $0x228] sm:$0xff]
      %v3739 = vld [vmem:[%s53 + $0x230] sm:$0xff]
      %v3740 = vld [vmem:[%s53 + $0x238] sm:$0xff]
      %v3741 = vld [vmem:[%s53 + $0x240] sm:$0xff]
      %v3742 = vld [vmem:[%s53 + $0x248] sm:$0xff]
      %v3743 = vld [vmem:[%s53 + $0x250] sm:$0xff]
      %v3744 = vld [vmem:[%s53 + $0x258] sm:$0xff]
      %v3745 = vld [vmem:[%s53 + $0x260] sm:$0xff]
      %v3746 = vld [vmem:[%s53 + $0x268] sm:$0xff]
      %v3747 = vld [vmem:[%s53 + $0x270] sm:$0xff]
      %v3748 = vld [vmem:[%s53 + $0x278] sm:$0xff]
      %v3749 = vld [vmem:[%s53 + $0x280] sm:$0xff]
      %v3750 = vld [vmem:[%s53 + $0x288] sm:$0xff]
      %v3751 = vld [vmem:[%s53 + $0x290] sm:$0xff]
      %v3752 = vld [vmem:[%s53 + $0x298] sm:$0xff]
      %v3753 = vld [vmem:[%s53 + $0x2a0] sm:$0xff]
      %v3754 = vld [vmem:[%s53 + $0x2a8] sm:$0xff]
      %v3755 = vld [vmem:[%s53 + $0x2b0] sm:$0xff]
      %v3756 = vld [vmem:[%s53 + $0x2b8] sm:$0xff]
      %v3757 = vld [vmem:[%s53 + $0x2c0] sm:$0xff]
      %v3758 = vld [vmem:[%s53 + $0x2c8] sm:$0xff]
      %v3759 = vld [vmem:[%s53 + $0x2d0] sm:$0xff]
      %v3760 = vld [vmem:[%s53 + $0x2d8] sm:$0xff]
      %v3761 = vld [vmem:[%s53 + $0x2e0] sm:$0xff]
      %v3762 = vld [vmem:[%s53 + $0x2e8] sm:$0xff]
      %v3763 = vld [vmem:[%s53 + $0x2f0] sm:$0xff]
      %v3764 = vld [vmem:[%s53 + $0x2f8] sm:$0xff]
      %v3765 = vld [vmem:[%s53 + $0x300] sm:$0xff]
      %v3766 = vld [vmem:[%s53 + $0x308] sm:$0xff]
      %v3767 = vld [vmem:[%s53 + $0x310] sm:$0xff]
      %v3768 = vld [vmem:[%s53 + $0x318] sm:$0xff]
      %v3769 = vld [vmem:[%s53 + $0x320] sm:$0xff]
      %v3770 = vld [vmem:[%s53 + $0x328] sm:$0xff]
      %v3771 = vld [vmem:[%s53 + $0x330] sm:$0xff]
      %v3772 = vld [vmem:[%s53 + $0x338] sm:$0xff]
      %v3773 = vld [vmem:[%s53 + $0x340] sm:$0xff]
      %v3774 = vld [vmem:[%s53 + $0x348] sm:$0xff]
      %v3775 = vld [vmem:[%s53 + $0x350] sm:$0xff]
      %v3776 = vld [vmem:[%s53 + $0x358] sm:$0xff]
      %v3777 = vld [vmem:[%s53 + $0x360] sm:$0xff]
      %v3778 = vld [vmem:[%s53 + $0x368] sm:$0xff]
      %v3779 = vld [vmem:[%s53 + $0x370] sm:$0xff]
      %v3780 = vld [vmem:[%s53 + $0x378] sm:$0xff]
      %v3781 = vld [vmem:[%s53 + $0x380] sm:$0xff]
      %v3782 = vld [vmem:[%s53 + $0x388] sm:$0xff]
      %v3783 = vld [vmem:[%s53 + $0x390] sm:$0xff]
      %v3784 = vld [vmem:[%s53 + $0x398] sm:$0xff]
      %v3785 = vld [vmem:[%s53 + $0x3a0] sm:$0xff]
      %v3786 = vld [vmem:[%s53 + $0x3a8] sm:$0xff]
      %v3787 = vld [vmem:[%s53 + $0x3b0] sm:$0xff]
      %v3788 = vld [vmem:[%s53 + $0x3b8] sm:$0xff]
      %v3789 = vld [vmem:[%s53 + $0x3c0] sm:$0xff]
      %v3790 = vld [vmem:[%s53 + $0x3c8] sm:$0xff]
      %v3791 = vld [vmem:[%s53 + $0x3d0] sm:$0xff]
      %v3792 = vld [vmem:[%s53 + $0x3d8] sm:$0xff]
      %v3793 = vld [vmem:[%s53 + $0x3e0] sm:$0xff]
      %v3794 = vld [vmem:[%s53 + $0x3e8] sm:$0xff]
      %v3795 = vld [vmem:[%s53 + $0x3f0] sm:$0xff]
      %v3796 = vld [vmem:[%s53 + $0x3f8] sm:$0xff]
      %v3797 = vld [vmem:[%s53 + $0x400] sm:$0xff]
      %v3798 = vld [vmem:[%s53 + $0x408] sm:$0xff]
      %v3799 = vld [vmem:[%s53 + $0x410] sm:$0xff]
      %v3800 = vld [vmem:[%s53 + $0x418] sm:$0xff]
      %v3801 = vld [vmem:[%s53 + $0x420] sm:$0xff]
      %v3802 = vld [vmem:[%s53 + $0x428] sm:$0xff]
      %v3803 = vld [vmem:[%s53 + $0x430] sm:$0xff]
      %v3804 = vld [vmem:[%s53 + $0x438] sm:$0xff]
      %v3805 = vld [vmem:[%s53 + $0x440] sm:$0xff]
      %v3806 = vld [vmem:[%s53 + $0x448] sm:$0xff]
      %v3807 = vld [vmem:[%s53 + $0x450] sm:$0xff]
      %v3808 = vld [vmem:[%s53 + $0x458] sm:$0xff]
      %v3809 = vld [vmem:[%s53 + $0x460] sm:$0xff]
      %v3810 = vld [vmem:[%s53 + $0x468] sm:$0xff]
      %v3811 = vld [vmem:[%s53 + $0x470] sm:$0xff]
      %v3812 = vld [vmem:[%s53 + $0x478] sm:$0xff]
      %v3813 = vld [vmem:[%s53 + $0x480] sm:$0xff]
      %v3814 = vld [vmem:[%s53 + $0x488] sm:$0xff]
      %v3815 = vld [vmem:[%s53 + $0x490] sm:$0xff]
      %v3816 = vld [vmem:[%s53 + $0x498] sm:$0xff]
      %v3817 = vld [vmem:[%s53 + $0x4a0] sm:$0xff]
      %v3818 = vld [vmem:[%s53 + $0x4a8] sm:$0xff]
      %v3819 = vld [vmem:[%s53 + $0x4b0] sm:$0xff]
      %v3820 = vld [vmem:[%s53 + $0x4b8] sm:$0xff]
      %v3821 = vld [vmem:[%s53 + $0x4c0] sm:$0xff]
      %v3822 = vld [vmem:[%s53 + $0x4c8] sm:$0xff]
      %v3823 = vld [vmem:[%s53 + $0x4d0] sm:$0xff]
      %v3824 = vld [vmem:[%s53 + $0x4d8] sm:$0xff]
      %v3825 = vld [vmem:[%s53 + $0x4e0] sm:$0xff]
      %v3826 = vld [vmem:[%s53 + $0x4e8] sm:$0xff]
      %v3827 = vld [vmem:[%s53 + $0x4f0] sm:$0xff]
      %v3828 = vld [vmem:[%s53 + $0x4f8] sm:$0xff]
      %v3829 = vld [vmem:[%s53 + $0x500] sm:$0xff]
      %v3830 = vld [vmem:[%s53 + $0x508] sm:$0xff]
      %v3831 = vld [vmem:[%s53 + $0x510] sm:$0xff]
      %v3832 = vld [vmem:[%s53 + $0x518] sm:$0xff]
      %v3833 = vld [vmem:[%s53 + $0x520] sm:$0xff]
      %v3834 = vld [vmem:[%s53 + $0x528] sm:$0xff]
      %v3835 = vld [vmem:[%s53 + $0x530] sm:$0xff]
      %v3836 = vld [vmem:[%s53 + $0x538] sm:$0xff]
      %v3837 = vld [vmem:[%s53 + $0x540] sm:$0xff]
      %v3838 = vld [vmem:[%s53 + $0x548] sm:$0xff]
      %v3839 = vld [vmem:[%s53 + $0x550] sm:$0xff]
      %v3840 = vld [vmem:[%s53 + $0x558] sm:$0xff]
      %v3841 = vld [vmem:[%s53 + $0x560] sm:$0xff]
      %v3842 = vld [vmem:[%s53 + $0x568] sm:$0xff]
      %v3843 = vld [vmem:[%s53 + $0x570] sm:$0xff]
      %v3844 = vld [vmem:[%s53 + $0x578] sm:$0xff]
      %v3845 = vld [vmem:[%s53 + $0x580] sm:$0xff]
      %v3846 = vld [vmem:[%s53 + $0x588] sm:$0xff]
      %v3847 = vld [vmem:[%s53 + $0x590] sm:$0xff]
      %v3848 = vld [vmem:[%s53 + $0x598] sm:$0xff]
      %v3849 = vld [vmem:[%s53 + $0x5a0] sm:$0xff]
      %v3850 = vld [vmem:[%s53 + $0x5a8] sm:$0xff]
      %v3851 = vld [vmem:[%s53 + $0x5b0] sm:$0xff]
      %v3852 = vld [vmem:[%s53 + $0x5b8] sm:$0xff]
      %v3853 = vld [vmem:[%s53 + $0x5c0] sm:$0xff]
      %v3854 = vld [vmem:[%s53 + $0x5c8] sm:$0xff]
      %v3855 = vld [vmem:[%s53 + $0x5d0] sm:$0xff]
      %v3856 = vld [vmem:[%s53 + $0x5d8] sm:$0xff]
      %v3857 = vld [vmem:[%s53 + $0x5e0] sm:$0xff]
      %v3858 = vld [vmem:[%s53 + $0x5e8] sm:$0xff]
      %v3859 = vld [vmem:[%s53 + $0x5f0] sm:$0xff]
      %v3860 = vld [vmem:[%s53 + $0x5f8] sm:$0xff]
      %v3861 = vpack.c.bf16 %v3663, %v3663
      %v3862 = vpack.c.bf16 %v3664, %v3664
      %v3863 = vpack.c.bf16 %v3665, %v3665
      %v3864 = vpack.c.bf16 %v3666, %v3666
      %v3865 = vpack.c.bf16 %v3667, %v3667
      %v3866 = vpack.c.bf16 %v3668, %v3668
      %v3867 = vld [vmem:[%s51] sm:$0xf]
      %v3869 = vperm.slane %v3867, 0
      %v3870 = vperm.slane %v3867, 1
      %v3871 = vperm.slane %v3867, 2
      %v3872 = vperm.slane %v3867, 3
      %v4069 = vunpack.c.l.b16 %v3669
      %v4070 = vunpack.c.h.b16 %v3669
      %v4071 = vunpack.c.l.b16 %v3670
      %v4072 = vunpack.c.h.b16 %v3670
      %v4073 = vunpack.c.l.b16 %v3671
      %v4074 = vunpack.c.h.b16 %v3671
      %v4075 = vunpack.c.l.b16 %v3672
      %v4076 = vunpack.c.h.b16 %v3672
      %v4077 = vunpack.c.l.b16 %v3673
      %v4078 = vunpack.c.h.b16 %v3673
      %v4079 = vunpack.c.l.b16 %v3674
      %v4080 = vunpack.c.h.b16 %v3674
      %v4081 = vunpack.c.l.b16 %v3675
      %v4082 = vunpack.c.h.b16 %v3675
      %v4083 = vunpack.c.l.b16 %v3676
      %v4084 = vunpack.c.h.b16 %v3676
      %v4085 = vunpack.c.l.b16 %v3677
      %v4086 = vunpack.c.h.b16 %v3677
      %v4087 = vunpack.c.l.b16 %v3678
      %v4088 = vunpack.c.h.b16 %v3678
      %v4089 = vunpack.c.l.b16 %v3679
      %v4090 = vunpack.c.h.b16 %v3679
      %v4091 = vunpack.c.l.b16 %v3680
      %v4092 = vunpack.c.h.b16 %v3680
      %v4093 = vunpack.c.l.b16 %v3681
      %v4094 = vunpack.c.h.b16 %v3681
      %v4095 = vunpack.c.l.b16 %v3682
      %v4096 = vunpack.c.h.b16 %v3682
      %v4097 = vunpack.c.l.b16 %v3683
      %v4098 = vunpack.c.h.b16 %v3683
      %v4099 = vunpack.c.l.b16 %v3684
      %v4100 = vunpack.c.h.b16 %v3684
      %v4101 = vunpack.c.l.b16 %v3685
      %v4102 = vunpack.c.h.b16 %v3685
      %v4103 = vunpack.c.l.b16 %v3686
      %v4104 = vunpack.c.h.b16 %v3686
      %v4105 = vunpack.c.l.b16 %v3687
      %v4106 = vunpack.c.h.b16 %v3687
      %v4107 = vunpack.c.l.b16 %v3688
      %v4108 = vunpack.c.h.b16 %v3688
      %v4109 = vunpack.c.l.b16 %v3689
      %v4110 = vunpack.c.h.b16 %v3689
      %v4111 = vunpack.c.l.b16 %v3690
      %v4112 = vunpack.c.h.b16 %v3690
      %v4113 = vunpack.c.l.b16 %v3691
      %v4114 = vunpack.c.h.b16 %v3691
      %v4115 = vunpack.c.l.b16 %v3692
      %v4116 = vunpack.c.h.b16 %v3692
      %v4117 = vunpack.c.l.b16 %v3693
      %v4118 = vunpack.c.h.b16 %v3693
      %v4119 = vunpack.c.l.b16 %v3694
      %v4120 = vunpack.c.h.b16 %v3694
      %v4121 = vunpack.c.l.b16 %v3695
      %v4122 = vunpack.c.h.b16 %v3695
      %v4123 = vunpack.c.l.b16 %v3696
      %v4124 = vunpack.c.h.b16 %v3696
      %v4125 = vunpack.c.l.b16 %v3697
      %v4126 = vunpack.c.h.b16 %v3697
      %v4127 = vunpack.c.l.b16 %v3698
      %v4128 = vunpack.c.h.b16 %v3698
      %v4129 = vunpack.c.l.b16 %v3699
      %v4130 = vunpack.c.h.b16 %v3699
      %v4131 = vunpack.c.l.b16 %v3700
      %v4132 = vunpack.c.h.b16 %v3700
      %v4133 = vunpack.c.l.b16 %v3701
      %v4134 = vunpack.c.h.b16 %v3701
      %v4135 = vunpack.c.l.b16 %v3702
      %v4136 = vunpack.c.h.b16 %v3702
      %v4137 = vunpack.c.l.b16 %v3703
      %v4138 = vunpack.c.h.b16 %v3703
      %v4139 = vunpack.c.l.b16 %v3704
      %v4140 = vunpack.c.h.b16 %v3704
      %v4141 = vunpack.c.l.b16 %v3705
      %v4142 = vunpack.c.h.b16 %v3705
      %v4143 = vunpack.c.l.b16 %v3706
      %v4144 = vunpack.c.h.b16 %v3706
      %v4145 = vunpack.c.l.b16 %v3707
      %v4146 = vunpack.c.h.b16 %v3707
      %v4147 = vunpack.c.l.b16 %v3708
      %v4148 = vunpack.c.h.b16 %v3708
      %v4149 = vunpack.c.l.b16 %v3709
      %v4150 = vunpack.c.h.b16 %v3709
      %v4151 = vunpack.c.l.b16 %v3710
      %v4152 = vunpack.c.h.b16 %v3710
      %v4153 = vunpack.c.l.b16 %v3711
      %v4154 = vunpack.c.h.b16 %v3711
      %v4155 = vunpack.c.l.b16 %v3712
      %v4156 = vunpack.c.h.b16 %v3712
      %v4157 = vunpack.c.l.b16 %v3713
      %v4158 = vunpack.c.h.b16 %v3713
      %v4159 = vunpack.c.l.b16 %v3714
      %v4160 = vunpack.c.h.b16 %v3714
      %v4161 = vunpack.c.l.b16 %v3715
      %v4162 = vunpack.c.h.b16 %v3715
      %v4163 = vunpack.c.l.b16 %v3716
      %v4164 = vunpack.c.h.b16 %v3716
      %v4165 = vunpack.c.l.b16 %v3717
      %v4166 = vunpack.c.h.b16 %v3717
      %v4167 = vunpack.c.l.b16 %v3718
      %v4168 = vunpack.c.h.b16 %v3718
      %v4169 = vunpack.c.l.b16 %v3719
      %v4170 = vunpack.c.h.b16 %v3719
      %v4171 = vunpack.c.l.b16 %v3720
      %v4172 = vunpack.c.h.b16 %v3720
      %v4173 = vunpack.c.l.b16 %v3721
      %v4174 = vunpack.c.h.b16 %v3721
      %v4175 = vunpack.c.l.b16 %v3722
      %v4176 = vunpack.c.h.b16 %v3722
      %v4177 = vunpack.c.l.b16 %v3723
      %v4178 = vunpack.c.h.b16 %v3723
      %v4179 = vunpack.c.l.b16 %v3724
      %v4180 = vunpack.c.h.b16 %v3724
      %v4181 = vunpack.c.l.b16 %v3725
      %v4182 = vunpack.c.h.b16 %v3725
      %v4183 = vunpack.c.l.b16 %v3726
      %v4184 = vunpack.c.h.b16 %v3726
      %v4185 = vunpack.c.l.b16 %v3727
      %v4186 = vunpack.c.h.b16 %v3727
      %v4187 = vunpack.c.l.b16 %v3728
      %v4188 = vunpack.c.h.b16 %v3728
      %v4189 = vunpack.c.l.b16 %v3729
      %v4190 = vunpack.c.h.b16 %v3729
      %v4191 = vunpack.c.l.b16 %v3730
      %v4192 = vunpack.c.h.b16 %v3730
      %v4193 = vunpack.c.l.b16 %v3731
      %v4194 = vunpack.c.h.b16 %v3731
      %v4195 = vunpack.c.l.b16 %v3732
      %v4196 = vunpack.c.h.b16 %v3732
      %v4197 = vunpack.c.l.b16 %v3733
      %v4198 = vunpack.c.h.b16 %v3733
      %v4199 = vunpack.c.l.b16 %v3734
      %v4200 = vunpack.c.h.b16 %v3734
      %v4201 = vunpack.c.l.b16 %v3735
      %v4202 = vunpack.c.h.b16 %v3735
      %v4203 = vunpack.c.l.b16 %v3736
      %v4204 = vunpack.c.h.b16 %v3736
      %v4205 = vunpack.c.l.b16 %v3737
      %v4206 = vunpack.c.h.b16 %v3737
      %v4207 = vunpack.c.l.b16 %v3738
      %v4208 = vunpack.c.h.b16 %v3738
      %v4209 = vunpack.c.l.b16 %v3739
      %v4210 = vunpack.c.h.b16 %v3739
      %v4211 = vunpack.c.l.b16 %v3740
      %v4212 = vunpack.c.h.b16 %v3740
      %v4213 = vunpack.c.l.b16 %v3741
      %v4214 = vunpack.c.h.b16 %v3741
      %v4215 = vunpack.c.l.b16 %v3742
      %v4216 = vunpack.c.h.b16 %v3742
      %v4217 = vunpack.c.l.b16 %v3743
      %v4218 = vunpack.c.h.b16 %v3743
      %v4219 = vunpack.c.l.b16 %v3744
      %v4220 = vunpack.c.h.b16 %v3744
      %v4221 = vunpack.c.l.b16 %v3745
      %v4222 = vunpack.c.h.b16 %v3745
      %v4223 = vunpack.c.l.b16 %v3746
      %v4224 = vunpack.c.h.b16 %v3746
      %v4225 = vunpack.c.l.b16 %v3747
      %v4226 = vunpack.c.h.b16 %v3747
      %v4227 = vunpack.c.l.b16 %v3748
      %v4228 = vunpack.c.h.b16 %v3748
      %v4229 = vunpack.c.l.b16 %v3749
      %v4230 = vunpack.c.h.b16 %v3749
      %v4231 = vunpack.c.l.b16 %v3750
      %v4232 = vunpack.c.h.b16 %v3750
      %v4233 = vunpack.c.l.b16 %v3751
      %v4234 = vunpack.c.h.b16 %v3751
      %v4235 = vunpack.c.l.b16 %v3752
      %v4236 = vunpack.c.h.b16 %v3752
      %v4237 = vunpack.c.l.b16 %v3753
      %v4238 = vunpack.c.h.b16 %v3753
      %v4239 = vunpack.c.l.b16 %v3754
      %v4240 = vunpack.c.h.b16 %v3754
      %v4241 = vunpack.c.l.b16 %v3755
      %v4242 = vunpack.c.h.b16 %v3755
      %v4243 = vunpack.c.l.b16 %v3756
      %v4244 = vunpack.c.h.b16 %v3756
      %v4245 = vunpack.c.l.b16 %v3757
      %v4246 = vunpack.c.h.b16 %v3757
      %v4247 = vunpack.c.l.b16 %v3758
      %v4248 = vunpack.c.h.b16 %v3758
      %v4249 = vunpack.c.l.b16 %v3759
      %v4250 = vunpack.c.h.b16 %v3759
      %v4251 = vunpack.c.l.b16 %v3760
      %v4252 = vunpack.c.h.b16 %v3760
      %v4253 = vunpack.c.l.b16 %v3761
      %v4254 = vunpack.c.h.b16 %v3761
      %v4255 = vunpack.c.l.b16 %v3762
      %v4256 = vunpack.c.h.b16 %v3762
      %v4257 = vunpack.c.l.b16 %v3763
      %v4258 = vunpack.c.h.b16 %v3763
      %v4259 = vunpack.c.l.b16 %v3764
      %v4260 = vunpack.c.h.b16 %v3764
      %v4261 = vunpack.c.l.b16 %v3765
      %v4262 = vunpack.c.h.b16 %v3765
      %v4263 = vunpack.c.l.b16 %v3766
      %v4264 = vunpack.c.h.b16 %v3766
      %v4265 = vunpack.c.l.b16 %v3767
      %v4266 = vunpack.c.h.b16 %v3767
      %v4267 = vunpack.c.l.b16 %v3768
      %v4268 = vunpack.c.h.b16 %v3768
      %v4269 = vunpack.c.l.b16 %v3769
      %v4270 = vunpack.c.h.b16 %v3769
      %v4271 = vunpack.c.l.b16 %v3770
      %v4272 = vunpack.c.h.b16 %v3770
      %v4273 = vunpack.c.l.b16 %v3771
      %v4274 = vunpack.c.h.b16 %v3771
      %v4275 = vunpack.c.l.b16 %v3772
      %v4276 = vunpack.c.h.b16 %v3772
      %v4277 = vunpack.c.l.b16 %v3773
      %v4278 = vunpack.c.h.b16 %v3773
      %v4279 = vunpack.c.l.b16 %v3774
      %v4280 = vunpack.c.h.b16 %v3774
      %v4281 = vunpack.c.l.b16 %v3775
      %v4282 = vunpack.c.h.b16 %v3775
      %v4283 = vunpack.c.l.b16 %v3776
      %v4284 = vunpack.c.h.b16 %v3776
      %v4285 = vunpack.c.l.b16 %v3777
      %v4286 = vunpack.c.h.b16 %v3777
      %v4287 = vunpack.c.l.b16 %v3778
      %v4288 = vunpack.c.h.b16 %v3778
      %v4289 = vunpack.c.l.b16 %v3779
      %v4290 = vunpack.c.h.b16 %v3779
      %v4291 = vunpack.c.l.b16 %v3780
      %v4292 = vunpack.c.h.b16 %v3780
      %v4293 = vunpack.c.l.b16 %v3781
      %v4294 = vunpack.c.h.b16 %v3781
      %v4295 = vunpack.c.l.b16 %v3782
      %v4296 = vunpack.c.h.b16 %v3782
      %v4297 = vunpack.c.l.b16 %v3783
      %v4298 = vunpack.c.h.b16 %v3783
      %v4299 = vunpack.c.l.b16 %v3784
      %v4300 = vunpack.c.h.b16 %v3784
      %v4301 = vunpack.c.l.b16 %v3785
      %v4302 = vunpack.c.h.b16 %v3785
      %v4303 = vunpack.c.l.b16 %v3786
      %v4304 = vunpack.c.h.b16 %v3786
      %v4305 = vunpack.c.l.b16 %v3787
      %v4306 = vunpack.c.h.b16 %v3787
      %v4307 = vunpack.c.l.b16 %v3788
      %v4308 = vunpack.c.h.b16 %v3788
      %v4309 = vunpack.c.l.b16 %v3789
      %v4310 = vunpack.c.h.b16 %v3789
      %v4311 = vunpack.c.l.b16 %v3790
      %v4312 = vunpack.c.h.b16 %v3790
      %v4313 = vunpack.c.l.b16 %v3791
      %v4314 = vunpack.c.h.b16 %v3791
      %v4315 = vunpack.c.l.b16 %v3792
      %v4316 = vunpack.c.h.b16 %v3792
      %v4317 = vunpack.c.l.b16 %v3793
      %v4318 = vunpack.c.h.b16 %v3793
      %v4319 = vunpack.c.l.b16 %v3794
      %v4320 = vunpack.c.h.b16 %v3794
      %v4321 = vunpack.c.l.b16 %v3795
      %v4322 = vunpack.c.h.b16 %v3795
      %v4323 = vunpack.c.l.b16 %v3796
      %v4324 = vunpack.c.h.b16 %v3796
      %v4325 = vunpack.c.l.b16 %v3797
      %v4326 = vunpack.c.h.b16 %v3797
      %v4327 = vunpack.c.l.b16 %v3798
      %v4328 = vunpack.c.h.b16 %v3798
      %v4329 = vunpack.c.l.b16 %v3799
      %v4330 = vunpack.c.h.b16 %v3799
      %v4331 = vunpack.c.l.b16 %v3800
      %v4332 = vunpack.c.h.b16 %v3800
      %v4333 = vunpack.c.l.b16 %v3801
      %v4334 = vunpack.c.h.b16 %v3801
      %v4335 = vunpack.c.l.b16 %v3802
      %v4336 = vunpack.c.h.b16 %v3802
      %v4337 = vunpack.c.l.b16 %v3803
      %v4338 = vunpack.c.h.b16 %v3803
      %v4339 = vunpack.c.l.b16 %v3804
      %v4340 = vunpack.c.h.b16 %v3804
      %v4341 = vunpack.c.l.b16 %v3805
      %v4342 = vunpack.c.h.b16 %v3805
      %v4343 = vunpack.c.l.b16 %v3806
      %v4344 = vunpack.c.h.b16 %v3806
      %v4345 = vunpack.c.l.b16 %v3807
      %v4346 = vunpack.c.h.b16 %v3807
      %v4347 = vunpack.c.l.b16 %v3808
      %v4348 = vunpack.c.h.b16 %v3808
      %v4349 = vunpack.c.l.b16 %v3809
      %v4350 = vunpack.c.h.b16 %v3809
      %v4351 = vunpack.c.l.b16 %v3810
      %v4352 = vunpack.c.h.b16 %v3810
      %v4353 = vunpack.c.l.b16 %v3811
      %v4354 = vunpack.c.h.b16 %v3811
      %v4355 = vunpack.c.l.b16 %v3812
      %v4356 = vunpack.c.h.b16 %v3812
      %v4357 = vunpack.c.l.b16 %v3813
      %v4358 = vunpack.c.h.b16 %v3813
      %v4359 = vunpack.c.l.b16 %v3814
      %v4360 = vunpack.c.h.b16 %v3814
      %v4361 = vunpack.c.l.b16 %v3815
      %v4362 = vunpack.c.h.b16 %v3815
      %v4363 = vunpack.c.l.b16 %v3816
      %v4364 = vunpack.c.h.b16 %v3816
      %v4365 = vunpack.c.l.b16 %v3817
      %v4366 = vunpack.c.h.b16 %v3817
      %v4367 = vunpack.c.l.b16 %v3818
      %v4368 = vunpack.c.h.b16 %v3818
      %v4369 = vunpack.c.l.b16 %v3819
      %v4370 = vunpack.c.h.b16 %v3819
      %v4371 = vunpack.c.l.b16 %v3820
      %v4372 = vunpack.c.h.b16 %v3820
      %v4373 = vunpack.c.l.b16 %v3821
      %v4374 = vunpack.c.h.b16 %v3821
      %v4375 = vunpack.c.l.b16 %v3822
      %v4376 = vunpack.c.h.b16 %v3822
      %v4377 = vunpack.c.l.b16 %v3823
      %v4378 = vunpack.c.h.b16 %v3823
      %v4379 = vunpack.c.l.b16 %v3824
      %v4380 = vunpack.c.h.b16 %v3824
      %v4381 = vunpack.c.l.b16 %v3825
      %v4382 = vunpack.c.h.b16 %v3825
      %v4383 = vunpack.c.l.b16 %v3826
      %v4384 = vunpack.c.h.b16 %v3826
      %v4385 = vunpack.c.l.b16 %v3827
      %v4386 = vunpack.c.h.b16 %v3827
      %v4387 = vunpack.c.l.b16 %v3828
      %v4388 = vunpack.c.h.b16 %v3828
      %v4389 = vunpack.c.l.b16 %v3829
      %v4390 = vunpack.c.h.b16 %v3829
      %v4391 = vunpack.c.l.b16 %v3830
      %v4392 = vunpack.c.h.b16 %v3830
      %v4393 = vunpack.c.l.b16 %v3831
      %v4394 = vunpack.c.h.b16 %v3831
      %v4395 = vunpack.c.l.b16 %v3832
      %v4396 = vunpack.c.h.b16 %v3832
      %v4397 = vunpack.c.l.b16 %v3833
      %v4398 = vunpack.c.h.b16 %v3833
      %v4399 = vunpack.c.l.b16 %v3834
      %v4400 = vunpack.c.h.b16 %v3834
      %v4401 = vunpack.c.l.b16 %v3835
      %v4402 = vunpack.c.h.b16 %v3835
      %v4403 = vunpack.c.l.b16 %v3836
      %v4404 = vunpack.c.h.b16 %v3836
      %v4405 = vunpack.c.l.b16 %v3837
      %v4406 = vunpack.c.h.b16 %v3837
      %v4407 = vunpack.c.l.b16 %v3838
      %v4408 = vunpack.c.h.b16 %v3838
      %v4409 = vunpack.c.l.b16 %v3839
      %v4410 = vunpack.c.h.b16 %v3839
      %v4411 = vunpack.c.l.b16 %v3840
      %v4412 = vunpack.c.h.b16 %v3840
      %v4413 = vunpack.c.l.b16 %v3841
      %v4414 = vunpack.c.h.b16 %v3841
      %v4415 = vunpack.c.l.b16 %v3842
      %v4416 = vunpack.c.h.b16 %v3842
      %v4417 = vunpack.c.l.b16 %v3843
      %v4418 = vunpack.c.h.b16 %v3843
      %v4419 = vunpack.c.l.b16 %v3844
      %v4420 = vunpack.c.h.b16 %v3844
      %v4421 = vunpack.c.l.b16 %v3845
      %v4422 = vunpack.c.h.b16 %v3845
      %v4423 = vunpack.c.l.b16 %v3846
      %v4424 = vunpack.c.h.b16 %v3846
      %v4425 = vunpack.c.l.b16 %v3847
      %v4426 = vunpack.c.h.b16 %v3847
      %v4427 = vunpack.c.l.b16 %v3848
      %v4428 = vunpack.c.h.b16 %v3848
      %v4429 = vunpack.c.l.b16 %v3849
      %v4430 = vunpack.c.h.b16 %v3849
      %v4431 = vunpack.c.l.b16 %v3850
      %v4432 = vunpack.c.h.b16 %v3850
      %v4433 = vunpack.c.l.b16 %v3851
      %v4434 = vunpack.c.h.b16 %v3851
      %v4435 = vunpack.c.l.b16 %v3852
      %v4436 = vunpack.c.h.b16 %v3852
      %v4437 = vunpack.c.l.b16 %v3853
      %v4438 = vunpack.c.h.b16 %v3853
      %v4439 = vunpack.c.l.b16 %v3854
      %v4440 = vunpack.c.h.b16 %v3854
      %v4441 = vunpack.c.l.b16 %v3855
      %v4442 = vunpack.c.h.b16 %v3855
      %v4443 = vunpack.c.l.b16 %v3856
      %v4444 = vunpack.c.h.b16 %v3856
      %v4445 = vunpack.c.l.b16 %v3857
      %v4446 = vunpack.c.h.b16 %v3857
      %v4447 = vunpack.c.l.b16 %v3858
      %v4448 = vunpack.c.h.b16 %v3858
      %v4449 = vunpack.c.l.b16 %v3859
      %v4450 = vunpack.c.h.b16 %v3859
      %v4451 = vunpack.c.l.b16 %v3860
      %v4452 = vunpack.c.h.b16 %v3860
      %v4453 = vpack.c.b16 %v4073, %v4069
      %v4454 = vpack.c.b16 %v4074, %v4070
      %v4455 = vpack.c.b16 %v4075, %v4071
      %v4456 = vpack.c.b16 %v4076, %v4072
      %v4457 = vpack.c.b16 %v4081, %v4077
      %v4458 = vpack.c.b16 %v4082, %v4078
      %v4459 = vpack.c.b16 %v4083, %v4079
      %v4460 = vpack.c.b16 %v4084, %v4080
      %v4461 = vpack.c.b16 %v4089, %v4085
      %v4462 = vpack.c.b16 %v4090, %v4086
      %v4463 = vpack.c.b16 %v4091, %v4087
      %v4464 = vpack.c.b16 %v4092, %v4088
      %v4465 = vpack.c.b16 %v4097, %v4093
      %v4466 = vpack.c.b16 %v4098, %v4094
      %v4467 = vpack.c.b16 %v4099, %v4095
      %v4468 = vpack.c.b16 %v4100, %v4096
      %v4469 = vpack.c.b16 %v4105, %v4101
      %v4470 = vpack.c.b16 %v4106, %v4102
      %v4471 = vpack.c.b16 %v4107, %v4103
      %v4472 = vpack.c.b16 %v4108, %v4104
      %v4473 = vpack.c.b16 %v4113, %v4109
      %v4474 = vpack.c.b16 %v4114, %v4110
      %v4475 = vpack.c.b16 %v4115, %v4111
      %v4476 = vpack.c.b16 %v4116, %v4112
      %v4477 = vpack.c.b16 %v4121, %v4117
      %v4478 = vpack.c.b16 %v4122, %v4118
      %v4479 = vpack.c.b16 %v4123, %v4119
      %v4480 = vpack.c.b16 %v4124, %v4120
      %v4481 = vpack.c.b16 %v4129, %v4125
      %v4482 = vpack.c.b16 %v4130, %v4126
      %v4483 = vpack.c.b16 %v4131, %v4127
      %v4484 = vpack.c.b16 %v4132, %v4128
      %v4485 = vpack.c.b16 %v4137, %v4133
      %v4486 = vpack.c.b16 %v4138, %v4134
      %v4487 = vpack.c.b16 %v4139, %v4135
      %v4488 = vpack.c.b16 %v4140, %v4136
      %v4489 = vpack.c.b16 %v4145, %v4141
      %v4490 = vpack.c.b16 %v4146, %v4142
      %v4491 = vpack.c.b16 %v4147, %v4143
      %v4492 = vpack.c.b16 %v4148, %v4144
      %v4493 = vpack.c.b16 %v4153, %v4149
      %v4494 = vpack.c.b16 %v4154, %v4150
      %v4495 = vpack.c.b16 %v4155, %v4151
      %v4496 = vpack.c.b16 %v4156, %v4152
      %v4497 = vpack.c.b16 %v4161, %v4157
      %v4498 = vpack.c.b16 %v4162, %v4158
      %v4499 = vpack.c.b16 %v4163, %v4159
      %v4500 = vpack.c.b16 %v4164, %v4160
      %v4501 = vpack.c.b16 %v4169, %v4165
      %v4502 = vpack.c.b16 %v4170, %v4166
      %v4503 = vpack.c.b16 %v4171, %v4167
      %v4504 = vpack.c.b16 %v4172, %v4168
      %v4505 = vpack.c.b16 %v4177, %v4173
      %v4506 = vpack.c.b16 %v4178, %v4174
      %v4507 = vpack.c.b16 %v4179, %v4175
      %v4508 = vpack.c.b16 %v4180, %v4176
      %v4509 = vpack.c.b16 %v4185, %v4181
      %v4510 = vpack.c.b16 %v4186, %v4182
      %v4511 = vpack.c.b16 %v4187, %v4183
      %v4512 = vpack.c.b16 %v4188, %v4184
      %v4513 = vpack.c.b16 %v4193, %v4189
      %v4514 = vpack.c.b16 %v4194, %v4190
      %v4515 = vpack.c.b16 %v4195, %v4191
      %v4516 = vpack.c.b16 %v4196, %v4192
      %v4517 = vpack.c.b16 %v4201, %v4197
      %v4518 = vpack.c.b16 %v4202, %v4198
      %v4519 = vpack.c.b16 %v4203, %v4199
      %v4520 = vpack.c.b16 %v4204, %v4200
      %v4521 = vpack.c.b16 %v4209, %v4205
      %v4522 = vpack.c.b16 %v4210, %v4206
      %v4523 = vpack.c.b16 %v4211, %v4207
      %v4524 = vpack.c.b16 %v4212, %v4208
      %v4525 = vpack.c.b16 %v4217, %v4213
      %v4526 = vpack.c.b16 %v4218, %v4214
      %v4527 = vpack.c.b16 %v4219, %v4215
      %v4528 = vpack.c.b16 %v4220, %v4216
      %v4529 = vpack.c.b16 %v4225, %v4221
      %v4530 = vpack.c.b16 %v4226, %v4222
      %v4531 = vpack.c.b16 %v4227, %v4223
      %v4532 = vpack.c.b16 %v4228, %v4224
      %v4533 = vpack.c.b16 %v4233, %v4229
      %v4534 = vpack.c.b16 %v4234, %v4230
      %v4535 = vpack.c.b16 %v4235, %v4231
      %v4536 = vpack.c.b16 %v4236, %v4232
      %v4537 = vpack.c.b16 %v4241, %v4237
      %v4538 = vpack.c.b16 %v4242, %v4238
      %v4539 = vpack.c.b16 %v4243, %v4239
      %v4540 = vpack.c.b16 %v4244, %v4240
      %v4541 = vpack.c.b16 %v4249, %v4245
      %v4542 = vpack.c.b16 %v4250, %v4246
      %v4543 = vpack.c.b16 %v4251, %v4247
      %v4544 = vpack.c.b16 %v4252, %v4248
      %v4545 = vpack.c.b16 %v4257, %v4253
      %v4546 = vpack.c.b16 %v4258, %v4254
      %v4547 = vpack.c.b16 %v4259, %v4255
      %v4548 = vpack.c.b16 %v4260, %v4256
      %v4549 = vpack.c.b16 %v4265, %v4261
      %v4550 = vpack.c.b16 %v4266, %v4262
      %v4551 = vpack.c.b16 %v4267, %v4263
      %v4552 = vpack.c.b16 %v4268, %v4264
      %v4553 = vpack.c.b16 %v4273, %v4269
      %v4554 = vpack.c.b16 %v4274, %v4270
      %v4555 = vpack.c.b16 %v4275, %v4271
      %v4556 = vpack.c.b16 %v4276, %v4272
      %v4557 = vpack.c.b16 %v4281, %v4277
      %v4558 = vpack.c.b16 %v4282, %v4278
      %v4559 = vpack.c.b16 %v4283, %v4279
      %v4560 = vpack.c.b16 %v4284, %v4280
      %v4561 = vpack.c.b16 %v4289, %v4285
      %v4562 = vpack.c.b16 %v4290, %v4286
      %v4563 = vpack.c.b16 %v4291, %v4287
      %v4564 = vpack.c.b16 %v4292, %v4288
      %v4565 = vpack.c.b16 %v4297, %v4293
      %v4566 = vpack.c.b16 %v4298, %v4294
      %v4567 = vpack.c.b16 %v4299, %v4295
      %v4568 = vpack.c.b16 %v4300, %v4296
      %v4569 = vpack.c.b16 %v4305, %v4301
      %v4570 = vpack.c.b16 %v4306, %v4302
      %v4571 = vpack.c.b16 %v4307, %v4303
      %v4572 = vpack.c.b16 %v4308, %v4304
      %v4573 = vpack.c.b16 %v4313, %v4309
      %v4574 = vpack.c.b16 %v4314, %v4310
      %v4575 = vpack.c.b16 %v4315, %v4311
      %v4576 = vpack.c.b16 %v4316, %v4312
      %v4577 = vpack.c.b16 %v4321, %v4317
      %v4578 = vpack.c.b16 %v4322, %v4318
      %v4579 = vpack.c.b16 %v4323, %v4319
      %v4580 = vpack.c.b16 %v4324, %v4320
      %v4581 = vpack.c.b16 %v4329, %v4325
      %v4582 = vpack.c.b16 %v4330, %v4326
      %v4583 = vpack.c.b16 %v4331, %v4327
      %v4584 = vpack.c.b16 %v4332, %v4328
      %v4585 = vpack.c.b16 %v4337, %v4333
      %v4586 = vpack.c.b16 %v4338, %v4334
      %v4587 = vpack.c.b16 %v4339, %v4335
      %v4588 = vpack.c.b16 %v4340, %v4336
      %v4589 = vpack.c.b16 %v4345, %v4341
      %v4590 = vpack.c.b16 %v4346, %v4342
      %v4591 = vpack.c.b16 %v4347, %v4343
      %v4592 = vpack.c.b16 %v4348, %v4344
      %v4593 = vpack.c.b16 %v4353, %v4349
      %v4594 = vpack.c.b16 %v4354, %v4350
      %v4595 = vpack.c.b16 %v4355, %v4351
      %v4596 = vpack.c.b16 %v4356, %v4352
      %v4597 = vpack.c.b16 %v4361, %v4357
      %v4598 = vpack.c.b16 %v4362, %v4358
      %v4599 = vpack.c.b16 %v4363, %v4359
      %v4600 = vpack.c.b16 %v4364, %v4360
      %v4601 = vpack.c.b16 %v4369, %v4365
      %v4602 = vpack.c.b16 %v4370, %v4366
      %v4603 = vpack.c.b16 %v4371, %v4367
      %v4604 = vpack.c.b16 %v4372, %v4368
      %v4605 = vpack.c.b16 %v4377, %v4373
      %v4606 = vpack.c.b16 %v4378, %v4374
      %v4607 = vpack.c.b16 %v4379, %v4375
      %v4608 = vpack.c.b16 %v4380, %v4376
      %v4609 = vpack.c.b16 %v4385, %v4381
      %v4610 = vpack.c.b16 %v4386, %v4382
      %v4611 = vpack.c.b16 %v4387, %v4383
      %v4612 = vpack.c.b16 %v4388, %v4384
      %v4613 = vpack.c.b16 %v4393, %v4389
      %v4614 = vpack.c.b16 %v4394, %v4390
      %v4615 = vpack.c.b16 %v4395, %v4391
      %v4616 = vpack.c.b16 %v4396, %v4392
      %v4617 = vpack.c.b16 %v4401, %v4397
      %v4618 = vpack.c.b16 %v4402, %v4398
      %v4619 = vpack.c.b16 %v4403, %v4399
      %v4620 = vpack.c.b16 %v4404, %v4400
      %v4621 = vpack.c.b16 %v4409, %v4405
      %v4622 = vpack.c.b16 %v4410, %v4406
      %v4623 = vpack.c.b16 %v4411, %v4407
      %v4624 = vpack.c.b16 %v4412, %v4408
      %v4625 = vpack.c.b16 %v4417, %v4413
      %v4626 = vpack.c.b16 %v4418, %v4414
      %v4627 = vpack.c.b16 %v4419, %v4415
      %v4628 = vpack.c.b16 %v4420, %v4416
      %v4629 = vpack.c.b16 %v4425, %v4421
      %v4630 = vpack.c.b16 %v4426, %v4422
      %v4631 = vpack.c.b16 %v4427, %v4423
      %v4632 = vpack.c.b16 %v4428, %v4424
      %v4633 = vpack.c.b16 %v4433, %v4429
      %v4634 = vpack.c.b16 %v4434, %v4430
      %v4635 = vpack.c.b16 %v4435, %v4431
      %v4636 = vpack.c.b16 %v4436, %v4432
      %v4637 = vpack.c.b16 %v4441, %v4437
      %v4638 = vpack.c.b16 %v4442, %v4438
      %v4639 = vpack.c.b16 %v4443, %v4439
      %v4640 = vpack.c.b16 %v4444, %v4440
      %v4641 = vpack.c.b16 %v4449, %v4445
      %v4642 = vpack.c.b16 %v4450, %v4446
      %v4643 = vpack.c.b16 %v4451, %v4447
      %v4644 = vpack.c.b16 %v4452, %v4448
      %4837 = vmatpush.bf16.msra.mxu0 %v4481
      %4838 = vmatpush.bf16.msra.mxu0 %v4477
      %4839 = vmatpush.bf16.msra.mxu0 %v4473
      %4840 = vmatpush.bf16.msra.mxu0 %v4469
      %4841 = vmatpush.bf16.msra.mxu0 %v4465
      %4842 = vmatpush.bf16.msra.mxu0 %v4461
      %4843 = vmatpush.bf16.msra.mxu0 %v4457
      %4844 = vmatpush.bf16.msra.mxu0 %v4453
      %4845 = vmatmul.bf16.gmra.mxu0 %v3861
      %v4846 = vpop.f32.mrf.mxu0
      %v4847 = vadd.f32 %v3869, %v4846
      %v4848 = vpop.f32.mrf.mxu0
      %4849 = vdwg.mxu0
      %4850 = vmatpush.bf16.msra.mxu0 %v4513
      %4851 = vmatpush.bf16.msra.mxu0 %v4509
      %4852 = vmatpush.bf16.msra.mxu0 %v4505
      %4853 = vmatpush.bf16.msra.mxu0 %v4501
      %4854 = vmatpush.bf16.msra.mxu0 %v4497
      %4855 = vmatpush.bf16.msra.mxu0 %v4493
      %4856 = vmatpush.bf16.msra.mxu0 %v4489
      %4857 = vmatpush.bf16.msra.mxu0 %v4485
      %4858 = vmatmul.bf16.gmra.mxu0 %v3862
      %v4859 = vpop.f32.mrf.mxu0
      %v4860 = vadd.f32 %v4847, %v4859
      %v4861 = vpop.f32.mrf.mxu0
      %4862 = vdwg.mxu0
      %4863 = vmatpush.bf16.msra.mxu0 %v4545
      %4864 = vmatpush.bf16.msra.mxu0 %v4541
      %4865 = vmatpush.bf16.msra.mxu0 %v4537
      %4866 = vmatpush.bf16.msra.mxu0 %v4533
      %4867 = vmatpush.bf16.msra.mxu0 %v4529
      %4868 = vmatpush.bf16.msra.mxu0 %v4525
      %4869 = vmatpush.bf16.msra.mxu0 %v4521
      %4870 = vmatpush.bf16.msra.mxu0 %v4517
      %4871 = vmatmul.bf16.gmra.mxu0 %v3863
      %v4872 = vpop.f32.mrf.mxu0
      %v4873 = vadd.f32 %v4860, %v4872
      %v4874 = vpop.f32.mrf.mxu0
      %4875 = vdwg.mxu0
      %4876 = vmatpush.bf16.msra.mxu0 %v4577
      %4877 = vmatpush.bf16.msra.mxu0 %v4573
      %4878 = vmatpush.bf16.msra.mxu0 %v4569
      %4879 = vmatpush.bf16.msra.mxu0 %v4565
      %4880 = vmatpush.bf16.msra.mxu0 %v4561
      %4881 = vmatpush.bf16.msra.mxu0 %v4557
      %4882 = vmatpush.bf16.msra.mxu0 %v4553
      %4883 = vmatpush.bf16.msra.mxu0 %v4549
      %4884 = vmatmul.bf16.gmra.mxu0 %v3864
      %v4885 = vpop.f32.mrf.mxu0
      %v4886 = vadd.f32 %v4873, %v4885
      %v4887 = vpop.f32.mrf.mxu0
      %4888 = vdwg.mxu0
      %4889 = vmatpush.bf16.msra.mxu0 %v4609
      %4890 = vmatpush.bf16.msra.mxu0 %v4605
      %4891 = vmatpush.bf16.msra.mxu0 %v4601
      %4892 = vmatpush.bf16.msra.mxu0 %v4597
      %4893 = vmatpush.bf16.msra.mxu0 %v4593
      %4894 = vmatpush.bf16.msra.mxu0 %v4589
      %4895 = vmatpush.bf16.msra.mxu0 %v4585
      %4896 = vmatpush.bf16.msra.mxu0 %v4581
      %4897 = vmatmul.bf16.gmra.mxu0 %v3865
      %v4898 = vpop.f32.mrf.mxu0
      %v4899 = vadd.f32 %v4886, %v4898
      %v4900 = vpop.f32.mrf.mxu0
      %4901 = vdwg.mxu0
      %4902 = vmatpush.bf16.msra.mxu0 %v4641
      %4903 = vmatpush.bf16.msra.mxu0 %v4637
      %4904 = vmatpush.bf16.msra.mxu0 %v4633
      %4905 = vmatpush.bf16.msra.mxu0 %v4629
      %4906 = vmatpush.bf16.msra.mxu0 %v4625
      %4907 = vmatpush.bf16.msra.mxu0 %v4621
      %4908 = vmatpush.bf16.msra.mxu0 %v4617
      %4909 = vmatpush.bf16.msra.mxu0 %v4613
      %4910 = vmatmul.bf16.gmra.mxu0 %v3866
      %v4911 = vpop.f32.mrf.mxu0
      %v4912 = vadd.f32 %v4899, %v4911
      %v4913 = vpop.f32.mrf.mxu0
      %4914 = vdwg.mxu0
      %4915 = vmatpush.bf16.msra.mxu0 %v4482
      %4916 = vmatpush.bf16.msra.mxu0 %v4478
      %4917 = vmatpush.bf16.msra.mxu0 %v4474
      %4918 = vmatpush.bf16.msra.mxu0 %v4470
      %4919 = vmatpush.bf16.msra.mxu0 %v4466
      %4920 = vmatpush.bf16.msra.mxu0 %v4462
      %4921 = vmatpush.bf16.msra.mxu0 %v4458
      %4922 = vmatpush.bf16.msra.mxu0 %v4454
      %4923 = vmatmul.bf16.gmra.mxu0 %v3861
      %v4924 = vpop.f32.mrf.mxu0
      %v4925 = vadd.f32 %v3870, %v4924
      %v4926 = vpop.f32.mrf.mxu0
      %4927 = vdwg.mxu0
      %4928 = vmatpush.bf16.msra.mxu0 %v4514
      %4929 = vmatpush.bf16.msra.mxu0 %v4510
      %4930 = vmatpush.bf16.msra.mxu0 %v4506
      %4931 = vmatpush.bf16.msra.mxu0 %v4502
      %4932 = vmatpush.bf16.msra.mxu0 %v4498
      %4933 = vmatpush.bf16.msra.mxu0 %v4494
      %4934 = vmatpush.bf16.msra.mxu0 %v4490
      %4935 = vmatpush.bf16.msra.mxu0 %v4486
      %4936 = vmatmul.bf16.gmra.mxu0 %v3862
      %v4937 = vpop.f32.mrf.mxu0
      %v4938 = vadd.f32 %v4925, %v4937
      %v4939 = vpop.f32.mrf.mxu0
      %4940 = vdwg.mxu0
      %4941 = vmatpush.bf16.msra.mxu0 %v4546
      %4942 = vmatpush.bf16.msra.mxu0 %v4542
      %4943 = vmatpush.bf16.msra.mxu0 %v4538
      %4944 = vmatpush.bf16.msra.mxu0 %v4534
      %4945 = vmatpush.bf16.msra.mxu0 %v4530
      %4946 = vmatpush.bf16.msra.mxu0 %v4526
      %4947 = vmatpush.bf16.msra.mxu0 %v4522
      %4948 = vmatpush.bf16.msra.mxu0 %v4518
      %4949 = vmatmul.bf16.gmra.mxu0 %v3863
      %v4950 = vpop.f32.mrf.mxu0
      %v4951 = vadd.f32 %v4938, %v4950
      %v4952 = vpop.f32.mrf.mxu0
      %4953 = vdwg.mxu0
      %4954 = vmatpush.bf16.msra.mxu0 %v4578
      %4955 = vmatpush.bf16.msra.mxu0 %v4574
      %4956 = vmatpush.bf16.msra.mxu0 %v4570
      %4957 = vmatpush.bf16.msra.mxu0 %v4566
      %4958 = vmatpush.bf16.msra.mxu0 %v4562
      %4959 = vmatpush.bf16.msra.mxu0 %v4558
      %4960 = vmatpush.bf16.msra.mxu0 %v4554
      %4961 = vmatpush.bf16.msra.mxu0 %v4550
      %4962 = vmatmul.bf16.gmra.mxu0 %v3864
      %v4963 = vpop.f32.mrf.mxu0
      %v4964 = vadd.f32 %v4951, %v4963
      %v4965 = vpop.f32.mrf.mxu0
      %4966 = vdwg.mxu0
      %4967 = vmatpush.bf16.msra.mxu0 %v4610
      %4968 = vmatpush.bf16.msra.mxu0 %v4606
      %4969 = vmatpush.bf16.msra.mxu0 %v4602
      %4970 = vmatpush.bf16.msra.mxu0 %v4598
      %4971 = vmatpush.bf16.msra.mxu0 %v4594
      %4972 = vmatpush.bf16.msra.mxu0 %v4590
      %4973 = vmatpush.bf16.msra.mxu0 %v4586
      %4974 = vmatpush.bf16.msra.mxu0 %v4582
      %4975 = vmatmul.bf16.gmra.mxu0 %v3865
      %v4976 = vpop.f32.mrf.mxu0
      %v4977 = vadd.f32 %v4964, %v4976
      %v4978 = vpop.f32.mrf.mxu0
      %4979 = vdwg.mxu0
      %4980 = vmatpush.bf16.msra.mxu0 %v4642
      %4981 = vmatpush.bf16.msra.mxu0 %v4638
      %4982 = vmatpush.bf16.msra.mxu0 %v4634
      %4983 = vmatpush.bf16.msra.mxu0 %v4630
      %4984 = vmatpush.bf16.msra.mxu0 %v4626
      %4985 = vmatpush.bf16.msra.mxu0 %v4622
      %4986 = vmatpush.bf16.msra.mxu0 %v4618
      %4987 = vmatpush.bf16.msra.mxu0 %v4614
      %4988 = vmatmul.bf16.gmra.mxu0 %v3866
      %v4989 = vpop.f32.mrf.mxu0
      %v4990 = vadd.f32 %v4977, %v4989
      %v4991 = vpop.f32.mrf.mxu0
      %4992 = vdwg.mxu0
      %4993 = vmatpush.bf16.msra.mxu0 %v4483
      %4994 = vmatpush.bf16.msra.mxu0 %v4479
      %4995 = vmatpush.bf16.msra.mxu0 %v4475
      %4996 = vmatpush.bf16.msra.mxu0 %v4471
      %4997 = vmatpush.bf16.msra.mxu0 %v4467
      %4998 = vmatpush.bf16.msra.mxu0 %v4463
      %4999 = vmatpush.bf16.msra.mxu0 %v4459
      %5000 = vmatpush.bf16.msra.mxu0 %v4455
      %5001 = vmatmul.bf16.gmra.mxu0 %v3861
      %v5002 = vpop.f32.mrf.mxu0
      %v5003 = vadd.f32 %v3871, %v5002
      %v5004 = vpop.f32.mrf.mxu0
      %5005 = vdwg.mxu0
      %5006 = vmatpush.bf16.msra.mxu0 %v4515
      %5007 = vmatpush.bf16.msra.mxu0 %v4511
      %5008 = vmatpush.bf16.msra.mxu0 %v4507
      %5009 = vmatpush.bf16.msra.mxu0 %v4503
      %5010 = vmatpush.bf16.msra.mxu0 %v4499
      %5011 = vmatpush.bf16.msra.mxu0 %v4495
      %5012 = vmatpush.bf16.msra.mxu0 %v4491
      %5013 = vmatpush.bf16.msra.mxu0 %v4487
      %5014 = vmatmul.bf16.gmra.mxu0 %v3862
      %v5015 = vpop.f32.mrf.mxu0
      %v5016 = vadd.f32 %v5003, %v5015
      %v5017 = vpop.f32.mrf.mxu0
      %5018 = vdwg.mxu0
      %5019 = vmatpush.bf16.msra.mxu0 %v4547
      %5020 = vmatpush.bf16.msra.mxu0 %v4543
      %5021 = vmatpush.bf16.msra.mxu0 %v4539
      %5022 = vmatpush.bf16.msra.mxu0 %v4535
      %5023 = vmatpush.bf16.msra.mxu0 %v4531
      %5024 = vmatpush.bf16.msra.mxu0 %v4527
      %5025 = vmatpush.bf16.msra.mxu0 %v4523
      %5026 = vmatpush.bf16.msra.mxu0 %v4519
      %5027 = vmatmul.bf16.gmra.mxu0 %v3863
      %v5028 = vpop.f32.mrf.mxu0
      %v5029 = vadd.f32 %v5016, %v5028
      %v5030 = vpop.f32.mrf.mxu0
      %5031 = vdwg.mxu0
      %5032 = vmatpush.bf16.msra.mxu0 %v4579
      %5033 = vmatpush.bf16.msra.mxu0 %v4575
      %5034 = vmatpush.bf16.msra.mxu0 %v4571
      %5035 = vmatpush.bf16.msra.mxu0 %v4567
      %5036 = vmatpush.bf16.msra.mxu0 %v4563
      %5037 = vmatpush.bf16.msra.mxu0 %v4559
      %5038 = vmatpush.bf16.msra.mxu0 %v4555
      %5039 = vmatpush.bf16.msra.mxu0 %v4551
      %5040 = vmatmul.bf16.gmra.mxu0 %v3864
      %v5041 = vpop.f32.mrf.mxu0
      %v5042 = vadd.f32 %v5029, %v5041
      %v5043 = vpop.f32.mrf.mxu0
      %5044 = vdwg.mxu0
      %5045 = vmatpush.bf16.msra.mxu0 %v4611
      %5046 = vmatpush.bf16.msra.mxu0 %v4607
      %5047 = vmatpush.bf16.msra.mxu0 %v4603
      %5048 = vmatpush.bf16.msra.mxu0 %v4599
      %5049 = vmatpush.bf16.msra.mxu0 %v4595
      %5050 = vmatpush.bf16.msra.mxu0 %v4591
      %5051 = vmatpush.bf16.msra.mxu0 %v4587
      %5052 = vmatpush.bf16.msra.mxu0 %v4583
      %5053 = vmatmul.bf16.gmra.mxu0 %v3865
      %v5054 = vpop.f32.mrf.mxu0
      %v5055 = vadd.f32 %v5042, %v5054
      %v5056 = vpop.f32.mrf.mxu0
      %5057 = vdwg.mxu0
      %5058 = vmatpush.bf16.msra.mxu0 %v4643
      %5059 = vmatpush.bf16.msra.mxu0 %v4639
      %5060 = vmatpush.bf16.msra.mxu0 %v4635
      %5061 = vmatpush.bf16.msra.mxu0 %v4631
      %5062 = vmatpush.bf16.msra.mxu0 %v4627
      %5063 = vmatpush.bf16.msra.mxu0 %v4623
      %5064 = vmatpush.bf16.msra.mxu0 %v4619
      %5065 = vmatpush.bf16.msra.mxu0 %v4615
      %5066 = vmatmul.bf16.gmra.mxu0 %v3866
      %v5067 = vpop.f32.mrf.mxu0
      %v5068 = vadd.f32 %v5055, %v5067
      %v5069 = vpop.f32.mrf.mxu0
      %5070 = vdwg.mxu0
      %5071 = vmatpush.bf16.msra.mxu0 %v4484
      %5072 = vmatpush.bf16.msra.mxu0 %v4480
      %5073 = vmatpush.bf16.msra.mxu0 %v4476
      %5074 = vmatpush.bf16.msra.mxu0 %v4472
      %5075 = vmatpush.bf16.msra.mxu0 %v4468
      %5076 = vmatpush.bf16.msra.mxu0 %v4464
      %5077 = vmatpush.bf16.msra.mxu0 %v4460
      %5078 = vmatpush.bf16.msra.mxu0 %v4456
      %5079 = vmatmul.bf16.gmra.mxu0 %v3861
      %v5080 = vpop.f32.mrf.mxu0
      %v5081 = vadd.f32 %v3872, %v5080
      %v5082 = vpop.f32.mrf.mxu0
      %5083 = vdwg.mxu0
      %5084 = vmatpush.bf16.msra.mxu0 %v4516
      %5085 = vmatpush.bf16.msra.mxu0 %v4512
      %5086 = vmatpush.bf16.msra.mxu0 %v4508
      %5087 = vmatpush.bf16.msra.mxu0 %v4504
      %5088 = vmatpush.bf16.msra.mxu0 %v4500
      %5089 = vmatpush.bf16.msra.mxu0 %v4496
      %5090 = vmatpush.bf16.msra.mxu0 %v4492
      %5091 = vmatpush.bf16.msra.mxu0 %v4488
      %5092 = vmatmul.bf16.gmra.mxu0 %v3862
      %v5093 = vpop.f32.mrf.mxu0
      %v5094 = vadd.f32 %v5081, %v5093
      %v5095 = vpop.f32.mrf.mxu0
      %5096 = vdwg.mxu0
      %5097 = vmatpush.bf16.msra.mxu0 %v4548
      %5098 = vmatpush.bf16.msra.mxu0 %v4544
      %5099 = vmatpush.bf16.msra.mxu0 %v4540
      %5100 = vmatpush.bf16.msra.mxu0 %v4536
      %5101 = vmatpush.bf16.msra.mxu0 %v4532
      %5102 = vmatpush.bf16.msra.mxu0 %v4528
      %5103 = vmatpush.bf16.msra.mxu0 %v4524
      %5104 = vmatpush.bf16.msra.mxu0 %v4520
      %5105 = vmatmul.bf16.gmra.mxu0 %v3863
      %v5106 = vpop.f32.mrf.mxu0
      %v5107 = vadd.f32 %v5094, %v5106
      %v5108 = vpop.f32.mrf.mxu0
      %5109 = vdwg.mxu0
      %5110 = vmatpush.bf16.msra.mxu0 %v4580
      %5111 = vmatpush.bf16.msra.mxu0 %v4576
      %5112 = vmatpush.bf16.msra.mxu0 %v4572
      %5113 = vmatpush.bf16.msra.mxu0 %v4568
      %5114 = vmatpush.bf16.msra.mxu0 %v4564
      %5115 = vmatpush.bf16.msra.mxu0 %v4560
      %5116 = vmatpush.bf16.msra.mxu0 %v4556
      %5117 = vmatpush.bf16.msra.mxu0 %v4552
      %5118 = vmatmul.bf16.gmra.mxu0 %v3864
      %v5119 = vpop.f32.mrf.mxu0
      %v5120 = vadd.f32 %v5107, %v5119
      %v5121 = vpop.f32.mrf.mxu0
      %5122 = vdwg.mxu0
      %5123 = vmatpush.bf16.msra.mxu0 %v4612
      %5124 = vmatpush.bf16.msra.mxu0 %v4608
      %5125 = vmatpush.bf16.msra.mxu0 %v4604
      %5126 = vmatpush.bf16.msra.mxu0 %v4600
      %5127 = vmatpush.bf16.msra.mxu0 %v4596
      %5128 = vmatpush.bf16.msra.mxu0 %v4592
      %5129 = vmatpush.bf16.msra.mxu0 %v4588
      %5130 = vmatpush.bf16.msra.mxu0 %v4584
      %5131 = vmatmul.bf16.gmra.mxu0 %v3865
      %v5132 = vpop.f32.mrf.mxu0
      %v5133 = vadd.f32 %v5120, %v5132
      %v5134 = vpop.f32.mrf.mxu0
      %5135 = vdwg.mxu0
      %5136 = vmatpush.bf16.msra.mxu0 %v4644
      %5137 = vmatpush.bf16.msra.mxu0 %v4640
      %5138 = vmatpush.bf16.msra.mxu0 %v4636
      %5139 = vmatpush.bf16.msra.mxu0 %v4632
      %5140 = vmatpush.bf16.msra.mxu0 %v4628
      %5141 = vmatpush.bf16.msra.mxu0 %v4624
      %5142 = vmatpush.bf16.msra.mxu0 %v4620
      %5143 = vmatpush.bf16.msra.mxu0 %v4616
      %5144 = vmatmul.bf16.gmra.mxu0 %v3866
      %v5145 = vpop.f32.mrf.mxu0
      %v5146 = vadd.f32 %v5133, %v5145
      %v5147 = vpop.f32.mrf.mxu0
      %5148 = vdwg.mxu0
      %v5149 = vmax.f32 %v4912, 0.0
      %v5150 = vmax.f32 %v4990, 0.0
      %v5151 = vmax.f32 %v5068, 0.0
      %v5152 = vmax.f32 %v5146, 0.0
      %v5153 = vld [vmem:[%s57] sm:$0xf]
      %v5154 = vld [vmem:[%s57 + $0x4] sm:$0xf]
      %v5155 = vld [vmem:[%s57 + $0x8] sm:$0xf]
      %v5156 = vld [vmem:[%s57 + $0xc] sm:$0xf]
      %v5157 = vld [vmem:[%s57 + $0x10] sm:$0xf]
      %v5158 = vld [vmem:[%s57 + $0x14] sm:$0xf]
      %v5159 = vld [vmem:[%s57 + $0x18] sm:$0xf]
      %v5160 = vld [vmem:[%s57 + $0x1c] sm:$0xf]
      %v5161 = vld [vmem:[%s57 + $0x20] sm:$0xf]
      %v5162 = vld [vmem:[%s57 + $0x24] sm:$0xf]
      %v5163 = vld [vmem:[%s57 + $0x28] sm:$0xf]
      %v5164 = vld [vmem:[%s57 + $0x2c] sm:$0xf]
      %v5165 = vld [vmem:[%s57 + $0x30] sm:$0xf]
      %v5166 = vld [vmem:[%s57 + $0x34] sm:$0xf]
      %v5167 = vld [vmem:[%s57 + $0x38] sm:$0xf]
      %v5168 = vld [vmem:[%s57 + $0x3c] sm:$0xf]
      %v5169 = vld [vmem:[%s57 + $0x40] sm:$0xf]
      %v5170 = vld [vmem:[%s57 + $0x44] sm:$0xf]
      %v5171 = vld [vmem:[%s57 + $0x48] sm:$0xf]
      %v5172 = vld [vmem:[%s57 + $0x4c] sm:$0xf]
      %v5173 = vld [vmem:[%s57 + $0x50] sm:$0xf]
      %v5174 = vld [vmem:[%s57 + $0x54] sm:$0xf]
      %v5175 = vld [vmem:[%s57 + $0x58] sm:$0xf]
      %v5176 = vld [vmem:[%s57 + $0x5c] sm:$0xf]
      %v5177 = vld [vmem:[%s57 + $0x60] sm:$0xf]
      %v5178 = vld [vmem:[%s57 + $0x64] sm:$0xf]
      %v5179 = vld [vmem:[%s57 + $0x68] sm:$0xf]
      %v5180 = vld [vmem:[%s57 + $0x6c] sm:$0xf]
      %v5181 = vld [vmem:[%s57 + $0x70] sm:$0xf]
      %v5182 = vld [vmem:[%s57 + $0x74] sm:$0xf]
      %v5183 = vld [vmem:[%s57 + $0x78] sm:$0xf]
      %v5184 = vld [vmem:[%s57 + $0x7c] sm:$0xf]
      %v5185 = vld [vmem:[%s57 + $0x80] sm:$0xf]
      %v5186 = vld [vmem:[%s57 + $0x84] sm:$0xf]
      %v5187 = vld [vmem:[%s57 + $0x88] sm:$0xf]
      %v5188 = vld [vmem:[%s57 + $0x8c] sm:$0xf]
      %v5189 = vld [vmem:[%s57 + $0x90] sm:$0xf]
      %v5190 = vld [vmem:[%s57 + $0x94] sm:$0xf]
      %v5191 = vld [vmem:[%s57 + $0x98] sm:$0xf]
      %v5192 = vld [vmem:[%s57 + $0x9c] sm:$0xf]
      %v5193 = vld [vmem:[%s57 + $0xa0] sm:$0xf]
      %v5194 = vld [vmem:[%s57 + $0xa4] sm:$0xf]
      %v5195 = vld [vmem:[%s57 + $0xa8] sm:$0xf]
      %v5196 = vld [vmem:[%s57 + $0xac] sm:$0xf]
      %v5197 = vld [vmem:[%s57 + $0xb0] sm:$0xf]
      %v5198 = vld [vmem:[%s57 + $0xb4] sm:$0xf]
      %v5199 = vld [vmem:[%s57 + $0xb8] sm:$0xf]
      %v5200 = vld [vmem:[%s57 + $0xbc] sm:$0xf]
      %v5201 = vld [vmem:[%s57 + $0xc0] sm:$0xf]
      %v5202 = vld [vmem:[%s57 + $0xc4] sm:$0xf]
      %v5203 = vld [vmem:[%s57 + $0xc8] sm:$0xf]
      %v5204 = vld [vmem:[%s57 + $0xcc] sm:$0xf]
      %v5205 = vld [vmem:[%s57 + $0xd0] sm:$0xf]
      %v5206 = vld [vmem:[%s57 + $0xd4] sm:$0xf]
      %v5207 = vld [vmem:[%s57 + $0xd8] sm:$0xf]
      %v5208 = vld [vmem:[%s57 + $0xdc] sm:$0xf]
      %v5209 = vld [vmem:[%s57 + $0xe0] sm:$0xf]
      %v5210 = vld [vmem:[%s57 + $0xe4] sm:$0xf]
      %v5211 = vld [vmem:[%s57 + $0xe8] sm:$0xf]
      %v5212 = vld [vmem:[%s57 + $0xec] sm:$0xf]
      %v5213 = vld [vmem:[%s57 + $0xf0] sm:$0xf]
      %v5214 = vld [vmem:[%s57 + $0xf4] sm:$0xf]
      %v5215 = vld [vmem:[%s57 + $0xf8] sm:$0xf]
      %v5216 = vld [vmem:[%s57 + $0xfc] sm:$0xf]
      %v5217 = vpack.c.bf16 %v5149, %v5149
      %v5218 = vpack.c.bf16 %v5150, %v5150
      %v5219 = vpack.c.bf16 %v5151, %v5151
      %v5220 = vpack.c.bf16 %v5152, %v5152
      %v5221 = vld [vmem:[%s55] sm:$0x1]
      %v5223 = vperm.slane %v5221, 0
      %v5289 = vunpack.c.l.b16 %v5153
      %v5290 = vunpack.c.l.b16 %v5154
      %v5291 = vunpack.c.l.b16 %v5155
      %v5292 = vunpack.c.l.b16 %v5156
      %v5293 = vunpack.c.l.b16 %v5157
      %v5294 = vunpack.c.l.b16 %v5158
      %v5295 = vunpack.c.l.b16 %v5159
      %v5296 = vunpack.c.l.b16 %v5160
      %v5297 = vunpack.c.l.b16 %v5161
      %v5298 = vunpack.c.l.b16 %v5162
      %v5299 = vunpack.c.l.b16 %v5163
      %v5300 = vunpack.c.l.b16 %v5164
      %v5301 = vunpack.c.l.b16 %v5165
      %v5302 = vunpack.c.l.b16 %v5166
      %v5303 = vunpack.c.l.b16 %v5167
      %v5304 = vunpack.c.l.b16 %v5168
      %v5305 = vunpack.c.l.b16 %v5169
      %v5306 = vunpack.c.l.b16 %v5170
      %v5307 = vunpack.c.l.b16 %v5171
      %v5308 = vunpack.c.l.b16 %v5172
      %v5309 = vunpack.c.l.b16 %v5173
      %v5310 = vunpack.c.l.b16 %v5174
      %v5311 = vunpack.c.l.b16 %v5175
      %v5312 = vunpack.c.l.b16 %v5176
      %v5313 = vunpack.c.l.b16 %v5177
      %v5314 = vunpack.c.l.b16 %v5178
      %v5315 = vunpack.c.l.b16 %v5179
      %v5316 = vunpack.c.l.b16 %v5180
      %v5317 = vunpack.c.l.b16 %v5181
      %v5318 = vunpack.c.l.b16 %v5182
      %v5319 = vunpack.c.l.b16 %v5183
      %v5320 = vunpack.c.l.b16 %v5184
      %v5321 = vunpack.c.l.b16 %v5185
      %v5322 = vunpack.c.l.b16 %v5186
      %v5323 = vunpack.c.l.b16 %v5187
      %v5324 = vunpack.c.l.b16 %v5188
      %v5325 = vunpack.c.l.b16 %v5189
      %v5326 = vunpack.c.l.b16 %v5190
      %v5327 = vunpack.c.l.b16 %v5191
      %v5328 = vunpack.c.l.b16 %v5192
      %v5329 = vunpack.c.l.b16 %v5193
      %v5330 = vunpack.c.l.b16 %v5194
      %v5331 = vunpack.c.l.b16 %v5195
      %v5332 = vunpack.c.l.b16 %v5196
      %v5333 = vunpack.c.l.b16 %v5197
      %v5334 = vunpack.c.l.b16 %v5198
      %v5335 = vunpack.c.l.b16 %v5199
      %v5336 = vunpack.c.l.b16 %v5200
      %v5337 = vunpack.c.l.b16 %v5201
      %v5338 = vunpack.c.l.b16 %v5202
      %v5339 = vunpack.c.l.b16 %v5203
      %v5340 = vunpack.c.l.b16 %v5204
      %v5341 = vunpack.c.l.b16 %v5205
      %v5342 = vunpack.c.l.b16 %v5206
      %v5343 = vunpack.c.l.b16 %v5207
      %v5344 = vunpack.c.l.b16 %v5208
      %v5345 = vunpack.c.l.b16 %v5209
      %v5346 = vunpack.c.l.b16 %v5210
      %v5347 = vunpack.c.l.b16 %v5211
      %v5348 = vunpack.c.l.b16 %v5212
      %v5349 = vunpack.c.l.b16 %v5213
      %v5350 = vunpack.c.l.b16 %v5214
      %v5351 = vunpack.c.l.b16 %v5215
      %v5352 = vunpack.c.l.b16 %v5216
      %v5353 = vpack.c.b16 %v5290, %v5289
      %v5354 = vpack.c.b16 %v5292, %v5291
      %v5355 = vpack.c.b16 %v5294, %v5293
      %v5356 = vpack.c.b16 %v5296, %v5295
      %v5357 = vpack.c.b16 %v5298, %v5297
      %v5358 = vpack.c.b16 %v5300, %v5299
      %v5359 = vpack.c.b16 %v5302, %v5301
      %v5360 = vpack.c.b16 %v5304, %v5303
      %v5361 = vpack.c.b16 %v5306, %v5305
      %v5362 = vpack.c.b16 %v5308, %v5307
      %v5363 = vpack.c.b16 %v5310, %v5309
      %v5364 = vpack.c.b16 %v5312, %v5311
      %v5365 = vpack.c.b16 %v5314, %v5313
      %v5366 = vpack.c.b16 %v5316, %v5315
      %v5367 = vpack.c.b16 %v5318, %v5317
      %v5368 = vpack.c.b16 %v5320, %v5319
      %v5369 = vpack.c.b16 %v5322, %v5321
      %v5370 = vpack.c.b16 %v5324, %v5323
      %v5371 = vpack.c.b16 %v5326, %v5325
      %v5372 = vpack.c.b16 %v5328, %v5327
      %v5373 = vpack.c.b16 %v5330, %v5329
      %v5374 = vpack.c.b16 %v5332, %v5331
      %v5375 = vpack.c.b16 %v5334, %v5333
      %v5376 = vpack.c.b16 %v5336, %v5335
      %v5377 = vpack.c.b16 %v5338, %v5337
      %v5378 = vpack.c.b16 %v5340, %v5339
      %v5379 = vpack.c.b16 %v5342, %v5341
      %v5380 = vpack.c.b16 %v5344, %v5343
      %v5381 = vpack.c.b16 %v5346, %v5345
      %v5382 = vpack.c.b16 %v5348, %v5347
      %v5383 = vpack.c.b16 %v5350, %v5349
      %v5384 = vpack.c.b16 %v5352, %v5351
      %5417 = vmatpush.bf16.msra.mxu0 %v5360
      %5418 = vmatpush.bf16.msra.mxu0 %v5359
      %5419 = vmatpush.bf16.msra.mxu0 %v5358
      %5420 = vmatpush.bf16.msra.mxu0 %v5357
      %5421 = vmatpush.bf16.msra.mxu0 %v5356
      %5422 = vmatpush.bf16.msra.mxu0 %v5355
      %5423 = vmatpush.bf16.msra.mxu0 %v5354
      %5424 = vmatpush.bf16.msra.mxu0 %v5353
      %5425 = vmatmul.bf16.gmra.mxu0 %v5217
      %v5426 = vpop.f32.mrf.mxu0
      %v5427 = vadd.f32 %v5223, %v5426
      %v5428 = vpop.f32.mrf.mxu0
      %5429 = vdwg.mxu0
      %5430 = vmatpush.bf16.msra.mxu0 %v5368
      %5431 = vmatpush.bf16.msra.mxu0 %v5367
      %5432 = vmatpush.bf16.msra.mxu0 %v5366
      %5433 = vmatpush.bf16.msra.mxu0 %v5365
      %5434 = vmatpush.bf16.msra.mxu0 %v5364
      %5435 = vmatpush.bf16.msra.mxu0 %v5363
      %5436 = vmatpush.bf16.msra.mxu0 %v5362
      %5437 = vmatpush.bf16.msra.mxu0 %v5361
      %5438 = vmatmul.bf16.gmra.mxu0 %v5218
      %v5439 = vpop.f32.mrf.mxu0
      %v5440 = vadd.f32 %v5427, %v5439
      %v5441 = vpop.f32.mrf.mxu0
      %5442 = vdwg.mxu0
      %5443 = vmatpush.bf16.msra.mxu0 %v5376
      %5444 = vmatpush.bf16.msra.mxu0 %v5375
      %5445 = vmatpush.bf16.msra.mxu0 %v5374
      %5446 = vmatpush.bf16.msra.mxu0 %v5373
      %5447 = vmatpush.bf16.msra.mxu0 %v5372
      %5448 = vmatpush.bf16.msra.mxu0 %v5371
      %5449 = vmatpush.bf16.msra.mxu0 %v5370
      %5450 = vmatpush.bf16.msra.mxu0 %v5369
      %5451 = vmatmul.bf16.gmra.mxu0 %v5219
      %v5452 = vpop.f32.mrf.mxu0
      %v5453 = vadd.f32 %v5440, %v5452
      %v5454 = vpop.f32.mrf.mxu0
      %5455 = vdwg.mxu0
      %5456 = vmatpush.bf16.msra.mxu0 %v5384
      %5457 = vmatpush.bf16.msra.mxu0 %v5383
      %5458 = vmatpush.bf16.msra.mxu0 %v5382
      %5459 = vmatpush.bf16.msra.mxu0 %v5381
      %5460 = vmatpush.bf16.msra.mxu0 %v5380
      %5461 = vmatpush.bf16.msra.mxu0 %v5379
      %5462 = vmatpush.bf16.msra.mxu0 %v5378
      %5463 = vmatpush.bf16.msra.mxu0 %v5377
      %5464 = vmatmul.bf16.gmra.mxu0 %v5220
      %v5465 = vpop.f32.mrf.mxu0
      %v5466 = vadd.f32 %v5453, %v5465
      %v5467 = vpop.f32.mrf.mxu0
      %5468 = vdwg.mxu0
      %vm5469 = vcmask 97280
      %5470 = vst.msk [vmem:[%s1068] sm:$0xff] %vm5469, %v5466
      %p5471 = scmp.lt.s32.totalorder %s82, 1
      %s5472 = scalar_select %p5471, %s82, 1
      %s5473 = smul.addr %s5472, 8
      %s5474 = scalar_lea.vmem %s71, %s5473
      // Predicated region
      $region161: #{h_gcn_wh_forward.3} parent=159 // pred_check
        %p5475 = pneg %p840
      $region162: #{h_gcn_wh_forward.3} parent=159 // pred_check_branch
        %5477 = sbr.rel (%p5475) target = $region164
      $region163: #{h_gcn_wh_forward.3} parent=159 // pred_region
        _
      $region164: #{h_gcn_wh_forward.3} parent=159 // pred_fallthru
        _
    $region160: #{h_gcn_wh_forward.3} parent=5 // pred_fallthru
      _
    %p5478 = scmp.le.s32.totalorder 2, %s77
    // Predicated region
    $region165: #{h_gcn_wh_forward.3} parent=5 // pred_check
      %p5479 = pneg %p5478
    $region166: #{h_gcn_wh_forward.3} parent=5 // pred_check_branch
      %5481 = sbr.rel (%p5479) target = $region168
    $region167: #{h_gcn_wh_forward.3} parent=5 // pred_region
      %s5482 = ssub.s32 %s77, 2
      // Predicated region
      $region169: #{h_gcn_wh_forward.3} parent=167 // pred_check
        %p5483 = pneg %p846
      $region170: #{h_gcn_wh_forward.3} parent=167 // pred_check_branch
        %5485 = sbr.rel (%p5483) target = $region172
      $region171: #{h_gcn_wh_forward.3} parent=167 // pred_region
        %p5486 = scmp.lt.s32.totalorder %s83, 1
        %s5487 = scalar_select %p5486, %s83, 1
        %s5488 = smul.addr %s5487, 8
        %s5489 = scalar_lea.vmem %s71, %s5488
      $region172: #{h_gcn_wh_forward.3} parent=167 // pred_fallthru
        _
    $region168: #{h_gcn_wh_forward.3} parent=5 // pred_fallthru
      _
  $region6: #{h_gcn_wh_forward.3} parent=0 // loop_footer
    %s81 = sadd.s32 1, %s77
  $region7: #{h_gcn_wh_forward.3} parent=0 // loop_footer_branch
    %76 = sbr.rel target = $region3
  $region8: #{h_gcn_wh_forward.3} parent=0 // loop_exit
    _

</llo_original>
